<compile_context>
chip_gen: v6e
topology: v6e:2x2x1
jax: 0.10.0
libtpu: 0.0.40
codegen_flags: <defaults>
</compile_context>

<pallas_src>
import functools

import jax
import jax.numpy as jnp
from jax.experimental import pallas as pl
from jax.experimental.pallas import tpu as pltpu


def _vmem_limit_bytes():
    """3/4 of physical VMEM, capped at 96 MiB (=> ~48 MiB on v7x)."""
    try:
        cap = pltpu.get_tpu_info().vmem_capacity_bytes
    except Exception:
        cap = 64 * 1024 * 1024  # conservative fallback (v7x-sized)
    return min(cap * 3 // 4, 96 * 1024 * 1024)


VMEM_LIMIT_BYTES = _vmem_limit_bytes()


# ----------------------------------------------------------------------------
# In-kernel helpers
# ----------------------------------------------------------------------------
def _layer_norm(x, gamma, beta, eps=1e-12):
    mu = jnp.mean(x, axis=-1, keepdims=True)
    var = jnp.mean((x - mu) ** 2, axis=-1, keepdims=True)
    return (x - mu) * jax.lax.rsqrt(var + eps) * gamma + beta


def _weight_spec(arr):
    """Resident (grid-invariant) full-array BlockSpec for a weight tensor."""
    n = arr.ndim
    return pl.BlockSpec(arr.shape, lambda *args, _n=n: (0,) * _n)


# ----------------------------------------------------------------------------
# Kernel 1: fused encoder layer, one batch row per grid step.
#   x (S, D) bf16 residual stream, bias (1, S) f32 additive key mask
#   -> out (S, D) bf16
#   QKV proj -> attention -> out proj -> +res/LN1 -> FFN -> +res/LN2
# ----------------------------------------------------------------------------
def layer_kernel(x_ref, bias_ref,
                 wqkv_ref, bqkv_ref, wo_ref, bo_ref,
                 g1_ref, be1_ref, w1_ref, b1_ref, w2_ref, b2_ref,
                 g2_ref, be2_ref, out_ref):
    x_bf = x_ref[...]                                     # (S, D) bf16
    d = x_bf.shape[-1]

    # --- fused QKV projection (scale already folded into Q weights) -------
    qkv = jnp.dot(x_bf, wqkv_ref[...],
                  preferred_element_type=jnp.float32) + bqkv_ref[...]
    q = qkv[:, :d].astype(jnp.bfloat16)                   # (S, D)
    k = qkv[:, d:2 * d].astype(jnp.bfloat16)
    v = qkv[:, 2 * d:].astype(jnp.bfloat16)

    # --- single-head scaled-dot-product attention -------------------------
    scores = jax.lax.dot_general(
        q, k, dimension_numbers=(((1,), (1,)), ((), ())),
        preferred_element_type=jnp.float32)               # (S, S) f32
    scores = scores + bias_ref[...]                       # broadcast key mask

    m = jnp.max(scores, axis=-1, keepdims=True)
    p = jnp.exp(scores - m)
    p = p / jnp.sum(p, axis=-1, keepdims=True)            # exact softmax

    ctx = jnp.dot(p.astype(jnp.bfloat16), v,
                  preferred_element_type=jnp.float32)     # (S, D) f32

    # --- output projection + residual + LN1 --------------------------------
    attn = jnp.dot(ctx.astype(jnp.bfloat16), wo_ref[...],
                   preferred_element_type=jnp.float32) + bo_ref[...]
    h = _layer_norm(x_bf.astype(jnp.float32) + attn, g1_ref[...], be1_ref[...])

    # --- FFN + residual + LN2 ----------------------------------------------
    ff = jnp.dot(h.astype(jnp.bfloat16), w1_ref[...],
                 preferred_element_type=jnp.float32) + b1_ref[...]
    ff = jax.nn.gelu(ff, approximate=True)
    ff = jnp.dot(ff.astype(jnp.bfloat16), w2_ref[...],
                 preferred_element_type=jnp.float32) + b2_ref[...]

    out_ref[...] = _layer_norm(h + ff, g2_ref[...], be2_ref[...]
                               ).astype(out_ref.dtype)


def run_layer(x, bias, p):
    b, s, d = x.shape
    weights = [p['wqkv'], p['bqkv'], p['wo'], p['bo'],
               p['ln1_g'], p['ln1_b'], p['w1'], p['b1'],
               p['w2'], p['b2'], p['ln2_g'], p['ln2_b']]
    return pl.pallas_call(
        layer_kernel,
        out_shape=jax.ShapeDtypeStruct((b, s, d), jnp.bfloat16),
        grid=(b,),
        in_specs=[pl.BlockSpec((None, s, d), lambda i: (i, 0, 0)),
                  pl.BlockSpec((None, 1, s), lambda i: (i, 0, 0))]
                 + [_weight_spec(w) for w in weights],
        out_specs=pl.BlockSpec((None, s, d), lambda i: (i, 0, 0)),
        compiler_params=pltpu.CompilerParams(
            dimension_semantics=("parallel",),
            vmem_limit_bytes=VMEM_LIMIT_BYTES),
    )(x, bias, *weights)


# ----------------------------------------------------------------------------
# Kernel 2: BERT pooler (dense+tanh on CLS) + MLP head
#   fc1 -> relu -> dropout(identity at inference) -> fc2 -> softmax(dim=1)
#   Classes padded to a lane-dense 128-wide block (pad biases = -1e9).
# ----------------------------------------------------------------------------
def head_kernel(cls_ref, wp_ref, bp_ref, w1_ref, b1_ref, w2_ref, b2_ref,
                out_ref):
    cls = cls_ref[...]                                    # (B, D) bf16

    pooled = jnp.tanh(
        jnp.dot(cls, wp_ref[...], preferred_element_type=jnp.float32)
        + bp_ref[...])

    x = jnp.dot(pooled.astype(jnp.bfloat16), w1_ref[...],
                preferred_element_type=jnp.float32) + b1_ref[...]
    x = jnp.maximum(x, 0.0)                               # ReLU
    # nn.Dropout(0.2) is the identity at inference time (eval mode).
    logits = jnp.dot(x.astype(jnp.bfloat16), w2_ref[...],
                     preferred_element_type=jnp.float32) + b2_ref[...]

    # softmax over the (padded) class axis; pad logits are -1e9 -> exp == 0
    logits = logits - jnp.max(logits, axis=-1, keepdims=True)
    e = jnp.exp(logits)
    out_ref[...] = (e / jnp.sum(e, axis=-1, keepdims=True)
                    ).astype(out_ref.dtype)


def run_head(cls, p):
    b = cls.shape[0]
    nc_pad = p['fc2_w'].shape[1]
    args = [cls, p['wp'], p['bp'], p['fc1_w'], p['fc1_b'],
            p['fc2_w'], p['fc2_b']]
    return pl.pallas_call(
        head_kernel,
        out_shape=jax.ShapeDtypeStruct((b, nc_pad), jnp.float32),
        grid=(1,),
        in_specs=[_weight_spec(a) for a in args],
        out_specs=pl.BlockSpec((b, nc_pad), lambda i: (0, 0)),
        compiler_params=pltpu.CompilerParams(
            vmem_limit_bytes=VMEM_LIMIT_BYTES),
    )(*args)


# ----------------------------------------------------------------------------
# Deterministic parameter init (stand-in for pretrained checkpoint)
#   f32 masters, cast to bf16 for matmul weights; biases stay f32.
# ----------------------------------------------------------------------------
def _linear(key, fan_in, fan_out, scale=0.05):
    k1, k2 = jax.random.split(key)
    w = jax.random.normal(k1, (fan_in, fan_out), jnp.float32) * scale
    b = jax.random.normal(k2, (1, fan_out), jnp.float32) * scale
    return w, b


def init_params(key, vocab, seq, d_model, d_ff, n_layers, hidden_dim,
                num_class):
    keys = iter(jax.random.split(key, 8 + 8 * n_layers))
    params = {
        'word_emb': jax.random.normal(next(keys), (vocab, d_model),
                                      jnp.float32) * 0.05,
        'pos_emb': jax.random.normal(next(keys), (seq, d_model),
                                     jnp.float32) * 0.05,
        'layers': [],
    }
    inv_sqrt_d = 1.0 / jnp.sqrt(jnp.float32(d_model))

    for _ in range(n_layers):
        wqkv, bqkv = _linear(next(keys), d_model, 3 * d_model)   # fused Q|K|V
        # fold the 1/sqrt(d) attention scale into the Q slice (f32 master)
        wqkv = wqkv.at[:, :d_model].multiply(inv_sqrt_d)
        bqkv = bqkv.at[:, :d_model].multiply(inv_sqrt_d)
        wo, bo = _linear(next(keys), d_model, d_model)
        w1, b1 = _linear(next(keys), d_model, d_ff)
        w2, b2 = _linear(next(keys), d_ff, d_model)
        params['layers'].append(dict(
            wqkv=wqkv.astype(jnp.bfloat16), bqkv=bqkv,
            wo=wo.astype(jnp.bfloat16), bo=bo,
            w1=w1.astype(jnp.bfloat16), b1=b1,
            w2=w2.astype(jnp.bfloat16), b2=b2,
            ln1_g=jnp.ones((1, d_model), jnp.float32),
            ln1_b=jnp.zeros((1, d_model), jnp.float32),
            ln2_g=jnp.ones((1, d_model), jnp.float32),
            ln2_b=jnp.zeros((1, d_model), jnp.float32),
        ))

    wp, bp = _linear(next(keys), d_model, d_model)            # pooler dense
    fc1_w, fc1_b = _linear(next(keys), d_model, hidden_dim)   # self.fc1
    fc2_w, fc2_b = _linear(next(keys), hidden_dim, num_class)  # self.fc2

    # Pad the class dim to a lane-dense 128 multiple; pad biases to -1e9 so
    # padded classes vanish under softmax, pad weights to 0.
    nc_pad = ((num_class + 127) // 128) * 128
    fc2_w_p = jnp.zeros((hidden_dim, nc_pad), jnp.float32
                        ).at[:, :num_class].set(fc2_w)
    fc2_b_p = jnp.full((1, nc_pad), -1e9, jnp.float32
                       ).at[:, :num_class].set(fc2_b)

    params['head'] = dict(wp=wp.astype(jnp.bfloat16), bp=bp,
                          fc1_w=fc1_w.astype(jnp.bfloat16), fc1_b=fc1_b,
                          fc2_w=fc2_w_p.astype(jnp.bfloat16), fc2_b=fc2_b_p)
    return params


# ----------------------------------------------------------------------------
# Full forward: BERT-lite encoder -> pooler -> MLP head
# ----------------------------------------------------------------------------
@functools.partial(jax.jit, static_argnames=('num_class',))
def bert_plus_mlp_forward(input_ids, attention_mask, params, num_class):
    # embeddings (gather is glue, done in plain JAX); hidden stream is bf16
    x = params['word_emb'][input_ids] + params['pos_emb'][None, :, :]
    x = x.astype(jnp.bfloat16)                                # (B, S, D)
    b, s, d = x.shape

    # additive key mask, computed once and reused by every fused layer call
    bias = ((1.0 - attention_mask.astype(jnp.float32)) * (-1e9))[:, None, :]

    for lp in params['layers']:
        x = run_layer(x, bias, lp)                            # (B, S, D) bf16

    # only the CLS token row goes to the pooler/head kernel
    cls = x[:, 0, :]                                          # (B, D) bf16
    probs_pad = run_head(cls, params['head'])                 # (B, 128) f32
    return probs_pad[:, :num_class]


if __name__ == "__main__":
    B, S = 2, 16
    VOCAB, D_MODEL, D_FF, N_LAYERS = 1000, 128, 512, 2
    HIDDEN_DIM, NUM_CLASS = 256, 4

    key = jax.random.PRNGKey(0)
    k_ids, k_params = jax.random.split(key)

    input_ids = jax.random.randint(k_ids, (B, S), 0, VOCAB, dtype=jnp.int32)
    attention_mask = jnp.ones((B, S), jnp.int32).at[1, 12:].set(0)  # pad row 1

    params = init_params(k_params, VOCAB, S, D_MODEL, D_FF, N_LAYERS,
                         HIDDEN_DIM, NUM_CLASS)

    probs = bert_plus_mlp_forward(input_ids, attention_mask, params, NUM_CLASS)
    probs = jax.block_until_ready(probs)

    assert probs.shape == (B, NUM_CLASS)
    assert bool(jnp.all(jnp.isfinite(probs)))
    assert bool(jnp.all(probs >= 0.0))
    # exact f32 softmax division -> row sums very close to 1.0
    assert bool(jnp.allclose(jnp.sum(probs, axis=1), 1.0, atol=1e-3))
    print("KERNEL_OK")
</pallas_src>

<mosaic_0001>
module attributes {stable_mosaic.version = 11 : i64} {
  func.func @layer_kernel(%arg0: i32, %arg1: memref<1x16x128xbf16, #tpu.memory_space<vmem>>, %arg2: memref<1x1x16xf32, #tpu.memory_space<vmem>>, %arg3: memref<128x384xbf16, #tpu.memory_space<vmem>>, %arg4: memref<1x384xf32, #tpu.memory_space<vmem>>, %arg5: memref<128x128xbf16, #tpu.memory_space<vmem>>, %arg6: memref<1x128xf32, #tpu.memory_space<vmem>>, %arg7: memref<1x128xf32, #tpu.memory_space<vmem>>, %arg8: memref<1x128xf32, #tpu.memory_space<vmem>>, %arg9: memref<128x512xbf16, #tpu.memory_space<vmem>>, %arg10: memref<1x512xf32, #tpu.memory_space<vmem>>, %arg11: memref<512x128xbf16, #tpu.memory_space<vmem>>, %arg12: memref<1x128xf32, #tpu.memory_space<vmem>>, %arg13: memref<1x128xf32, #tpu.memory_space<vmem>>, %arg14: memref<1x128xf32, #tpu.memory_space<vmem>>, %arg15: memref<1x16x128xbf16, #tpu.memory_space<vmem>>) attributes {dimension_semantics = [#tpu.dimension_semantics<parallel>], iteration_bounds = array<i64: 2>, scalar_prefetch = 0 : i64, scratch_operands = 0 : i64, tpu.core_type = #tpu.core_type<tc>, window_params = [{transform_indices = @transform_0, window_bounds = array<i64: 1, 16, 128>}, {transform_indices = @transform_1, window_bounds = array<i64: 1, 1, 16>}, {pipeline_mode = #tpu.pipeline_mode<synchronous>, transform_indices = @transform_2, window_bounds = array<i64: 128, 384>}, {pipeline_mode = #tpu.pipeline_mode<synchronous>, transform_indices = @transform_3, window_bounds = array<i64: 1, 384>}, {pipeline_mode = #tpu.pipeline_mode<synchronous>, transform_indices = @transform_4, window_bounds = array<i64: 128, 128>}, {pipeline_mode = #tpu.pipeline_mode<synchronous>, transform_indices = @transform_5, window_bounds = array<i64: 1, 128>}, {pipeline_mode = #tpu.pipeline_mode<synchronous>, transform_indices = @transform_6, window_bounds = array<i64: 1, 128>}, {pipeline_mode = #tpu.pipeline_mode<synchronous>, transform_indices = @transform_7, window_bounds = array<i64: 1, 128>}, {pipeline_mode = #tpu.pipeline_mode<synchronous>, transform_indices = @transform_8, window_bounds = array<i64: 128, 512>}, {pipeline_mode = #tpu.pipeline_mode<synchronous>, transform_indices = @transform_9, window_bounds = array<i64: 1, 512>}, {pipeline_mode = #tpu.pipeline_mode<synchronous>, transform_indices = @transform_10, window_bounds = array<i64: 512, 128>}, {pipeline_mode = #tpu.pipeline_mode<synchronous>, transform_indices = @transform_11, window_bounds = array<i64: 1, 128>}, {pipeline_mode = #tpu.pipeline_mode<synchronous>, transform_indices = @transform_12, window_bounds = array<i64: 1, 128>}, {pipeline_mode = #tpu.pipeline_mode<synchronous>, transform_indices = @transform_13, window_bounds = array<i64: 1, 128>}, {transform_indices = @transform_14, window_bounds = array<i64: 1, 16, 128>}]} {
    %c0 = arith.constant 0 : index
    %c0_0 = arith.constant 0 : index
    %c0_1 = arith.constant 0 : index
    %0 = vector.load %arg1[%c0, %c0_0, %c0_1] : memref<1x16x128xbf16, #tpu.memory_space<vmem>>, vector<1x16x128xbf16>
    %1 = vector.shape_cast %0 : vector<1x16x128xbf16> to vector<16x128xbf16>
    %c0_2 = arith.constant 0 : index
    %c0_3 = arith.constant 0 : index
    %2 = vector.load %arg3[%c0_2, %c0_3] : memref<128x384xbf16, #tpu.memory_space<vmem>>, vector<128x384xbf16>
    %cst = arith.constant dense<0.000000e+00> : vector<16x384xf32>
    %3 = tpu.matmul %1, %2, %cst {dimension_numbers = #tpu.dot_dimension_numbers<[1], [0], [0], [1], [0, 0, 1, 1], [], []>} : vector<16x128xbf16>, vector<128x384xbf16>, vector<16x384xf32> -> vector<16x384xf32>
    %c0_4 = arith.constant 0 : index
    %c0_5 = arith.constant 0 : index
    %4 = vector.load %arg4[%c0_4, %c0_5] : memref<1x384xf32, #tpu.memory_space<vmem>>, vector<1x384xf32>
    %5 = vector.broadcast %4 : vector<1x384xf32> to vector<16x384xf32>
    %6 = arith.addf %3, %5 : vector<16x384xf32>
    %7 = vector.extract_strided_slice %6 {offsets = [0, 0], sizes = [16, 128], strides = [1, 1]} : vector<16x384xf32> to vector<16x128xf32>
    %8 = arith.truncf %7 : vector<16x128xf32> to vector<16x128xbf16>
    %9 = vector.extract_strided_slice %6 {offsets = [0, 128], sizes = [16, 128], strides = [1, 1]} : vector<16x384xf32> to vector<16x128xf32>
    %10 = arith.truncf %9 : vector<16x128xf32> to vector<16x128xbf16>
    %11 = vector.extract_strided_slice %6 {offsets = [0, 256], sizes = [16, 128], strides = [1, 1]} : vector<16x384xf32> to vector<16x128xf32>
    %12 = arith.truncf %11 : vector<16x128xf32> to vector<16x128xbf16>
    %cst_6 = arith.constant dense<0.000000e+00> : vector<16x16xf32>
    %13 = tpu.matmul %8, %10, %cst_6 {dimension_numbers = #tpu.dot_dimension_numbers<[1], [1], [0], [0], [0, 0, 1, 0], [], []>} : vector<16x128xbf16>, vector<16x128xbf16>, vector<16x16xf32> -> vector<16x16xf32>
    %c0_7 = arith.constant 0 : index
    %c0_8 = arith.constant 0 : index
    %c0_9 = arith.constant 0 : index
    %14 = vector.load %arg2[%c0_7, %c0_8, %c0_9] : memref<1x1x16xf32, #tpu.memory_space<vmem>>, vector<1x1x16xf32>
    %15 = vector.shape_cast %14 : vector<1x1x16xf32> to vector<1x16xf32>
    %16 = vector.broadcast %15 : vector<1x16xf32> to vector<16x16xf32>
    %17 = arith.addf %13, %16 : vector<16x16xf32>
    %cst_10 = arith.constant dense<0xFF800000> : vector<16xf32>
    %18 = vector.multi_reduction <maximumf>, %17, %cst_10 [1] : vector<16x16xf32> to vector<16xf32>
    %19 = vector.shape_cast %18 : vector<16xf32> to vector<16x1xf32>
    %20 = vector.broadcast %19 : vector<16x1xf32> to vector<16x16xf32>
    %21 = arith.subf %17, %20 : vector<16x16xf32>
    %22 = math.exp %21 : vector<16x16xf32>
    %cst_11 = arith.constant dense<0.000000e+00> : vector<16xf32>
    %23 = vector.multi_reduction <add>, %22, %cst_11 [1] : vector<16x16xf32> to vector<16xf32>
    %24 = vector.shape_cast %23 : vector<16xf32> to vector<16x1xf32>
    %25 = vector.broadcast %24 : vector<16x1xf32> to vector<16x16xf32>
    %26 = arith.divf %22, %25 : vector<16x16xf32>
    %27 = arith.truncf %26 : vector<16x16xf32> to vector<16x16xbf16>
    %cst_12 = arith.constant dense<0.000000e+00> : vector<16x128xf32>
    %28 = tpu.matmul %27, %12, %cst_12 {dimension_numbers = #tpu.dot_dimension_numbers<[1], [0], [0], [1], [0, 0, 1, 1], [], []>} : vector<16x16xbf16>, vector<16x128xbf16>, vector<16x128xf32> -> vector<16x128xf32>
    %29 = arith.truncf %28 : vector<16x128xf32> to vector<16x128xbf16>
    %c0_13 = arith.constant 0 : index
    %c0_14 = arith.constant 0 : index
    %30 = vector.load %arg5[%c0_13, %c0_14] : memref<128x128xbf16, #tpu.memory_space<vmem>>, vector<128x128xbf16>
    %cst_15 = arith.constant dense<0.000000e+00> : vector<16x128xf32>
    %31 = tpu.matmul %29, %30, %cst_15 {dimension_numbers = #tpu.dot_dimension_numbers<[1], [0], [0], [1], [0, 0, 1, 1], [], []>} : vector<16x128xbf16>, vector<128x128xbf16>, vector<16x128xf32> -> vector<16x128xf32>
    %c0_16 = arith.constant 0 : index
    %c0_17 = arith.constant 0 : index
    %32 = vector.load %arg6[%c0_16, %c0_17] : memref<1x128xf32, #tpu.memory_space<vmem>>, vector<1x128xf32>
    %33 = vector.broadcast %32 : vector<1x128xf32> to vector<16x128xf32>
    %34 = arith.addf %31, %33 : vector<16x128xf32>
    %35 = arith.extf %1 : vector<16x128xbf16> to vector<16x128xf32>
    %36 = arith.addf %35, %34 : vector<16x128xf32>
    %c0_18 = arith.constant 0 : index
    %c0_19 = arith.constant 0 : index
    %37 = vector.load %arg7[%c0_18, %c0_19] : memref<1x128xf32, #tpu.memory_space<vmem>>, vector<1x128xf32>
    %c0_20 = arith.constant 0 : index
    %c0_21 = arith.constant 0 : index
    %38 = vector.load %arg8[%c0_20, %c0_21] : memref<1x128xf32, #tpu.memory_space<vmem>>, vector<1x128xf32>
    %cst_22 = arith.constant dense<0.000000e+00> : vector<16xf32>
    %39 = vector.multi_reduction <add>, %36, %cst_22 [1] : vector<16x128xf32> to vector<16xf32>
    %40 = vector.shape_cast %39 : vector<16xf32> to vector<16x1xf32>
    %cst_23 = arith.constant 1.280000e+02 : f32
    %41 = vector.broadcast %cst_23 : f32 to vector<16x1xf32>
    %42 = arith.divf %40, %41 : vector<16x1xf32>
    %43 = vector.broadcast %42 : vector<16x1xf32> to vector<16x128xf32>
    %44 = arith.subf %36, %43 : vector<16x128xf32>
    %45 = arith.mulf %44, %44 : vector<16x128xf32>
    %cst_24 = arith.constant dense<0.000000e+00> : vector<16xf32>
    %46 = vector.multi_reduction <add>, %45, %cst_24 [1] : vector<16x128xf32> to vector<16xf32>
    %47 = vector.shape_cast %46 : vector<16xf32> to vector<16x1xf32>
    %cst_25 = arith.constant 1.280000e+02 : f32
    %48 = vector.broadcast %cst_25 : f32 to vector<16x1xf32>
    %49 = arith.divf %47, %48 : vector<16x1xf32>
    %50 = vector.broadcast %42 : vector<16x1xf32> to vector<16x128xf32>
    %51 = arith.subf %36, %50 : vector<16x128xf32>
    %cst_26 = arith.constant 9.99999996E-13 : f32
    %52 = vector.broadcast %cst_26 : f32 to vector<16x1xf32>
    %53 = arith.addf %49, %52 : vector<16x1xf32>
    %54 = math.rsqrt %53 : vector<16x1xf32>
    %55 = vector.broadcast %54 : vector<16x1xf32> to vector<16x128xf32>
    %56 = arith.mulf %51, %55 : vector<16x128xf32>
    %57 = vector.broadcast %37 : vector<1x128xf32> to vector<16x128xf32>
    %58 = arith.mulf %56, %57 : vector<16x128xf32>
    %59 = vector.broadcast %38 : vector<1x128xf32> to vector<16x128xf32>
    %60 = arith.addf %58, %59 : vector<16x128xf32>
    %61 = arith.truncf %60 : vector<16x128xf32> to vector<16x128xbf16>
    %c0_27 = arith.constant 0 : index
    %c0_28 = arith.constant 0 : index
    %62 = vector.load %arg9[%c0_27, %c0_28] : memref<128x512xbf16, #tpu.memory_space<vmem>>, vector<128x512xbf16>
    %cst_29 = arith.constant dense<0.000000e+00> : vector<16x512xf32>
    %63 = tpu.matmul %61, %62, %cst_29 {dimension_numbers = #tpu.dot_dimension_numbers<[1], [0], [0], [1], [0, 0, 1, 1], [], []>} : vector<16x128xbf16>, vector<128x512xbf16>, vector<16x512xf32> -> vector<16x512xf32>
    %c0_30 = arith.constant 0 : index
    %c0_31 = arith.constant 0 : index
    %64 = vector.load %arg10[%c0_30, %c0_31] : memref<1x512xf32, #tpu.memory_space<vmem>>, vector<1x512xf32>
    %65 = vector.broadcast %64 : vector<1x512xf32> to vector<16x512xf32>
    %66 = arith.addf %63, %65 : vector<16x512xf32>
    %67 = arith.mulf %66, %66 : vector<16x512xf32>
    %68 = arith.mulf %66, %67 : vector<16x512xf32>
    %cst_32 = arith.constant 4.471500e-02 : f32
    %69 = vector.broadcast %cst_32 : f32 to vector<16x512xf32>
    %70 = arith.mulf %69, %68 : vector<16x512xf32>
    %71 = arith.addf %66, %70 : vector<16x512xf32>
    %cst_33 = arith.constant 0.797884583 : f32
    %72 = vector.broadcast %cst_33 : f32 to vector<16x512xf32>
    %73 = arith.mulf %72, %71 : vector<16x512xf32>
    %74 = math.tanh %73 : vector<16x512xf32>
    %cst_34 = arith.constant 1.000000e+00 : f32
    %75 = vector.broadcast %cst_34 : f32 to vector<16x512xf32>
    %76 = arith.addf %75, %74 : vector<16x512xf32>
    %cst_35 = arith.constant 5.000000e-01 : f32
    %77 = vector.broadcast %cst_35 : f32 to vector<16x512xf32>
    %78 = arith.mulf %77, %76 : vector<16x512xf32>
    %79 = arith.mulf %66, %78 : vector<16x512xf32>
    %80 = arith.truncf %79 : vector<16x512xf32> to vector<16x512xbf16>
    %c0_36 = arith.constant 0 : index
    %c0_37 = arith.constant 0 : index
    %81 = vector.load %arg11[%c0_36, %c0_37] : memref<512x128xbf16, #tpu.memory_space<vmem>>, vector<512x128xbf16>
    %cst_38 = arith.constant dense<0.000000e+00> : vector<16x128xf32>
    %82 = tpu.matmul %80, %81, %cst_38 {dimension_numbers = #tpu.dot_dimension_numbers<[1], [0], [0], [1], [0, 0, 1, 1], [], []>} : vector<16x512xbf16>, vector<512x128xbf16>, vector<16x128xf32> -> vector<16x128xf32>
    %c0_39 = arith.constant 0 : index
    %c0_40 = arith.constant 0 : index
    %83 = vector.load %arg12[%c0_39, %c0_40] : memref<1x128xf32, #tpu.memory_space<vmem>>, vector<1x128xf32>
    %84 = vector.broadcast %83 : vector<1x128xf32> to vector<16x128xf32>
    %85 = arith.addf %82, %84 : vector<16x128xf32>
    %86 = arith.addf %60, %85 : vector<16x128xf32>
    %c0_41 = arith.constant 0 : index
    %c0_42 = arith.constant 0 : index
    %87 = vector.load %arg13[%c0_41, %c0_42] : memref<1x128xf32, #tpu.memory_space<vmem>>, vector<1x128xf32>
    %c0_43 = arith.constant 0 : index
    %c0_44 = arith.constant 0 : index
    %88 = vector.load %arg14[%c0_43, %c0_44] : memref<1x128xf32, #tpu.memory_space<vmem>>, vector<1x128xf32>
    %cst_45 = arith.constant dense<0.000000e+00> : vector<16xf32>
    %89 = vector.multi_reduction <add>, %86, %cst_45 [1] : vector<16x128xf32> to vector<16xf32>
    %90 = vector.shape_cast %89 : vector<16xf32> to vector<16x1xf32>
    %cst_46 = arith.constant 1.280000e+02 : f32
    %91 = vector.broadcast %cst_46 : f32 to vector<16x1xf32>
    %92 = arith.divf %90, %91 : vector<16x1xf32>
    %93 = vector.broadcast %92 : vector<16x1xf32> to vector<16x128xf32>
    %94 = arith.subf %86, %93 : vector<16x128xf32>
    %95 = arith.mulf %94, %94 : vector<16x128xf32>
    %cst_47 = arith.constant dense<0.000000e+00> : vector<16xf32>
    %96 = vector.multi_reduction <add>, %95, %cst_47 [1] : vector<16x128xf32> to vector<16xf32>
    %97 = vector.shape_cast %96 : vector<16xf32> to vector<16x1xf32>
    %cst_48 = arith.constant 1.280000e+02 : f32
    %98 = vector.broadcast %cst_48 : f32 to vector<16x1xf32>
    %99 = arith.divf %97, %98 : vector<16x1xf32>
    %100 = vector.broadcast %92 : vector<16x1xf32> to vector<16x128xf32>
    %101 = arith.subf %86, %100 : vector<16x128xf32>
    %cst_49 = arith.constant 9.99999996E-13 : f32
    %102 = vector.broadcast %cst_49 : f32 to vector<16x1xf32>
    %103 = arith.addf %99, %102 : vector<16x1xf32>
    %104 = math.rsqrt %103 : vector<16x1xf32>
    %105 = vector.broadcast %104 : vector<16x1xf32> to vector<16x128xf32>
    %106 = arith.mulf %101, %105 : vector<16x128xf32>
    %107 = vector.broadcast %87 : vector<1x128xf32> to vector<16x128xf32>
    %108 = arith.mulf %106, %107 : vector<16x128xf32>
    %109 = vector.broadcast %88 : vector<1x128xf32> to vector<16x128xf32>
    %110 = arith.addf %108, %109 : vector<16x128xf32>
    %111 = arith.truncf %110 : vector<16x128xf32> to vector<16x128xbf16>
    %c0_50 = arith.constant 0 : index
    %c0_51 = arith.constant 0 : index
    %c0_52 = arith.constant 0 : index
    %112 = vector.load %arg15[%c0_50, %c0_51, %c0_52] : memref<1x16x128xbf16, #tpu.memory_space<vmem>>, vector<1x16x128xbf16>
    %113 = vector.shape_cast %112 : vector<1x16x128xbf16> to vector<16x128xbf16>
    %114 = vector.shape_cast %111 : vector<16x128xbf16> to vector<1x16x128xbf16>
    tpu.vector_store %arg15[%c0_50, %c0_51, %c0_52], %114 {strides = array<i32>} : memref<1x16x128xbf16, #tpu.memory_space<vmem>>, vector<1x16x128xbf16>,
    return
  }
  func.func @transform_0(%arg0: i32) -> (i32, i32, i32) {
    %c0_i32 = arith.constant 0 : i32
    %c0_i32_0 = arith.constant 0 : i32
    %c0_i32_1 = arith.constant 0 : i32
    return %arg0, %c0_i32, %c0_i32_0 : i32, i32, i32
  }
  func.func @transform_1(%arg0: i32) -> (i32, i32, i32) {
    %c0_i32 = arith.constant 0 : i32
    %c0_i32_0 = arith.constant 0 : i32
    %c0_i32_1 = arith.constant 0 : i32
    return %arg0, %c0_i32, %c0_i32_0 : i32, i32, i32
  }
  func.func @transform_2(%arg0: i32) -> (i32, i32) {
    %c0_i32 = arith.constant 0 : i32
    %c0_i32_0 = arith.constant 0 : i32
    %c0_i32_1 = arith.constant 0 : i32
    return %c0_i32, %c0_i32_0 : i32, i32
  }
  func.func @transform_3(%arg0: i32) -> (i32, i32) {
    %c0_i32 = arith.constant 0 : i32
    %c0_i32_0 = arith.constant 0 : i32
    %c0_i32_1 = arith.constant 0 : i32
    return %c0_i32, %c0_i32_0 : i32, i32
  }
  func.func @transform_4(%arg0: i32) -> (i32, i32) {
    %c0_i32 = arith.constant 0 : i32
    %c0_i32_0 = arith.constant 0 : i32
    %c0_i32_1 = arith.constant 0 : i32
    return %c0_i32, %c0_i32_0 : i32, i32
  }
  func.func @transform_5(%arg0: i32) -> (i32, i32) {
    %c0_i32 = arith.constant 0 : i32
    %c0_i32_0 = arith.constant 0 : i32
    %c0_i32_1 = arith.constant 0 : i32
    return %c0_i32, %c0_i32_0 : i32, i32
  }
  func.func @transform_6(%arg0: i32) -> (i32, i32) {
    %c0_i32 = arith.constant 0 : i32
    %c0_i32_0 = arith.constant 0 : i32
    %c0_i32_1 = arith.constant 0 : i32
    return %c0_i32, %c0_i32_0 : i32, i32
  }
  func.func @transform_7(%arg0: i32) -> (i32, i32) {
    %c0_i32 = arith.constant 0 : i32
    %c0_i32_0 = arith.constant 0 : i32
    %c0_i32_1 = arith.constant 0 : i32
    return %c0_i32, %c0_i32_0 : i32, i32
  }
  func.func @transform_8(%arg0: i32) -> (i32, i32) {
    %c0_i32 = arith.constant 0 : i32
    %c0_i32_0 = arith.constant 0 : i32
    %c0_i32_1 = arith.constant 0 : i32
    return %c0_i32, %c0_i32_0 : i32, i32
  }
  func.func @transform_9(%arg0: i32) -> (i32, i32) {
    %c0_i32 = arith.constant 0 : i32
    %c0_i32_0 = arith.constant 0 : i32
    %c0_i32_1 = arith.constant 0 : i32
    return %c0_i32, %c0_i32_0 : i32, i32
  }
  func.func @transform_10(%arg0: i32) -> (i32, i32) {
    %c0_i32 = arith.constant 0 : i32
    %c0_i32_0 = arith.constant 0 : i32
    %c0_i32_1 = arith.constant 0 : i32
    return %c0_i32, %c0_i32_0 : i32, i32
  }
  func.func @transform_11(%arg0: i32) -> (i32, i32) {
    %c0_i32 = arith.constant 0 : i32
    %c0_i32_0 = arith.constant 0 : i32
    %c0_i32_1 = arith.constant 0 : i32
    return %c0_i32, %c0_i32_0 : i32, i32
  }
  func.func @transform_12(%arg0: i32) -> (i32, i32) {
    %c0_i32 = arith.constant 0 : i32
    %c0_i32_0 = arith.constant 0 : i32
    %c0_i32_1 = arith.constant 0 : i32
    return %c0_i32, %c0_i32_0 : i32, i32
  }
  func.func @transform_13(%arg0: i32) -> (i32, i32) {
    %c0_i32 = arith.constant 0 : i32
    %c0_i32_0 = arith.constant 0 : i32
    %c0_i32_1 = arith.constant 0 : i32
    return %c0_i32, %c0_i32_0 : i32, i32
  }
  func.func @transform_14(%arg0: i32) -> (i32, i32, i32) {
    %c0_i32 = arith.constant 0 : i32
    %c0_i32_0 = arith.constant 0 : i32
    %c0_i32_1 = arith.constant 0 : i32
    return %arg0, %c0_i32, %c0_i32_0 : i32, i32, i32
  }
}

module attributes {stable_mosaic.version = 11 : i64} {
  func.func @layer_kernel(%arg0: i32, %arg1: memref<1x16x128xbf16, #tpu.memory_space<vmem>>, %arg2: memref<1x1x16xf32, #tpu.memory_space<vmem>>, %arg3: memref<128x384xbf16, #tpu.memory_space<vmem>>, %arg4: memref<1x384xf32, #tpu.memory_space<vmem>>, %arg5: memref<128x128xbf16, #tpu.memory_space<vmem>>, %arg6: memref<1x128xf32, #tpu.memory_space<vmem>>, %arg7: memref<1x128xf32, #tpu.memory_space<vmem>>, %arg8: memref<1x128xf32, #tpu.memory_space<vmem>>, %arg9: memref<128x512xbf16, #tpu.memory_space<vmem>>, %arg10: memref<1x512xf32, #tpu.memory_space<vmem>>, %arg11: memref<512x128xbf16, #tpu.memory_space<vmem>>, %arg12: memref<1x128xf32, #tpu.memory_space<vmem>>, %arg13: memref<1x128xf32, #tpu.memory_space<vmem>>, %arg14: memref<1x128xf32, #tpu.memory_space<vmem>>, %arg15: memref<1x16x128xbf16, #tpu.memory_space<vmem>>) attributes {dimension_semantics = [#tpu.dimension_semantics<parallel>], iteration_bounds = array<i64: 2>, scalar_prefetch = 0 : i64, scratch_operands = 0 : i64, tpu.core_type = #tpu.core_type<tc>, window_params = [{transform_indices = @transform_0, window_bounds = array<i64: 1, 16, 128>}, {transform_indices = @transform_1, window_bounds = array<i64: 1, 1, 16>}, {pipeline_mode = #tpu.pipeline_mode<synchronous>, transform_indices = @transform_2, window_bounds = array<i64: 128, 384>}, {pipeline_mode = #tpu.pipeline_mode<synchronous>, transform_indices = @transform_3, window_bounds = array<i64: 1, 384>}, {pipeline_mode = #tpu.pipeline_mode<synchronous>, transform_indices = @transform_4, window_bounds = array<i64: 128, 128>}, {pipeline_mode = #tpu.pipeline_mode<synchronous>, transform_indices = @transform_5, window_bounds = array<i64: 1, 128>}, {pipeline_mode = #tpu.pipeline_mode<synchronous>, transform_indices = @transform_6, window_bounds = array<i64: 1, 128>}, {pipeline_mode = #tpu.pipeline_mode<synchronous>, transform_indices = @transform_7, window_bounds = array<i64: 1, 128>}, {pipeline_mode = #tpu.pipeline_mode<synchronous>, transform_indices = @transform_8, window_bounds = array<i64: 128, 512>}, {pipeline_mode = #tpu.pipeline_mode<synchronous>, transform_indices = @transform_9, window_bounds = array<i64: 1, 512>}, {pipeline_mode = #tpu.pipeline_mode<synchronous>, transform_indices = @transform_10, window_bounds = array<i64: 512, 128>}, {pipeline_mode = #tpu.pipeline_mode<synchronous>, transform_indices = @transform_11, window_bounds = array<i64: 1, 128>}, {pipeline_mode = #tpu.pipeline_mode<synchronous>, transform_indices = @transform_12, window_bounds = array<i64: 1, 128>}, {pipeline_mode = #tpu.pipeline_mode<synchronous>, transform_indices = @transform_13, window_bounds = array<i64: 1, 128>}, {transform_indices = @transform_14, window_bounds = array<i64: 1, 16, 128>}]} {
    %c0 = arith.constant 0 : index
    %c0_0 = arith.constant 0 : index
    %c0_1 = arith.constant 0 : index
    %0 = vector.load %arg1[%c0, %c0_0, %c0_1] : memref<1x16x128xbf16, #tpu.memory_space<vmem>>, vector<1x16x128xbf16>
    %1 = vector.shape_cast %0 : vector<1x16x128xbf16> to vector<16x128xbf16>
    %c0_2 = arith.constant 0 : index
    %c0_3 = arith.constant 0 : index
    %2 = vector.load %arg3[%c0_2, %c0_3] : memref<128x384xbf16, #tpu.memory_space<vmem>>, vector<128x384xbf16>
    %cst = arith.constant dense<0.000000e+00> : vector<16x384xf32>
    %3 = tpu.matmul %1, %2, %cst {dimension_numbers = #tpu.dot_dimension_numbers<[1], [0], [0], [1], [0, 0, 1, 1], [], []>} : vector<16x128xbf16>, vector<128x384xbf16>, vector<16x384xf32> -> vector<16x384xf32>
    %c0_4 = arith.constant 0 : index
    %c0_5 = arith.constant 0 : index
    %4 = vector.load %arg4[%c0_4, %c0_5] : memref<1x384xf32, #tpu.memory_space<vmem>>, vector<1x384xf32>
    %5 = vector.broadcast %4 : vector<1x384xf32> to vector<16x384xf32>
    %6 = arith.addf %3, %5 : vector<16x384xf32>
    %7 = vector.extract_strided_slice %6 {offsets = [0, 0], sizes = [16, 128], strides = [1, 1]} : vector<16x384xf32> to vector<16x128xf32>
    %8 = arith.truncf %7 : vector<16x128xf32> to vector<16x128xbf16>
    %9 = vector.extract_strided_slice %6 {offsets = [0, 128], sizes = [16, 128], strides = [1, 1]} : vector<16x384xf32> to vector<16x128xf32>
    %10 = arith.truncf %9 : vector<16x128xf32> to vector<16x128xbf16>
    %11 = vector.extract_strided_slice %6 {offsets = [0, 256], sizes = [16, 128], strides = [1, 1]} : vector<16x384xf32> to vector<16x128xf32>
    %12 = arith.truncf %11 : vector<16x128xf32> to vector<16x128xbf16>
    %cst_6 = arith.constant dense<0.000000e+00> : vector<16x16xf32>
    %13 = tpu.matmul %8, %10, %cst_6 {dimension_numbers = #tpu.dot_dimension_numbers<[1], [1], [0], [0], [0, 0, 1, 0], [], []>} : vector<16x128xbf16>, vector<16x128xbf16>, vector<16x16xf32> -> vector<16x16xf32>
    %c0_7 = arith.constant 0 : index
    %c0_8 = arith.constant 0 : index
    %c0_9 = arith.constant 0 : index
    %14 = vector.load %arg2[%c0_7, %c0_8, %c0_9] : memref<1x1x16xf32, #tpu.memory_space<vmem>>, vector<1x1x16xf32>
    %15 = vector.shape_cast %14 : vector<1x1x16xf32> to vector<1x16xf32>
    %16 = vector.broadcast %15 : vector<1x16xf32> to vector<16x16xf32>
    %17 = arith.addf %13, %16 : vector<16x16xf32>
    %cst_10 = arith.constant dense<0xFF800000> : vector<16xf32>
    %18 = vector.multi_reduction <maximumf>, %17, %cst_10 [1] : vector<16x16xf32> to vector<16xf32>
    %19 = vector.shape_cast %18 : vector<16xf32> to vector<16x1xf32>
    %20 = vector.broadcast %19 : vector<16x1xf32> to vector<16x16xf32>
    %21 = arith.subf %17, %20 : vector<16x16xf32>
    %22 = math.exp %21 : vector<16x16xf32>
    %cst_11 = arith.constant dense<0.000000e+00> : vector<16xf32>
    %23 = vector.multi_reduction <add>, %22, %cst_11 [1] : vector<16x16xf32> to vector<16xf32>
    %24 = vector.shape_cast %23 : vector<16xf32> to vector<16x1xf32>
    %25 = vector.broadcast %24 : vector<16x1xf32> to vector<16x16xf32>
    %26 = arith.divf %22, %25 : vector<16x16xf32>
    %27 = arith.truncf %26 : vector<16x16xf32> to vector<16x16xbf16>
    %cst_12 = arith.constant dense<0.000000e+00> : vector<16x128xf32>
    %28 = tpu.matmul %27, %12, %cst_12 {dimension_numbers = #tpu.dot_dimension_numbers<[1], [0], [0], [1], [0, 0, 1, 1], [], []>} : vector<16x16xbf16>, vector<16x128xbf16>, vector<16x128xf32> -> vector<16x128xf32>
    %29 = arith.truncf %28 : vector<16x128xf32> to vector<16x128xbf16>
    %c0_13 = arith.constant 0 : index
    %c0_14 = arith.constant 0 : index
    %30 = vector.load %arg5[%c0_13, %c0_14] : memref<128x128xbf16, #tpu.memory_space<vmem>>, vector<128x128xbf16>
    %cst_15 = arith.constant dense<0.000000e+00> : vector<16x128xf32>
    %31 = tpu.matmul %29, %30, %cst_15 {dimension_numbers = #tpu.dot_dimension_numbers<[1], [0], [0], [1], [0, 0, 1, 1], [], []>} : vector<16x128xbf16>, vector<128x128xbf16>, vector<16x128xf32> -> vector<16x128xf32>
    %c0_16 = arith.constant 0 : index
    %c0_17 = arith.constant 0 : index
    %32 = vector.load %arg6[%c0_16, %c0_17] : memref<1x128xf32, #tpu.memory_space<vmem>>, vector<1x128xf32>
    %33 = vector.broadcast %32 : vector<1x128xf32> to vector<16x128xf32>
    %34 = arith.addf %31, %33 : vector<16x128xf32>
    %35 = arith.extf %1 : vector<16x128xbf16> to vector<16x128xf32>
    %36 = arith.addf %35, %34 : vector<16x128xf32>
    %c0_18 = arith.constant 0 : index
    %c0_19 = arith.constant 0 : index
    %37 = vector.load %arg7[%c0_18, %c0_19] : memref<1x128xf32, #tpu.memory_space<vmem>>, vector<1x128xf32>
    %c0_20 = arith.constant 0 : index
    %c0_21 = arith.constant 0 : index
    %38 = vector.load %arg8[%c0_20, %c0_21] : memref<1x128xf32, #tpu.memory_space<vmem>>, vector<1x128xf32>
    %cst_22 = arith.constant dense<0.000000e+00> : vector<16xf32>
    %39 = vector.multi_reduction <add>, %36, %cst_22 [1] : vector<16x128xf32> to vector<16xf32>
    %40 = vector.shape_cast %39 : vector<16xf32> to vector<16x1xf32>
    %cst_23 = arith.constant 1.280000e+02 : f32
    %41 = vector.broadcast %cst_23 : f32 to vector<16x1xf32>
    %42 = arith.divf %40, %41 : vector<16x1xf32>
    %43 = vector.broadcast %42 : vector<16x1xf32> to vector<16x128xf32>
    %44 = arith.subf %36, %43 : vector<16x128xf32>
    %45 = arith.mulf %44, %44 : vector<16x128xf32>
    %cst_24 = arith.constant dense<0.000000e+00> : vector<16xf32>
    %46 = vector.multi_reduction <add>, %45, %cst_24 [1] : vector<16x128xf32> to vector<16xf32>
    %47 = vector.shape_cast %46 : vector<16xf32> to vector<16x1xf32>
    %cst_25 = arith.constant 1.280000e+02 : f32
    %48 = vector.broadcast %cst_25 : f32 to vector<16x1xf32>
    %49 = arith.divf %47, %48 : vector<16x1xf32>
    %50 = vector.broadcast %42 : vector<16x1xf32> to vector<16x128xf32>
    %51 = arith.subf %36, %50 : vector<16x128xf32>
    %cst_26 = arith.constant 9.99999996E-13 : f32
    %52 = vector.broadcast %cst_26 : f32 to vector<16x1xf32>
    %53 = arith.addf %49, %52 : vector<16x1xf32>
    %54 = math.rsqrt %53 : vector<16x1xf32>
    %55 = vector.broadcast %54 : vector<16x1xf32> to vector<16x128xf32>
    %56 = arith.mulf %51, %55 : vector<16x128xf32>
    %57 = vector.broadcast %37 : vector<1x128xf32> to vector<16x128xf32>
    %58 = arith.mulf %56, %57 : vector<16x128xf32>
    %59 = vector.broadcast %38 : vector<1x128xf32> to vector<16x128xf32>
    %60 = arith.addf %58, %59 : vector<16x128xf32>
    %61 = arith.truncf %60 : vector<16x128xf32> to vector<16x128xbf16>
    %c0_27 = arith.constant 0 : index
    %c0_28 = arith.constant 0 : index
    %62 = vector.load %arg9[%c0_27, %c0_28] : memref<128x512xbf16, #tpu.memory_space<vmem>>, vector<128x512xbf16>
    %cst_29 = arith.constant dense<0.000000e+00> : vector<16x512xf32>
    %63 = tpu.matmul %61, %62, %cst_29 {dimension_numbers = #tpu.dot_dimension_numbers<[1], [0], [0], [1], [0, 0, 1, 1], [], []>} : vector<16x128xbf16>, vector<128x512xbf16>, vector<16x512xf32> -> vector<16x512xf32>
    %c0_30 = arith.constant 0 : index
    %c0_31 = arith.constant 0 : index
    %64 = vector.load %arg10[%c0_30, %c0_31] : memref<1x512xf32, #tpu.memory_space<vmem>>, vector<1x512xf32>
    %65 = vector.broadcast %64 : vector<1x512xf32> to vector<16x512xf32>
    %66 = arith.addf %63, %65 : vector<16x512xf32>
    %67 = arith.mulf %66, %66 : vector<16x512xf32>
    %68 = arith.mulf %66, %67 : vector<16x512xf32>
    %cst_32 = arith.constant 4.471500e-02 : f32
    %69 = vector.broadcast %cst_32 : f32 to vector<16x512xf32>
    %70 = arith.mulf %69, %68 : vector<16x512xf32>
    %71 = arith.addf %66, %70 : vector<16x512xf32>
    %cst_33 = arith.constant 0.797884583 : f32
    %72 = vector.broadcast %cst_33 : f32 to vector<16x512xf32>
    %73 = arith.mulf %72, %71 : vector<16x512xf32>
    %74 = math.tanh %73 : vector<16x512xf32>
    %cst_34 = arith.constant 1.000000e+00 : f32
    %75 = vector.broadcast %cst_34 : f32 to vector<16x512xf32>
    %76 = arith.addf %75, %74 : vector<16x512xf32>
    %cst_35 = arith.constant 5.000000e-01 : f32
    %77 = vector.broadcast %cst_35 : f32 to vector<16x512xf32>
    %78 = arith.mulf %77, %76 : vector<16x512xf32>
    %79 = arith.mulf %66, %78 : vector<16x512xf32>
    %80 = arith.truncf %79 : vector<16x512xf32> to vector<16x512xbf16>
    %c0_36 = arith.constant 0 : index
    %c0_37 = arith.constant 0 : index
    %81 = vector.load %arg11[%c0_36, %c0_37] : memref<512x128xbf16, #tpu.memory_space<vmem>>, vector<512x128xbf16>
    %cst_38 = arith.constant dense<0.000000e+00> : vector<16x128xf32>
    %82 = tpu.matmul %80, %81, %cst_38 {dimension_numbers = #tpu.dot_dimension_numbers<[1], [0], [0], [1], [0, 0, 1, 1], [], []>} : vector<16x512xbf16>, vector<512x128xbf16>, vector<16x128xf32> -> vector<16x128xf32>
    %c0_39 = arith.constant 0 : index
    %c0_40 = arith.constant 0 : index
    %83 = vector.load %arg12[%c0_39, %c0_40] : memref<1x128xf32, #tpu.memory_space<vmem>>, vector<1x128xf32>
    %84 = vector.broadcast %83 : vector<1x128xf32> to vector<16x128xf32>
    %85 = arith.addf %82, %84 : vector<16x128xf32>
    %86 = arith.addf %60, %85 : vector<16x128xf32>
    %c0_41 = arith.constant 0 : index
    %c0_42 = arith.constant 0 : index
    %87 = vector.load %arg13[%c0_41, %c0_42] : memref<1x128xf32, #tpu.memory_space<vmem>>, vector<1x128xf32>
    %c0_43 = arith.constant 0 : index
    %c0_44 = arith.constant 0 : index
    %88 = vector.load %arg14[%c0_43, %c0_44] : memref<1x128xf32, #tpu.memory_space<vmem>>, vector<1x128xf32>
    %cst_45 = arith.constant dense<0.000000e+00> : vector<16xf32>
    %89 = vector.multi_reduction <add>, %86, %cst_45 [1] : vector<16x128xf32> to vector<16xf32>
    %90 = vector.shape_cast %89 : vector<16xf32> to vector<16x1xf32>
    %cst_46 = arith.constant 1.280000e+02 : f32
    %91 = vector.broadcast %cst_46 : f32 to vector<16x1xf32>
    %92 = arith.divf %90, %91 : vector<16x1xf32>
    %93 = vector.broadcast %92 : vector<16x1xf32> to vector<16x128xf32>
    %94 = arith.subf %86, %93 : vector<16x128xf32>
    %95 = arith.mulf %94, %94 : vector<16x128xf32>
    %cst_47 = arith.constant dense<0.000000e+00> : vector<16xf32>
    %96 = vector.multi_reduction <add>, %95, %cst_47 [1] : vector<16x128xf32> to vector<16xf32>
    %97 = vector.shape_cast %96 : vector<16xf32> to vector<16x1xf32>
    %cst_48 = arith.constant 1.280000e+02 : f32
    %98 = vector.broadcast %cst_48 : f32 to vector<16x1xf32>
    %99 = arith.divf %97, %98 : vector<16x1xf32>
    %100 = vector.broadcast %92 : vector<16x1xf32> to vector<16x128xf32>
    %101 = arith.subf %86, %100 : vector<16x128xf32>
    %cst_49 = arith.constant 9.99999996E-13 : f32
    %102 = vector.broadcast %cst_49 : f32 to vector<16x1xf32>
    %103 = arith.addf %99, %102 : vector<16x1xf32>
    %104 = math.rsqrt %103 : vector<16x1xf32>
    %105 = vector.broadcast %104 : vector<16x1xf32> to vector<16x128xf32>
    %106 = arith.mulf %101, %105 : vector<16x128xf32>
    %107 = vector.broadcast %87 : vector<1x128xf32> to vector<16x128xf32>
    %108 = arith.mulf %106, %107 : vector<16x128xf32>
    %109 = vector.broadcast %88 : vector<1x128xf32> to vector<16x128xf32>
    %110 = arith.addf %108, %109 : vector<16x128xf32>
    %111 = arith.truncf %110 : vector<16x128xf32> to vector<16x128xbf16>
    %c0_50 = arith.constant 0 : index
    %c0_51 = arith.constant 0 : index
    %c0_52 = arith.constant 0 : index
    %112 = vector.load %arg15[%c0_50, %c0_51, %c0_52] : memref<1x16x128xbf16, #tpu.memory_space<vmem>>, vector<1x16x128xbf16>
    %113 = vector.shape_cast %112 : vector<1x16x128xbf16> to vector<16x128xbf16>
    %114 = vector.shape_cast %111 : vector<16x128xbf16> to vector<1x16x128xbf16>
    tpu.vector_store %arg15[%c0_50, %c0_51, %c0_52], %114 {strides = array<i32>} : memref<1x16x128xbf16, #tpu.memory_space<vmem>>, vector<1x16x128xbf16>,
    return
  }
  func.func @transform_0(%arg0: i32) -> (i32, i32, i32) {
    %c0_i32 = arith.constant 0 : i32
    %c0_i32_0 = arith.constant 0 : i32
    %c0_i32_1 = arith.constant 0 : i32
    return %arg0, %c0_i32, %c0_i32_0 : i32, i32, i32
  }
  func.func @transform_1(%arg0: i32) -> (i32, i32, i32) {
    %c0_i32 = arith.constant 0 : i32
    %c0_i32_0 = arith.constant 0 : i32
    %c0_i32_1 = arith.constant 0 : i32
    return %arg0, %c0_i32, %c0_i32_0 : i32, i32, i32
  }
  func.func @transform_2(%arg0: i32) -> (i32, i32) {
    %c0_i32 = arith.constant 0 : i32
    %c0_i32_0 = arith.constant 0 : i32
    %c0_i32_1 = arith.constant 0 : i32
    return %c0_i32, %c0_i32_0 : i32, i32
  }
  func.func @transform_3(%arg0: i32) -> (i32, i32) {
    %c0_i32 = arith.constant 0 : i32
    %c0_i32_0 = arith.constant 0 : i32
    %c0_i32_1 = arith.constant 0 : i32
    return %c0_i32, %c0_i32_0 : i32, i32
  }
  func.func @transform_4(%arg0: i32) -> (i32, i32) {
    %c0_i32 = arith.constant 0 : i32
    %c0_i32_0 = arith.constant 0 : i32
    %c0_i32_1 = arith.constant 0 : i32
    return %c0_i32, %c0_i32_0 : i32, i32
  }
  func.func @transform_5(%arg0: i32) -> (i32, i32) {
    %c0_i32 = arith.constant 0 : i32
    %c0_i32_0 = arith.constant 0 : i32
    %c0_i32_1 = arith.constant 0 : i32
    return %c0_i32, %c0_i32_0 : i32, i32
  }
  func.func @transform_6(%arg0: i32) -> (i32, i32) {
    %c0_i32 = arith.constant 0 : i32
    %c0_i32_0 = arith.constant 0 : i32
    %c0_i32_1 = arith.constant 0 : i32
    return %c0_i32, %c0_i32_0 : i32, i32
  }
  func.func @transform_7(%arg0: i32) -> (i32, i32) {
    %c0_i32 = arith.constant 0 : i32
    %c0_i32_0 = arith.constant 0 : i32
    %c0_i32_1 = arith.constant 0 : i32
    return %c0_i32, %c0_i32_0 : i32, i32
  }
  func.func @transform_8(%arg0: i32) -> (i32, i32) {
    %c0_i32 = arith.constant 0 : i32
    %c0_i32_0 = arith.constant 0 : i32
    %c0_i32_1 = arith.constant 0 : i32
    return %c0_i32, %c0_i32_0 : i32, i32
  }
  func.func @transform_9(%arg0: i32) -> (i32, i32) {
    %c0_i32 = arith.constant 0 : i32
    %c0_i32_0 = arith.constant 0 : i32
    %c0_i32_1 = arith.constant 0 : i32
    return %c0_i32, %c0_i32_0 : i32, i32
  }
  func.func @transform_10(%arg0: i32) -> (i32, i32) {
    %c0_i32 = arith.constant 0 : i32
    %c0_i32_0 = arith.constant 0 : i32
    %c0_i32_1 = arith.constant 0 : i32
    return %c0_i32, %c0_i32_0 : i32, i32
  }
  func.func @transform_11(%arg0: i32) -> (i32, i32) {
    %c0_i32 = arith.constant 0 : i32
    %c0_i32_0 = arith.constant 0 : i32
    %c0_i32_1 = arith.constant 0 : i32
    return %c0_i32, %c0_i32_0 : i32, i32
  }
  func.func @transform_12(%arg0: i32) -> (i32, i32) {
    %c0_i32 = arith.constant 0 : i32
    %c0_i32_0 = arith.constant 0 : i32
    %c0_i32_1 = arith.constant 0 : i32
    return %c0_i32, %c0_i32_0 : i32, i32
  }
  func.func @transform_13(%arg0: i32) -> (i32, i32) {
    %c0_i32 = arith.constant 0 : i32
    %c0_i32_0 = arith.constant 0 : i32
    %c0_i32_1 = arith.constant 0 : i32
    return %c0_i32, %c0_i32_0 : i32, i32
  }
  func.func @transform_14(%arg0: i32) -> (i32, i32, i32) {
    %c0_i32 = arith.constant 0 : i32
    %c0_i32_0 = arith.constant 0 : i32
    %c0_i32_1 = arith.constant 0 : i32
    return %arg0, %c0_i32, %c0_i32_0 : i32, i32, i32
  }
}

module attributes {stable_mosaic.version = 11 : i64} {
  func.func @head_kernel(%arg0: i32, %arg1: memref<2x128xbf16, #tpu.memory_space<vmem>>, %arg2: memref<128x128xbf16, #tpu.memory_space<vmem>>, %arg3: memref<1x128xf32, #tpu.memory_space<vmem>>, %arg4: memref<128x256xbf16, #tpu.memory_space<vmem>>, %arg5: memref<1x256xf32, #tpu.memory_space<vmem>>, %arg6: memref<256x128xbf16, #tpu.memory_space<vmem>>, %arg7: memref<1x128xf32, #tpu.memory_space<vmem>>, %arg8: memref<2x128xf32, #tpu.memory_space<vmem>>) attributes {dimension_semantics = [#tpu.dimension_semantics<arbitrary>], iteration_bounds = array<i64: 1>, scalar_prefetch = 0 : i64, scratch_operands = 0 : i64, tpu.core_type = #tpu.core_type<tc>, window_params = [{pipeline_mode = #tpu.pipeline_mode<synchronous>, transform_indices = @transform_0, window_bounds = array<i64: 2, 128>}, {pipeline_mode = #tpu.pipeline_mode<synchronous>, transform_indices = @transform_1, window_bounds = array<i64: 128, 128>}, {pipeline_mode = #tpu.pipeline_mode<synchronous>, transform_indices = @transform_2, window_bounds = array<i64: 1, 128>}, {pipeline_mode = #tpu.pipeline_mode<synchronous>, transform_indices = @transform_3, window_bounds = array<i64: 128, 256>}, {pipeline_mode = #tpu.pipeline_mode<synchronous>, transform_indices = @transform_4, window_bounds = array<i64: 1, 256>}, {pipeline_mode = #tpu.pipeline_mode<synchronous>, transform_indices = @transform_5, window_bounds = array<i64: 256, 128>}, {pipeline_mode = #tpu.pipeline_mode<synchronous>, transform_indices = @transform_6, window_bounds = array<i64: 1, 128>}, {pipeline_mode = #tpu.pipeline_mode<synchronous>, transform_indices = @transform_7, window_bounds = array<i64: 2, 128>}]} {
    %c0 = arith.constant 0 : index
    %c0_0 = arith.constant 0 : index
    %0 = vector.load %arg1[%c0, %c0_0] : memref<2x128xbf16, #tpu.memory_space<vmem>>, vector<2x128xbf16>
    %c0_1 = arith.constant 0 : index
    %c0_2 = arith.constant 0 : index
    %1 = vector.load %arg2[%c0_1, %c0_2] : memref<128x128xbf16, #tpu.memory_space<vmem>>, vector<128x128xbf16>
    %cst = arith.constant dense<0.000000e+00> : vector<2x128xf32>
    %2 = tpu.matmul %0, %1, %cst {dimension_numbers = #tpu.dot_dimension_numbers<[1], [0], [0], [1], [0, 0, 1, 1], [], []>} : vector<2x128xbf16>, vector<128x128xbf16>, vector<2x128xf32> -> vector<2x128xf32>
    %c0_3 = arith.constant 0 : index
    %c0_4 = arith.constant 0 : index
    %3 = vector.load %arg3[%c0_3, %c0_4] : memref<1x128xf32, #tpu.memory_space<vmem>>, vector<1x128xf32>
    %4 = vector.broadcast %3 : vector<1x128xf32> to vector<2x128xf32>
    %5 = arith.addf %2, %4 : vector<2x128xf32>
    %6 = math.tanh %5 : vector<2x128xf32>
    %7 = arith.truncf %6 : vector<2x128xf32> to vector<2x128xbf16>
    %c0_5 = arith.constant 0 : index
    %c0_6 = arith.constant 0 : index
    %8 = vector.load %arg4[%c0_5, %c0_6] : memref<128x256xbf16, #tpu.memory_space<vmem>>, vector<128x256xbf16>
    %cst_7 = arith.constant dense<0.000000e+00> : vector<2x256xf32>
    %9 = tpu.matmul %7, %8, %cst_7 {dimension_numbers = #tpu.dot_dimension_numbers<[1], [0], [0], [1], [0, 0, 1, 1], [], []>} : vector<2x128xbf16>, vector<128x256xbf16>, vector<2x256xf32> -> vector<2x256xf32>
    %c0_8 = arith.constant 0 : index
    %c0_9 = arith.constant 0 : index
    %10 = vector.load %arg5[%c0_8, %c0_9] : memref<1x256xf32, #tpu.memory_space<vmem>>, vector<1x256xf32>
    %11 = vector.broadcast %10 : vector<1x256xf32> to vector<2x256xf32>
    %12 = arith.addf %9, %11 : vector<2x256xf32>
    %cst_10 = arith.constant 0.000000e+00 : f32
    %13 = vector.broadcast %cst_10 : f32 to vector<2x256xf32>
    %14 = arith.maximumf %12, %13 : vector<2x256xf32>
    %15 = arith.truncf %14 : vector<2x256xf32> to vector<2x256xbf16>
    %c0_11 = arith.constant 0 : index
    %c0_12 = arith.constant 0 : index
    %16 = vector.load %arg6[%c0_11, %c0_12] : memref<256x128xbf16, #tpu.memory_space<vmem>>, vector<256x128xbf16>
    %cst_13 = arith.constant dense<0.000000e+00> : vector<2x128xf32>
    %17 = tpu.matmul %15, %16, %cst_13 {dimension_numbers = #tpu.dot_dimension_numbers<[1], [0], [0], [1], [0, 0, 1, 1], [], []>} : vector<2x256xbf16>, vector<256x128xbf16>, vector<2x128xf32> -> vector<2x128xf32>
    %c0_14 = arith.constant 0 : index
    %c0_15 = arith.constant 0 : index
    %18 = vector.load %arg7[%c0_14, %c0_15] : memref<1x128xf32, #tpu.memory_space<vmem>>, vector<1x128xf32>
    %19 = vector.broadcast %18 : vector<1x128xf32> to vector<2x128xf32>
    %20 = arith.addf %17, %19 : vector<2x128xf32>
    %cst_16 = arith.constant dense<0xFF800000> : vector<2xf32>
    %21 = vector.multi_reduction <maximumf>, %20, %cst_16 [1] : vector<2x128xf32> to vector<2xf32>
    %22 = vector.shape_cast %21 : vector<2xf32> to vector<2x1xf32>
    %23 = vector.broadcast %22 : vector<2x1xf32> to vector<2x128xf32>
    %24 = arith.subf %20, %23 : vector<2x128xf32>
    %25 = math.exp %24 : vector<2x128xf32>
    %cst_17 = arith.constant dense<0.000000e+00> : vector<2xf32>
    %26 = vector.multi_reduction <add>, %25, %cst_17 [1] : vector<2x128xf32> to vector<2xf32>
    %27 = vector.shape_cast %26 : vector<2xf32> to vector<2x1xf32>
    %28 = vector.broadcast %27 : vector<2x1xf32> to vector<2x128xf32>
    %29 = arith.divf %25, %28 : vector<2x128xf32>
    %c0_18 = arith.constant 0 : index
    %c0_19 = arith.constant 0 : index
    %30 = vector.load %arg8[%c0_18, %c0_19] : memref<2x128xf32, #tpu.memory_space<vmem>>, vector<2x128xf32>
    tpu.vector_store %arg8[%c0_18, %c0_19], %29 {strides = array<i32>} : memref<2x128xf32, #tpu.memory_space<vmem>>, vector<2x128xf32>,
    return
  }
  func.func @transform_0(%arg0: i32) -> (i32, i32) {
    %c0_i32 = arith.constant 0 : i32
    %c0_i32_0 = arith.constant 0 : i32
    %c0_i32_1 = arith.constant 0 : i32
    return %c0_i32, %c0_i32_0 : i32, i32
  }
  func.func @transform_1(%arg0: i32) -> (i32, i32) {
    %c0_i32 = arith.constant 0 : i32
    %c0_i32_0 = arith.constant 0 : i32
    %c0_i32_1 = arith.constant 0 : i32
    return %c0_i32, %c0_i32_0 : i32, i32
  }
  func.func @transform_2(%arg0: i32) -> (i32, i32) {
    %c0_i32 = arith.constant 0 : i32
    %c0_i32_0 = arith.constant 0 : i32
    %c0_i32_1 = arith.constant 0 : i32
    return %c0_i32, %c0_i32_0 : i32, i32
  }
  func.func @transform_3(%arg0: i32) -> (i32, i32) {
    %c0_i32 = arith.constant 0 : i32
    %c0_i32_0 = arith.constant 0 : i32
    %c0_i32_1 = arith.constant 0 : i32
    return %c0_i32, %c0_i32_0 : i32, i32
  }
  func.func @transform_4(%arg0: i32) -> (i32, i32) {
    %c0_i32 = arith.constant 0 : i32
    %c0_i32_0 = arith.constant 0 : i32
    %c0_i32_1 = arith.constant 0 : i32
    return %c0_i32, %c0_i32_0 : i32, i32
  }
  func.func @transform_5(%arg0: i32) -> (i32, i32) {
    %c0_i32 = arith.constant 0 : i32
    %c0_i32_0 = arith.constant 0 : i32
    %c0_i32_1 = arith.constant 0 : i32
    return %c0_i32, %c0_i32_0 : i32, i32
  }
  func.func @transform_6(%arg0: i32) -> (i32, i32) {
    %c0_i32 = arith.constant 0 : i32
    %c0_i32_0 = arith.constant 0 : i32
    %c0_i32_1 = arith.constant 0 : i32
    return %c0_i32, %c0_i32_0 : i32, i32
  }
  func.func @transform_7(%arg0: i32) -> (i32, i32) {
    %c0_i32 = arith.constant 0 : i32
    %c0_i32_0 = arith.constant 0 : i32
    %c0_i32_1 = arith.constant 0 : i32
    return %c0_i32, %c0_i32_0 : i32, i32
  }
}

</mosaic_0001>

<llo_original>
// kernel: bert_plus_mlp_forward.5
$region0: #{bert_plus_mlp_forward.5}
  #allocation0 [shape = 'u32[]', space=smem, size = 0x4, offset = 0x4, fixed_abs, tag = 'smem constant byte address 0x4 - core index']
  #allocation1 [shape = 'u32[144,128]{1,0:T(1,128)}', space=vmem, size = 0x12000, scoped, tag = 'internal scratch']
  %s0 = inlined_call_operand.vmem [shape: bf16[2,128], index: 0, kind: input, shape index: {}]
  %s1 = inlined_call_operand.vmem [shape: bf16[128,128], index: 1, kind: input, shape index: {}]
  %s2 = inlined_call_operand.vmem [shape: f32[1,128], index: 2, kind: input, shape index: {}]
  %s3 = inlined_call_operand.vmem [shape: bf16[128,256], index: 3, kind: input, shape index: {}]
  %s4 = inlined_call_operand.vmem [shape: f32[1,256], index: 4, kind: input, shape index: {}]
  %s5 = inlined_call_operand.vmem [shape: bf16[256,128], index: 5, kind: input, shape index: {}]
  %s6 = inlined_call_operand.vmem [shape: f32[1,128], index: 6, kind: input, shape index: {}]
  %s7 = inlined_call_operand.hbm [shape: f32[2,128], index: 7, kind: output, shape index: {}]
  %s8 = sld [smem:[#allocation0]]
  $region38: #{bert_plus_mlp_forward.5} parent=0
    _
  %s10 = ssub.s32 1, %s8
  %s11 = scalar_select 0, %s10, %s8
  $region1: #{bert_plus_mlp_forward.5} parent=0
    #allocation2 [shape = 'u8[1024]{0}', space=vmem, size = 0x400, scoped, tag = 'output window, operand 0, single buffered']
    #allocation3 [shape = 's32[1]{0}', space=sflag, size = 0x4, scoped, tag = 'scoped memory for bert_plus_mlp_forward.5']
    %12 = vsyncpa [#allocation3], 0
    // Predicated region
    $region2: #{bert_plus_mlp_forward.5} parent=1 // pred_check
      _
    $region3: #{bert_plus_mlp_forward.5} parent=1 // pred_check_branch
      %14 = sbr.rel (0) target = $region5
    $region4: #{bert_plus_mlp_forward.5} parent=1 // pred_region
      _
    $region5: #{bert_plus_mlp_forward.5} parent=1 // pred_fallthru
      _
    // Predicated region
    $region6: #{bert_plus_mlp_forward.5} parent=1 // pred_check
      _
    $region7: #{bert_plus_mlp_forward.5} parent=1 // pred_check_branch
      %16 = sbr.rel (0) target = $region9
    $region8: #{bert_plus_mlp_forward.5} parent=1 // pred_region
      _
    $region9: #{bert_plus_mlp_forward.5} parent=1 // pred_fallthru
      _
    // Predicated region
    $region10: #{bert_plus_mlp_forward.5} parent=1 // pred_check
      _
    $region11: #{bert_plus_mlp_forward.5} parent=1 // pred_check_branch
      %18 = sbr.rel (0) target = $region13
    $region12: #{bert_plus_mlp_forward.5} parent=1 // pred_region
      _
    $region13: #{bert_plus_mlp_forward.5} parent=1 // pred_fallthru
      _
    // Predicated region
    $region14: #{bert_plus_mlp_forward.5} parent=1 // pred_check
      _
    $region15: #{bert_plus_mlp_forward.5} parent=1 // pred_check_branch
      %20 = sbr.rel (0) target = $region17
    $region16: #{bert_plus_mlp_forward.5} parent=1 // pred_region
      _
    $region17: #{bert_plus_mlp_forward.5} parent=1 // pred_fallthru
      _
    // Predicated region
    $region18: #{bert_plus_mlp_forward.5} parent=1 // pred_check
      _
    $region19: #{bert_plus_mlp_forward.5} parent=1 // pred_check_branch
      %22 = sbr.rel (0) target = $region21
    $region20: #{bert_plus_mlp_forward.5} parent=1 // pred_region
      _
    $region21: #{bert_plus_mlp_forward.5} parent=1 // pred_fallthru
      _
    // Predicated region
    $region22: #{bert_plus_mlp_forward.5} parent=1 // pred_check
      _
    $region23: #{bert_plus_mlp_forward.5} parent=1 // pred_check_branch
      %24 = sbr.rel (0) target = $region25
    $region24: #{bert_plus_mlp_forward.5} parent=1 // pred_region
      _
    $region25: #{bert_plus_mlp_forward.5} parent=1 // pred_fallthru
      _
    // Predicated region
    $region26: #{bert_plus_mlp_forward.5} parent=1 // pred_check
      _
    $region27: #{bert_plus_mlp_forward.5} parent=1 // pred_check_branch
      %26 = sbr.rel (0) target = $region29
    $region28: #{bert_plus_mlp_forward.5} parent=1 // pred_region
      _
    $region29: #{bert_plus_mlp_forward.5} parent=1 // pred_fallthru
      _
    %v28 = vld [vmem:[%s0] sm:$0x1]
    %v29 = vld [vmem:[%s1] sm:$0xf]
    %v30 = vld [vmem:[%s1 + $0x4] sm:$0xf]
    %v31 = vld [vmem:[%s1 + $0x8] sm:$0xf]
    %v32 = vld [vmem:[%s1 + $0xc] sm:$0xf]
    %v33 = vld [vmem:[%s1 + $0x10] sm:$0xf]
    %v34 = vld [vmem:[%s1 + $0x14] sm:$0xf]
    %v35 = vld [vmem:[%s1 + $0x18] sm:$0xf]
    %v36 = vld [vmem:[%s1 + $0x1c] sm:$0xf]
    %v37 = vld [vmem:[%s1 + $0x20] sm:$0xf]
    %v38 = vld [vmem:[%s1 + $0x24] sm:$0xf]
    %v39 = vld [vmem:[%s1 + $0x28] sm:$0xf]
    %v40 = vld [vmem:[%s1 + $0x2c] sm:$0xf]
    %v41 = vld [vmem:[%s1 + $0x30] sm:$0xf]
    %v42 = vld [vmem:[%s1 + $0x34] sm:$0xf]
    %v43 = vld [vmem:[%s1 + $0x38] sm:$0xf]
    %v44 = vld [vmem:[%s1 + $0x3c] sm:$0xf]
    %v45 = vld [vmem:[%s2] sm:$0x1]
    %v47 = vlaneseq
    %v48 = vshrl.u32 %v47, 7
    %v49 = vsub.s32 0, %v48
    %v50 = vrot.slane %v45, %v49
    %v68 = vunpack.c.l.b16 %v29
    %v69 = vunpack.c.l.b16 %v30
    %v70 = vunpack.c.l.b16 %v31
    %v71 = vunpack.c.l.b16 %v32
    %v72 = vunpack.c.l.b16 %v33
    %v73 = vunpack.c.l.b16 %v34
    %v74 = vunpack.c.l.b16 %v35
    %v75 = vunpack.c.l.b16 %v36
    %v76 = vunpack.c.l.b16 %v37
    %v77 = vunpack.c.l.b16 %v38
    %v78 = vunpack.c.l.b16 %v39
    %v79 = vunpack.c.l.b16 %v40
    %v80 = vunpack.c.l.b16 %v41
    %v81 = vunpack.c.l.b16 %v42
    %v82 = vunpack.c.l.b16 %v43
    %v83 = vunpack.c.l.b16 %v44
    %v84 = vpack.c.b16 %v69, %v68
    %v85 = vpack.c.b16 %v71, %v70
    %v86 = vpack.c.b16 %v73, %v72
    %v87 = vpack.c.b16 %v75, %v74
    %v88 = vpack.c.b16 %v77, %v76
    %v89 = vpack.c.b16 %v79, %v78
    %v90 = vpack.c.b16 %v81, %v80
    %v91 = vpack.c.b16 %v83, %v82
    %100 = vmatprep.subr.bf16.mxu0 0
    %101 = vmatpush1.bf16.msra.mxu0 %v91
    %102 = vmatprep.subr.bf16.mxu0 0
    %103 = vmatpush1.bf16.msra.mxu0 %v90
    %104 = vmatprep.subr.bf16.mxu0 0
    %105 = vmatpush1.bf16.msra.mxu0 %v89
    %106 = vmatprep.subr.bf16.mxu0 0
    %107 = vmatpush1.bf16.msra.mxu0 %v88
    %108 = vmatprep.subr.bf16.mxu0 0
    %109 = vmatpush1.bf16.msra.mxu0 %v87
    %110 = vmatprep.subr.bf16.mxu0 0
    %111 = vmatpush1.bf16.msra.mxu0 %v86
    %112 = vmatprep.subr.bf16.mxu0 0
    %113 = vmatpush1.bf16.msra.mxu0 %v85
    %114 = vmatprep.subr.bf16.mxu0 0
    %115 = vmatpush1.bf16.msra.mxu0 %v84
    %116 = vmatprep.subr.bf16.mxu0 0
    %117 = vmatpush2.bf16.msra.mxu0 0
    %118 = vmatprep.subr.bf16.mxu0 0
    %119 = vmatpush2.bf16.msra.mxu0 0
    %120 = vmatprep.subr.bf16.mxu0 0
    %121 = vmatpush2.bf16.msra.mxu0 0
    %122 = vmatprep.subr.bf16.mxu0 0
    %123 = vmatpush2.bf16.msra.mxu0 0
    %124 = vmatprep.subr.bf16.mxu0 0
    %125 = vmatpush2.bf16.msra.mxu0 0
    %126 = vmatprep.subr.bf16.mxu0 0
    %127 = vmatpush2.bf16.msra.mxu0 0
    %128 = vmatprep.subr.bf16.mxu0 0
    %129 = vmatpush2.bf16.msra.mxu0 0
    %130 = vmatprep.subr.bf16.mxu0 0
    %131 = vmatpush2.bf16.msra.mxu0 0
    %132 = vmatprep.mubr.bf16.mxu0 0
    %133 = vmatmul.mubr.bf16.gmra.mxu0 %v28
    %v134 = vpop.f32.mrf.mxu0
    %v135 = vadd.f32 %v50, %v134
    %v136 = vpop.f32.mrf.mxu0
    %v137 = vpop.f32.mrf.mxu0
    %v138 = vpop.f32.mrf.mxu0
    %139 = vdwg.mxu0
    %v140 = vtanh.pop %v135
    %v141 = vpack.c.bf16 %v140, %v140
    %v142 = vld [vmem:[%s3] sm:$0xff]
    %v143 = vld [vmem:[%s3 + $0x8] sm:$0xff]
    %v144 = vld [vmem:[%s3 + $0x10] sm:$0xff]
    %v145 = vld [vmem:[%s3 + $0x18] sm:$0xff]
    %v146 = vld [vmem:[%s3 + $0x20] sm:$0xff]
    %v147 = vld [vmem:[%s3 + $0x28] sm:$0xff]
    %v148 = vld [vmem:[%s3 + $0x30] sm:$0xff]
    %v149 = vld [vmem:[%s3 + $0x38] sm:$0xff]
    %v150 = vld [vmem:[%s3 + $0x40] sm:$0xff]
    %v151 = vld [vmem:[%s3 + $0x48] sm:$0xff]
    %v152 = vld [vmem:[%s3 + $0x50] sm:$0xff]
    %v153 = vld [vmem:[%s3 + $0x58] sm:$0xff]
    %v154 = vld [vmem:[%s3 + $0x60] sm:$0xff]
    %v155 = vld [vmem:[%s3 + $0x68] sm:$0xff]
    %v156 = vld [vmem:[%s3 + $0x70] sm:$0xff]
    %v157 = vld [vmem:[%s3 + $0x78] sm:$0xff]
    %v158 = vld [vmem:[%s4] sm:$0x3]
    %v160 = vlaneseq
    %v161 = vshrl.u32 %v160, 7
    %v162 = vsub.s32 0, %v161
    %v163 = vrot.slane %v158, %v162
    %v164 = vlaneseq
    %v165 = vshrl.u32 %v164, 7
    %v166 = vsub.s32 1, %v165
    %v167 = vrot.slane %v158, %v166
    %v186 = vunpack.c.l.b16 %v142
    %v187 = vunpack.c.h.b16 %v142
    %v188 = vunpack.c.l.b16 %v143
    %v189 = vunpack.c.h.b16 %v143
    %v190 = vunpack.c.l.b16 %v144
    %v191 = vunpack.c.h.b16 %v144
    %v192 = vunpack.c.l.b16 %v145
    %v193 = vunpack.c.h.b16 %v145
    %v194 = vunpack.c.l.b16 %v146
    %v195 = vunpack.c.h.b16 %v146
    %v196 = vunpack.c.l.b16 %v147
    %v197 = vunpack.c.h.b16 %v147
    %v198 = vunpack.c.l.b16 %v148
    %v199 = vunpack.c.h.b16 %v148
    %v200 = vunpack.c.l.b16 %v149
    %v201 = vunpack.c.h.b16 %v149
    %v202 = vunpack.c.l.b16 %v150
    %v203 = vunpack.c.h.b16 %v150
    %v204 = vunpack.c.l.b16 %v151
    %v205 = vunpack.c.h.b16 %v151
    %v206 = vunpack.c.l.b16 %v152
    %v207 = vunpack.c.h.b16 %v152
    %v208 = vunpack.c.l.b16 %v153
    %v209 = vunpack.c.h.b16 %v153
    %v210 = vunpack.c.l.b16 %v154
    %v211 = vunpack.c.h.b16 %v154
    %v212 = vunpack.c.l.b16 %v155
    %v213 = vunpack.c.h.b16 %v155
    %v214 = vunpack.c.l.b16 %v156
    %v215 = vunpack.c.h.b16 %v156
    %v216 = vunpack.c.l.b16 %v157
    %v217 = vunpack.c.h.b16 %v157
    %v218 = vpack.c.b16 %v188, %v186
    %v219 = vpack.c.b16 %v189, %v187
    %v220 = vpack.c.b16 %v192, %v190
    %v221 = vpack.c.b16 %v193, %v191
    %v222 = vpack.c.b16 %v196, %v194
    %v223 = vpack.c.b16 %v197, %v195
    %v224 = vpack.c.b16 %v200, %v198
    %v225 = vpack.c.b16 %v201, %v199
    %v226 = vpack.c.b16 %v204, %v202
    %v227 = vpack.c.b16 %v205, %v203
    %v228 = vpack.c.b16 %v208, %v206
    %v229 = vpack.c.b16 %v209, %v207
    %v230 = vpack.c.b16 %v212, %v210
    %v231 = vpack.c.b16 %v213, %v211
    %v232 = vpack.c.b16 %v216, %v214
    %v233 = vpack.c.b16 %v217, %v215
    %250 = vmatprep.subr.bf16.mxu0 %v233
    %251 = vmatpush1.bf16.msra.mxu0 %v232
    %252 = vmatprep.subr.bf16.mxu0 %v231
    %253 = vmatpush1.bf16.msra.mxu0 %v230
    %254 = vmatprep.subr.bf16.mxu0 %v229
    %255 = vmatpush1.bf16.msra.mxu0 %v228
    %256 = vmatprep.subr.bf16.mxu0 %v227
    %257 = vmatpush1.bf16.msra.mxu0 %v226
    %258 = vmatprep.subr.bf16.mxu0 %v225
    %259 = vmatpush1.bf16.msra.mxu0 %v224
    %260 = vmatprep.subr.bf16.mxu0 %v223
    %261 = vmatpush1.bf16.msra.mxu0 %v222
    %262 = vmatprep.subr.bf16.mxu0 %v221
    %263 = vmatpush1.bf16.msra.mxu0 %v220
    %264 = vmatprep.subr.bf16.mxu0 %v219
    %265 = vmatpush1.bf16.msra.mxu0 %v218
    %266 = vmatprep.subr.bf16.mxu0 0
    %267 = vmatpush2.bf16.msra.mxu0 0
    %268 = vmatprep.subr.bf16.mxu0 0
    %269 = vmatpush2.bf16.msra.mxu0 0
    %270 = vmatprep.subr.bf16.mxu0 0
    %271 = vmatpush2.bf16.msra.mxu0 0
    %272 = vmatprep.subr.bf16.mxu0 0
    %273 = vmatpush2.bf16.msra.mxu0 0
    %274 = vmatprep.subr.bf16.mxu0 0
    %275 = vmatpush2.bf16.msra.mxu0 0
    %276 = vmatprep.subr.bf16.mxu0 0
    %277 = vmatpush2.bf16.msra.mxu0 0
    %278 = vmatprep.subr.bf16.mxu0 0
    %279 = vmatpush2.bf16.msra.mxu0 0
    %280 = vmatprep.subr.bf16.mxu0 0
    %281 = vmatpush2.bf16.msra.mxu0 0
    %282 = vmatprep.mubr.bf16.mxu0 0
    %283 = vmatmul.mubr.bf16.gmra.mxu0 %v141
    %v284 = vpop.f32.mrf.mxu0
    %v285 = vadd.f32 %v163, %v284
    %v286 = vpop.f32.mrf.mxu0
    %v287 = vadd.f32 %v167, %v286
    %v288 = vpop.f32.mrf.mxu0
    %v289 = vpop.f32.mrf.mxu0
    %290 = vdwg.mxu0
    %v291 = vmax.f32 %v285, 0.0
    %v292 = vmax.f32 %v287, 0.0
    %v293 = vpack.c.bf16 %v291, %v291
    %v294 = vpack.c.bf16 %v292, %v292
    %v295 = vld [vmem:[%s5] sm:$0xf]
    %v296 = vld [vmem:[%s5 + $0x4] sm:$0xf]
    %v297 = vld [vmem:[%s5 + $0x8] sm:$0xf]
    %v298 = vld [vmem:[%s5 + $0xc] sm:$0xf]
    %v299 = vld [vmem:[%s5 + $0x10] sm:$0xf]
    %v300 = vld [vmem:[%s5 + $0x14] sm:$0xf]
    %v301 = vld [vmem:[%s5 + $0x18] sm:$0xf]
    %v302 = vld [vmem:[%s5 + $0x1c] sm:$0xf]
    %v303 = vld [vmem:[%s5 + $0x20] sm:$0xf]
    %v304 = vld [vmem:[%s5 + $0x24] sm:$0xf]
    %v305 = vld [vmem:[%s5 + $0x28] sm:$0xf]
    %v306 = vld [vmem:[%s5 + $0x2c] sm:$0xf]
    %v307 = vld [vmem:[%s5 + $0x30] sm:$0xf]
    %v308 = vld [vmem:[%s5 + $0x34] sm:$0xf]
    %v309 = vld [vmem:[%s5 + $0x38] sm:$0xf]
    %v310 = vld [vmem:[%s5 + $0x3c] sm:$0xf]
    %v311 = vld [vmem:[%s5 + $0x40] sm:$0xf]
    %v312 = vld [vmem:[%s5 + $0x44] sm:$0xf]
    %v313 = vld [vmem:[%s5 + $0x48] sm:$0xf]
    %v314 = vld [vmem:[%s5 + $0x4c] sm:$0xf]
    %v315 = vld [vmem:[%s5 + $0x50] sm:$0xf]
    %v316 = vld [vmem:[%s5 + $0x54] sm:$0xf]
    %v317 = vld [vmem:[%s5 + $0x58] sm:$0xf]
    %v318 = vld [vmem:[%s5 + $0x5c] sm:$0xf]
    %v319 = vld [vmem:[%s5 + $0x60] sm:$0xf]
    %v320 = vld [vmem:[%s5 + $0x64] sm:$0xf]
    %v321 = vld [vmem:[%s5 + $0x68] sm:$0xf]
    %v322 = vld [vmem:[%s5 + $0x6c] sm:$0xf]
    %v323 = vld [vmem:[%s5 + $0x70] sm:$0xf]
    %v324 = vld [vmem:[%s5 + $0x74] sm:$0xf]
    %v325 = vld [vmem:[%s5 + $0x78] sm:$0xf]
    %v326 = vld [vmem:[%s5 + $0x7c] sm:$0xf]
    %v327 = vld [vmem:[%s6] sm:$0x1]
    %v329 = vlaneseq
    %v330 = vshrl.u32 %v329, 7
    %v331 = vsub.s32 0, %v330
    %v332 = vrot.slane %v327, %v331
    %v366 = vunpack.c.l.b16 %v295
    %v367 = vunpack.c.l.b16 %v296
    %v368 = vunpack.c.l.b16 %v297
    %v369 = vunpack.c.l.b16 %v298
    %v370 = vunpack.c.l.b16 %v299
    %v371 = vunpack.c.l.b16 %v300
    %v372 = vunpack.c.l.b16 %v301
    %v373 = vunpack.c.l.b16 %v302
    %v374 = vunpack.c.l.b16 %v303
    %v375 = vunpack.c.l.b16 %v304
    %v376 = vunpack.c.l.b16 %v305
    %v377 = vunpack.c.l.b16 %v306
    %v378 = vunpack.c.l.b16 %v307
    %v379 = vunpack.c.l.b16 %v308
    %v380 = vunpack.c.l.b16 %v309
    %v381 = vunpack.c.l.b16 %v310
    %v382 = vunpack.c.l.b16 %v311
    %v383 = vunpack.c.l.b16 %v312
    %v384 = vunpack.c.l.b16 %v313
    %v385 = vunpack.c.l.b16 %v314
    %v386 = vunpack.c.l.b16 %v315
    %v387 = vunpack.c.l.b16 %v316
    %v388 = vunpack.c.l.b16 %v317
    %v389 = vunpack.c.l.b16 %v318
    %v390 = vunpack.c.l.b16 %v319
    %v391 = vunpack.c.l.b16 %v320
    %v392 = vunpack.c.l.b16 %v321
    %v393 = vunpack.c.l.b16 %v322
    %v394 = vunpack.c.l.b16 %v323
    %v395 = vunpack.c.l.b16 %v324
    %v396 = vunpack.c.l.b16 %v325
    %v397 = vunpack.c.l.b16 %v326
    %v398 = vpack.c.b16 %v367, %v366
    %v399 = vpack.c.b16 %v369, %v368
    %v400 = vpack.c.b16 %v371, %v370
    %v401 = vpack.c.b16 %v373, %v372
    %v402 = vpack.c.b16 %v375, %v374
    %v403 = vpack.c.b16 %v377, %v376
    %v404 = vpack.c.b16 %v379, %v378
    %v405 = vpack.c.b16 %v381, %v380
    %v406 = vpack.c.b16 %v383, %v382
    %v407 = vpack.c.b16 %v385, %v384
    %v408 = vpack.c.b16 %v387, %v386
    %v409 = vpack.c.b16 %v389, %v388
    %v410 = vpack.c.b16 %v391, %v390
    %v411 = vpack.c.b16 %v393, %v392
    %v412 = vpack.c.b16 %v395, %v394
    %v413 = vpack.c.b16 %v397, %v396
    %430 = vmatprep.subr.bf16.mxu0 0
    %431 = vmatpush1.bf16.msra.mxu0 %v405
    %432 = vmatprep.subr.bf16.mxu0 0
    %433 = vmatpush1.bf16.msra.mxu0 %v404
    %434 = vmatprep.subr.bf16.mxu0 0
    %435 = vmatpush1.bf16.msra.mxu0 %v403
    %436 = vmatprep.subr.bf16.mxu0 0
    %437 = vmatpush1.bf16.msra.mxu0 %v402
    %438 = vmatprep.subr.bf16.mxu0 0
    %439 = vmatpush1.bf16.msra.mxu0 %v401
    %440 = vmatprep.subr.bf16.mxu0 0
    %441 = vmatpush1.bf16.msra.mxu0 %v400
    %442 = vmatprep.subr.bf16.mxu0 0
    %443 = vmatpush1.bf16.msra.mxu0 %v399
    %444 = vmatprep.subr.bf16.mxu0 0
    %445 = vmatpush1.bf16.msra.mxu0 %v398
    %446 = vmatprep.subr.bf16.mxu0 0
    %447 = vmatpush2.bf16.msra.mxu0 %v413
    %448 = vmatprep.subr.bf16.mxu0 0
    %449 = vmatpush2.bf16.msra.mxu0 %v412
    %450 = vmatprep.subr.bf16.mxu0 0
    %451 = vmatpush2.bf16.msra.mxu0 %v411
    %452 = vmatprep.subr.bf16.mxu0 0
    %453 = vmatpush2.bf16.msra.mxu0 %v410
    %454 = vmatprep.subr.bf16.mxu0 0
    %455 = vmatpush2.bf16.msra.mxu0 %v409
    %456 = vmatprep.subr.bf16.mxu0 0
    %457 = vmatpush2.bf16.msra.mxu0 %v408
    %458 = vmatprep.subr.bf16.mxu0 0
    %459 = vmatpush2.bf16.msra.mxu0 %v407
    %460 = vmatprep.subr.bf16.mxu0 0
    %461 = vmatpush2.bf16.msra.mxu0 %v406
    %462 = vmatprep.mubr.bf16.mxu0 %v294
    %463 = vmatmul.mubr.bf16.gmra.mxu0 %v293
    %v464 = vpop.f32.mrf.mxu0
    %v465 = vadd.f32 %v332, %v464
    %v466 = vpop.f32.mrf.mxu0
    %v467 = vpop.f32.mrf.mxu0
    %v468 = vpop.f32.mrf.mxu0
    %469 = vdwg.mxu0
    %vm470 = vcmask 1041408
    %v471 = vsel %vm470, %v465, -inf
    %472 = vmax.xlane.f32.xlu0 %v471
    %v473 = vpop.xlane.xlu0 %472
    %v474 = vsub.f32 %v465, %v473
    %v475 = vmul.f32 %v474, 1.442695
    %v476 = vpow.pop %v475
    %v477 = vsel %vm470, %v476, 0.0
    %478 = vadd.xlane.f32.xlu0 %v477
    %v479 = vpop.xlane.xlu0 %478
    %v480 = vrcp.pop %v479
    %v481 = vmul.f32 %v476, %v480
    %482 = vst [vmem:[#allocation2] sm:$0x3] %v481
    // Predicated region
    $region30: #{bert_plus_mlp_forward.5} parent=1 // pred_check
      _
    $region31: #{bert_plus_mlp_forward.5} parent=1 // pred_check_branch
      %484 = sbr.rel (0) target = $region33
    $region32: #{bert_plus_mlp_forward.5} parent=1 // pred_region
      %s486 = ssub.s32 32, 32
      %487 = vsyncadd [#allocation3], %s486
      %s489 = sshll.u32 [#allocation2], 4
      %s490 = int_to_ptr.vmem [resolvable:$true] %s489
      %492 = dma.vmem_to_hbm [thread:$0]  %s490, 32, %s7, [#allocation3]
    $region33: #{bert_plus_mlp_forward.5} parent=1 // pred_fallthru
      _
    // Predicated region
    $region34: #{bert_plus_mlp_forward.5} parent=1 // pred_check
      _
    $region35: #{bert_plus_mlp_forward.5} parent=1 // pred_check_branch
      %494 = sbr.rel (0) target = $region37
    $region36: #{bert_plus_mlp_forward.5} parent=1 // pred_region
      %495 = dma.done [#allocation3], 32
    $region37: #{bert_plus_mlp_forward.5} parent=1 // pred_fallthru
      _
    %496 = vsyncpa [#allocation3], 1

// kernel: bert_plus_mlp_forward.3
$region0: #{bert_plus_mlp_forward.3}
  #allocation0 [shape = 'u32[]', space=smem, size = 0x4, offset = 0x4, fixed_abs, tag = 'smem constant byte address 0x4 - core index']
  #allocation1 [shape = 'u32[144,128]{1,0:T(1,128)}', space=vmem, size = 0x12000, scoped, tag = 'internal scratch']
  %s0 = inlined_call_operand.vmem [shape: bf16[2,16,128], index: 0, kind: input, shape index: {}]
  %s1 = inlined_call_operand.vmem [shape: f32[2,1,16], index: 1, kind: input, shape index: {}]
  %s2 = inlined_call_operand.hbm [shape: bf16[128,384], index: 2, kind: input, shape index: {}]
  %s3 = inlined_call_operand.vmem [shape: f32[1,384], index: 3, kind: input, shape index: {}]
  %s4 = inlined_call_operand.vmem [shape: bf16[128,128], index: 4, kind: input, shape index: {}]
  %s5 = inlined_call_operand.vmem [shape: f32[1,128], index: 5, kind: input, shape index: {}]
  %s6 = inlined_call_operand.vmem [shape: f32[1,128], index: 6, kind: input, shape index: {}]
  %s7 = inlined_call_operand.vmem [shape: f32[1,128], index: 7, kind: input, shape index: {}]
  %s8 = inlined_call_operand.vmem [shape: bf16[128,512], index: 8, kind: input, shape index: {}]
  %s9 = inlined_call_operand.vmem [shape: f32[1,512], index: 9, kind: input, shape index: {}]
  %s10 = inlined_call_operand.hbm [shape: bf16[512,128], index: 10, kind: input, shape index: {}]
  %s11 = inlined_call_operand.vmem [shape: f32[1,128], index: 11, kind: input, shape index: {}]
  %s12 = inlined_call_operand.vmem [shape: f32[1,128], index: 12, kind: input, shape index: {}]
  %s13 = inlined_call_operand.vmem [shape: f32[1,128], index: 13, kind: input, shape index: {}]
  %s14 = inlined_call_operand.vmem [shape: bf16[2,16,128], index: 14, kind: output, shape index: {}]
  %s15 = sld [smem:[#allocation0]]
  $region97: #{bert_plus_mlp_forward.3} parent=0
    _
  %s17 = ssub.s32 1, %s15
  %s18 = scalar_select 0, %s17, %s15
  $region1: #{bert_plus_mlp_forward.3} parent=0
    #allocation2 [shape = 'u8[98304]{0}', space=vmem, size = 0x18000, scoped, tag = 'input window, operand 2, single buffered']
    #allocation3 [shape = 's32[2]{0}', space=sflag, size = 0x8, scoped, tag = 'scoped memory for bert_plus_mlp_forward.3']
    #allocation4 [shape = 'u8[131072]{0}', space=vmem, size = 0x20000, scoped, tag = 'input window, operand 10, single buffered']
    #allocation5 [shape = 's32[1]{0}', space=sflag, size = 0x4, scoped, tag = 'scoped memory for bert_plus_mlp_forward.3']
    %19 = vsyncpa [#allocation3], 0
    %20 = vsyncpa [#allocation5], 0
    loop: start=0, step=1, limit=4
    $region2: #{bert_plus_mlp_forward.3} parent=1 // loop_pre_header
      _
    $region3: #{bert_plus_mlp_forward.3} parent=1 // loop_header
      %s22 = sphi 0, %s26
      %p23 = scmp.ge.s32.totalorder %s22, 4
      %s32 = sphi 0, %s34
      %s35 = sphi 0, %s32
      %s36 = sphi 0, %s35
      %s52 = sphi 0, %s36
      %s58 = sphi 0, %s60
      %s61 = sphi 0, %s58
      %s62 = sphi 0, %s61
      %s78 = sphi 0, %s62
      %s82 = sphi 0, %s82
      %s84 = sphi 0, %s82
      %s85 = sphi 0, %s84
      %s99 = sphi 0, %s85
      %s103 = sphi 0, %s103
      %s105 = sphi 0, %s103
      %s106 = sphi 0, %s105
      %s120 = sphi 0, %s106
      %s124 = sphi 0, %s124
      %s126 = sphi 0, %s124
      %s127 = sphi 0, %s126
      %s141 = sphi 0, %s127
      %s145 = sphi 0, %s145
      %s147 = sphi 0, %s145
      %s148 = sphi 0, %s147
      %s162 = sphi 0, %s148
      %s166 = sphi 0, %s166
      %s168 = sphi 0, %s166
      %s169 = sphi 0, %s168
      %s183 = sphi 0, %s169
      %s187 = sphi 0, %s187
      %s189 = sphi 0, %s187
      %s190 = sphi 0, %s189
      %s204 = sphi 0, %s190
      %s208 = sphi 0, %s208
      %s210 = sphi 0, %s208
      %s211 = sphi 0, %s210
      %s225 = sphi 0, %s211
      %s229 = sphi 0, %s229
      %s231 = sphi 0, %s229
      %s232 = sphi 0, %s231
      %s246 = sphi 0, %s232
      %s250 = sphi 0, %s250
      %s252 = sphi 0, %s250
      %s253 = sphi 0, %s252
      %s267 = sphi 0, %s253
      %s271 = sphi 0, %s271
      %s273 = sphi 0, %s271
      %s274 = sphi 0, %s273
      %s288 = sphi 0, %s274
      %s292 = sphi 0, %s292
      %s294 = sphi 0, %s292
      %s295 = sphi 0, %s294
      %s309 = sphi 0, %s295
      %s313 = sphi 0, %s313
      %s315 = sphi 0, %s313
      %s316 = sphi 0, %s315
      %s330 = sphi 0, %s316
      %s336 = sphi 0, %s338
      %s339 = sphi 0, %s336
      %s340 = sphi 0, %s339
      %s356 = sphi 0, %s340
    $region4: #{bert_plus_mlp_forward.3} parent=1 // loop_header_branch
      %25 = sbr.rel (%p23) target = $region8
    $region5: #{bert_plus_mlp_forward.3} parent=1 // loop_body
      %s27 = ssub.s32 %s22, 1
      %s28 = ssub.s32 %s22, 2
      %s29 = sadd.s32 %s22, 1
      %s30 = ssub.s32 %s22, %s29
      %p31 = scmp.eq.s32.totalorder %s30, 0
      %s33 = sadd.s32 %s32, 1
      %s34 = scalar_select %p31, %s32, %s33
      %p37 = pneg %p31
      %p38 = scmp.eq.s32.totalorder %s22, 1
      %p39 = por %p37, %p38
      %p40 = scmp.ne.s32.totalorder %s32, %s35
      %p41 = scmp.eq.s32.totalorder %s22, 0
      %p42 = por %p40, %p41
      %p43 = scmp.ne.s32.totalorder %s32, %s35
      %p44 = scmp.eq.s32.totalorder %s27, 1
      %p45 = por %p43, %p44
      %p46 = scmp.ne.s32.totalorder %s35, %s36
      %p47 = scmp.eq.s32.totalorder %s27, 0
      %p48 = por %p46, %p47
      %p49 = scmp.ne.s32.totalorder %s35, %s36
      %p50 = scmp.eq.s32.totalorder %s28, 1
      %p51 = por %p49, %p50
      %p53 = scmp.ne.s32.totalorder %s36, %s52
      %p54 = scmp.eq.s32.totalorder %s28, 0
      %p55 = por %p53, %p54
      %s56 = ssub.s32 %s22, %s29
      %p57 = scmp.eq.s32.totalorder %s56, 0
      %s59 = sadd.s32 %s58, 1
      %s60 = scalar_select %p57, %s58, %s59
      %p63 = pneg %p57
      %p64 = scmp.eq.s32.totalorder %s22, 1
      %p65 = por %p63, %p64
      %p66 = scmp.ne.s32.totalorder %s58, %s61
      %p67 = scmp.eq.s32.totalorder %s22, 0
      %p68 = por %p66, %p67
      %p69 = scmp.ne.s32.totalorder %s58, %s61
      %p70 = scmp.eq.s32.totalorder %s27, 1
      %p71 = por %p69, %p70
      %p72 = scmp.ne.s32.totalorder %s61, %s62
      %p73 = scmp.eq.s32.totalorder %s27, 0
      %p74 = por %p72, %p73
      %p75 = scmp.ne.s32.totalorder %s61, %s62
      %p76 = scmp.eq.s32.totalorder %s28, 1
      %p77 = por %p75, %p76
      %p79 = scmp.ne.s32.totalorder %s62, %s78
      %p80 = scmp.eq.s32.totalorder %s28, 0
      %p81 = por %p79, %p80
      %s83 = sadd.s32 %s82, 1
      %p86 = scmp.eq.s32.totalorder %s22, 1
      %p87 = scmp.ne.s32.totalorder %s82, %s84
      %p88 = scmp.eq.s32.totalorder %s22, 0
      %p89 = por %p87, %p88
      %p90 = scmp.ne.s32.totalorder %s82, %s84
      %p91 = scmp.eq.s32.totalorder %s27, 1
      %p92 = por %p90, %p91
      %p93 = scmp.ne.s32.totalorder %s84, %s85
      %p94 = scmp.eq.s32.totalorder %s27, 0
      %p95 = por %p93, %p94
      %p96 = scmp.ne.s32.totalorder %s84, %s85
      %p97 = scmp.eq.s32.totalorder %s28, 1
      %p98 = por %p96, %p97
      %p100 = scmp.ne.s32.totalorder %s85, %s99
      %p101 = scmp.eq.s32.totalorder %s28, 0
      %p102 = por %p100, %p101
      %s104 = sadd.s32 %s103, 1
      %p107 = scmp.eq.s32.totalorder %s22, 1
      %p108 = scmp.ne.s32.totalorder %s103, %s105
      %p109 = scmp.eq.s32.totalorder %s22, 0
      %p110 = por %p108, %p109
      %p111 = scmp.ne.s32.totalorder %s103, %s105
      %p112 = scmp.eq.s32.totalorder %s27, 1
      %p113 = por %p111, %p112
      %p114 = scmp.ne.s32.totalorder %s105, %s106
      %p115 = scmp.eq.s32.totalorder %s27, 0
      %p116 = por %p114, %p115
      %p117 = scmp.ne.s32.totalorder %s105, %s106
      %p118 = scmp.eq.s32.totalorder %s28, 1
      %p119 = por %p117, %p118
      %p121 = scmp.ne.s32.totalorder %s106, %s120
      %p122 = scmp.eq.s32.totalorder %s28, 0
      %p123 = por %p121, %p122
      %s125 = sadd.s32 %s124, 1
      %p128 = scmp.eq.s32.totalorder %s22, 1
      %p129 = scmp.ne.s32.totalorder %s124, %s126
      %p130 = scmp.eq.s32.totalorder %s22, 0
      %p131 = por %p129, %p130
      %p132 = scmp.ne.s32.totalorder %s124, %s126
      %p133 = scmp.eq.s32.totalorder %s27, 1
      %p134 = por %p132, %p133
      %p135 = scmp.ne.s32.totalorder %s126, %s127
      %p136 = scmp.eq.s32.totalorder %s27, 0
      %p137 = por %p135, %p136
      %p138 = scmp.ne.s32.totalorder %s126, %s127
      %p139 = scmp.eq.s32.totalorder %s28, 1
      %p140 = por %p138, %p139
      %p142 = scmp.ne.s32.totalorder %s127, %s141
      %p143 = scmp.eq.s32.totalorder %s28, 0
      %p144 = por %p142, %p143
      %s146 = sadd.s32 %s145, 1
      %p149 = scmp.eq.s32.totalorder %s22, 1
      %p150 = scmp.ne.s32.totalorder %s145, %s147
      %p151 = scmp.eq.s32.totalorder %s22, 0
      %p152 = por %p150, %p151
      %p153 = scmp.ne.s32.totalorder %s145, %s147
      %p154 = scmp.eq.s32.totalorder %s27, 1
      %p155 = por %p153, %p154
      %p156 = scmp.ne.s32.totalorder %s147, %s148
      %p157 = scmp.eq.s32.totalorder %s27, 0
      %p158 = por %p156, %p157
      %p159 = scmp.ne.s32.totalorder %s147, %s148
      %p160 = scmp.eq.s32.totalorder %s28, 1
      %p161 = por %p159, %p160
      %p163 = scmp.ne.s32.totalorder %s148, %s162
      %p164 = scmp.eq.s32.totalorder %s28, 0
      %p165 = por %p163, %p164
      %s167 = sadd.s32 %s166, 1
      %p170 = scmp.eq.s32.totalorder %s22, 1
      %p171 = scmp.ne.s32.totalorder %s166, %s168
      %p172 = scmp.eq.s32.totalorder %s22, 0
      %p173 = por %p171, %p172
      %p174 = scmp.ne.s32.totalorder %s166, %s168
      %p175 = scmp.eq.s32.totalorder %s27, 1
      %p176 = por %p174, %p175
      %p177 = scmp.ne.s32.totalorder %s168, %s169
      %p178 = scmp.eq.s32.totalorder %s27, 0
      %p179 = por %p177, %p178
      %p180 = scmp.ne.s32.totalorder %s168, %s169
      %p181 = scmp.eq.s32.totalorder %s28, 1
      %p182 = por %p180, %p181
      %p184 = scmp.ne.s32.totalorder %s169, %s183
      %p185 = scmp.eq.s32.totalorder %s28, 0
      %p186 = por %p184, %p185
      %s188 = sadd.s32 %s187, 1
      %p191 = scmp.eq.s32.totalorder %s22, 1
      %p192 = scmp.ne.s32.totalorder %s187, %s189
      %p193 = scmp.eq.s32.totalorder %s22, 0
      %p194 = por %p192, %p193
      %p195 = scmp.ne.s32.totalorder %s187, %s189
      %p196 = scmp.eq.s32.totalorder %s27, 1
      %p197 = por %p195, %p196
      %p198 = scmp.ne.s32.totalorder %s189, %s190
      %p199 = scmp.eq.s32.totalorder %s27, 0
      %p200 = por %p198, %p199
      %p201 = scmp.ne.s32.totalorder %s189, %s190
      %p202 = scmp.eq.s32.totalorder %s28, 1
      %p203 = por %p201, %p202
      %p205 = scmp.ne.s32.totalorder %s190, %s204
      %p206 = scmp.eq.s32.totalorder %s28, 0
      %p207 = por %p205, %p206
      %s209 = sadd.s32 %s208, 1
      %p212 = scmp.eq.s32.totalorder %s22, 1
      %p213 = scmp.ne.s32.totalorder %s208, %s210
      %p214 = scmp.eq.s32.totalorder %s22, 0
      %p215 = por %p213, %p214
      %p216 = scmp.ne.s32.totalorder %s208, %s210
      %p217 = scmp.eq.s32.totalorder %s27, 1
      %p218 = por %p216, %p217
      %p219 = scmp.ne.s32.totalorder %s210, %s211
      %p220 = scmp.eq.s32.totalorder %s27, 0
      %p221 = por %p219, %p220
      %p222 = scmp.ne.s32.totalorder %s210, %s211
      %p223 = scmp.eq.s32.totalorder %s28, 1
      %p224 = por %p222, %p223
      %p226 = scmp.ne.s32.totalorder %s211, %s225
      %p227 = scmp.eq.s32.totalorder %s28, 0
      %p228 = por %p226, %p227
      %s230 = sadd.s32 %s229, 1
      %p233 = scmp.eq.s32.totalorder %s22, 1
      %p234 = scmp.ne.s32.totalorder %s229, %s231
      %p235 = scmp.eq.s32.totalorder %s22, 0
      %p236 = por %p234, %p235
      %p237 = scmp.ne.s32.totalorder %s229, %s231
      %p238 = scmp.eq.s32.totalorder %s27, 1
      %p239 = por %p237, %p238
      %p240 = scmp.ne.s32.totalorder %s231, %s232
      %p241 = scmp.eq.s32.totalorder %s27, 0
      %p242 = por %p240, %p241
      %p243 = scmp.ne.s32.totalorder %s231, %s232
      %p244 = scmp.eq.s32.totalorder %s28, 1
      %p245 = por %p243, %p244
      %p247 = scmp.ne.s32.totalorder %s232, %s246
      %p248 = scmp.eq.s32.totalorder %s28, 0
      %p249 = por %p247, %p248
      %s251 = sadd.s32 %s250, 1
      %p254 = scmp.eq.s32.totalorder %s22, 1
      %p255 = scmp.ne.s32.totalorder %s250, %s252
      %p256 = scmp.eq.s32.totalorder %s22, 0
      %p257 = por %p255, %p256
      %p258 = scmp.ne.s32.totalorder %s250, %s252
      %p259 = scmp.eq.s32.totalorder %s27, 1
      %p260 = por %p258, %p259
      %p261 = scmp.ne.s32.totalorder %s252, %s253
      %p262 = scmp.eq.s32.totalorder %s27, 0
      %p263 = por %p261, %p262
      %p264 = scmp.ne.s32.totalorder %s252, %s253
      %p265 = scmp.eq.s32.totalorder %s28, 1
      %p266 = por %p264, %p265
      %p268 = scmp.ne.s32.totalorder %s253, %s267
      %p269 = scmp.eq.s32.totalorder %s28, 0
      %p270 = por %p268, %p269
      %s272 = sadd.s32 %s271, 1
      %p275 = scmp.eq.s32.totalorder %s22, 1
      %p276 = scmp.ne.s32.totalorder %s271, %s273
      %p277 = scmp.eq.s32.totalorder %s22, 0
      %p278 = por %p276, %p277
      %p279 = scmp.ne.s32.totalorder %s271, %s273
      %p280 = scmp.eq.s32.totalorder %s27, 1
      %p281 = por %p279, %p280
      %p282 = scmp.ne.s32.totalorder %s273, %s274
      %p283 = scmp.eq.s32.totalorder %s27, 0
      %p284 = por %p282, %p283
      %p285 = scmp.ne.s32.totalorder %s273, %s274
      %p286 = scmp.eq.s32.totalorder %s28, 1
      %p287 = por %p285, %p286
      %p289 = scmp.ne.s32.totalorder %s274, %s288
      %p290 = scmp.eq.s32.totalorder %s28, 0
      %p291 = por %p289, %p290
      %s293 = sadd.s32 %s292, 1
      %p296 = scmp.eq.s32.totalorder %s22, 1
      %p297 = scmp.ne.s32.totalorder %s292, %s294
      %p298 = scmp.eq.s32.totalorder %s22, 0
      %p299 = por %p297, %p298
      %p300 = scmp.ne.s32.totalorder %s292, %s294
      %p301 = scmp.eq.s32.totalorder %s27, 1
      %p302 = por %p300, %p301
      %p303 = scmp.ne.s32.totalorder %s294, %s295
      %p304 = scmp.eq.s32.totalorder %s27, 0
      %p305 = por %p303, %p304
      %p306 = scmp.ne.s32.totalorder %s294, %s295
      %p307 = scmp.eq.s32.totalorder %s28, 1
      %p308 = por %p306, %p307
      %p310 = scmp.ne.s32.totalorder %s295, %s309
      %p311 = scmp.eq.s32.totalorder %s28, 0
      %p312 = por %p310, %p311
      %s314 = sadd.s32 %s313, 1
      %p317 = scmp.eq.s32.totalorder %s22, 1
      %p318 = scmp.ne.s32.totalorder %s313, %s315
      %p319 = scmp.eq.s32.totalorder %s22, 0
      %p320 = por %p318, %p319
      %p321 = scmp.ne.s32.totalorder %s313, %s315
      %p322 = scmp.eq.s32.totalorder %s27, 1
      %p323 = por %p321, %p322
      %p324 = scmp.ne.s32.totalorder %s315, %s316
      %p325 = scmp.eq.s32.totalorder %s27, 0
      %p326 = por %p324, %p325
      %p327 = scmp.ne.s32.totalorder %s315, %s316
      %p328 = scmp.eq.s32.totalorder %s28, 1
      %p329 = por %p327, %p328
      %p331 = scmp.ne.s32.totalorder %s316, %s330
      %p332 = scmp.eq.s32.totalorder %s28, 0
      %p333 = por %p331, %p332
      %s334 = ssub.s32 %s22, %s29
      %p335 = scmp.eq.s32.totalorder %s334, 0
      %s337 = sadd.s32 %s336, 1
      %s338 = scalar_select %p335, %s336, %s337
      %p341 = pneg %p335
      %p342 = scmp.eq.s32.totalorder %s22, 1
      %p343 = por %p341, %p342
      %p344 = scmp.ne.s32.totalorder %s336, %s339
      %p345 = scmp.eq.s32.totalorder %s22, 0
      %p346 = por %p344, %p345
      %p347 = scmp.ne.s32.totalorder %s336, %s339
      %p348 = scmp.eq.s32.totalorder %s27, 1
      %p349 = por %p347, %p348
      %p350 = scmp.ne.s32.totalorder %s339, %s340
      %p351 = scmp.eq.s32.totalorder %s27, 0
      %p352 = por %p350, %p351
      %p353 = scmp.ne.s32.totalorder %s339, %s340
      %p354 = scmp.eq.s32.totalorder %s28, 1
      %p355 = por %p353, %p354
      %p357 = scmp.ne.s32.totalorder %s340, %s356
      %p358 = scmp.eq.s32.totalorder %s28, 0
      %p359 = por %p357, %p358
      %p360 = scmp.le.s32.totalorder 1, %s22
      %p361 = scmp.lt.s32.totalorder %s22, 3
      %p362 = pnand %p360, %p361
      %p363 = pneg %p362
      // Predicated region
      $region9: #{bert_plus_mlp_forward.3} parent=5 // pred_check
        _
      $region10: #{bert_plus_mlp_forward.3} parent=5 // pred_check_branch
        %365 = sbr.rel (%p362) target = $region12
      $region11: #{bert_plus_mlp_forward.3} parent=5 // pred_region
        %s366 = ssub.s32 %s22, 1
        // Predicated region
        $region13: #{bert_plus_mlp_forward.3} parent=11 // pred_check
          %p367 = pneg %p95
        $region14: #{bert_plus_mlp_forward.3} parent=11 // pred_check_branch
          %369 = sbr.rel (%p367) target = $region16
        $region15: #{bert_plus_mlp_forward.3} parent=11 // pred_region
          %s371 = ssub.s32 3072, 3072
          %372 = vsyncadd [#allocation3], %s371
          %s373 = sshll.u32 [#allocation2], 4
          %s374 = int_to_ptr.vmem [resolvable:$true] %s373
          %379 = dma.hbm_to_vmem [thread:$0]  %s2, 3072, %s374, [#allocation3], 192, 192, 12
        $region16: #{bert_plus_mlp_forward.3} parent=11 // pred_fallthru
          _
        // Predicated region
        $region17: #{bert_plus_mlp_forward.3} parent=11 // pred_check
          %p380 = pneg %p116
        $region18: #{bert_plus_mlp_forward.3} parent=11 // pred_check_branch
          %382 = sbr.rel (%p380) target = $region20
        $region19: #{bert_plus_mlp_forward.3} parent=11 // pred_region
          _
        $region20: #{bert_plus_mlp_forward.3} parent=11 // pred_fallthru
          _
        // Predicated region
        $region21: #{bert_plus_mlp_forward.3} parent=11 // pred_check
          %p383 = pneg %p137
        $region22: #{bert_plus_mlp_forward.3} parent=11 // pred_check_branch
          %385 = sbr.rel (%p383) target = $region24
        $region23: #{bert_plus_mlp_forward.3} parent=11 // pred_region
          _
        $region24: #{bert_plus_mlp_forward.3} parent=11 // pred_fallthru
          _
        // Predicated region
        $region25: #{bert_plus_mlp_forward.3} parent=11 // pred_check
          %p386 = pneg %p158
        $region26: #{bert_plus_mlp_forward.3} parent=11 // pred_check_branch
          %388 = sbr.rel (%p386) target = $region28
        $region27: #{bert_plus_mlp_forward.3} parent=11 // pred_region
          _
        $region28: #{bert_plus_mlp_forward.3} parent=11 // pred_fallthru
          _
        // Predicated region
        $region29: #{bert_plus_mlp_forward.3} parent=11 // pred_check
          %p389 = pneg %p179
        $region30: #{bert_plus_mlp_forward.3} parent=11 // pred_check_branch
          %391 = sbr.rel (%p389) target = $region32
        $region31: #{bert_plus_mlp_forward.3} parent=11 // pred_region
          _
        $region32: #{bert_plus_mlp_forward.3} parent=11 // pred_fallthru
          _
        // Predicated region
        $region33: #{bert_plus_mlp_forward.3} parent=11 // pred_check
          %p392 = pneg %p200
        $region34: #{bert_plus_mlp_forward.3} parent=11 // pred_check_branch
          %394 = sbr.rel (%p392) target = $region36
        $region35: #{bert_plus_mlp_forward.3} parent=11 // pred_region
          _
        $region36: #{bert_plus_mlp_forward.3} parent=11 // pred_fallthru
          _
        // Predicated region
        $region37: #{bert_plus_mlp_forward.3} parent=11 // pred_check
          %p395 = pneg %p221
        $region38: #{bert_plus_mlp_forward.3} parent=11 // pred_check_branch
          %397 = sbr.rel (%p395) target = $region40
        $region39: #{bert_plus_mlp_forward.3} parent=11 // pred_region
          _
        $region40: #{bert_plus_mlp_forward.3} parent=11 // pred_fallthru
          _
        // Predicated region
        $region41: #{bert_plus_mlp_forward.3} parent=11 // pred_check
          %p398 = pneg %p242
        $region42: #{bert_plus_mlp_forward.3} parent=11 // pred_check_branch
          %400 = sbr.rel (%p398) target = $region44
        $region43: #{bert_plus_mlp_forward.3} parent=11 // pred_region
          _
        $region44: #{bert_plus_mlp_forward.3} parent=11 // pred_fallthru
          _
        // Predicated region
        $region45: #{bert_plus_mlp_forward.3} parent=11 // pred_check
          %p401 = pneg %p263
        $region46: #{bert_plus_mlp_forward.3} parent=11 // pred_check_branch
          %403 = sbr.rel (%p401) target = $region48
        $region47: #{bert_plus_mlp_forward.3} parent=11 // pred_region
          %s405 = ssub.s32 4096, 4096
          %406 = vsyncadd [#allocation5], %s405
          %s407 = sshll.u32 [#allocation4], 4
          %s408 = int_to_ptr.vmem [resolvable:$true] %s407
          %413 = dma.hbm_to_vmem [thread:$0]  %s10, 4096, %s408, [#allocation5], 64, 64, 4
        $region48: #{bert_plus_mlp_forward.3} parent=11 // pred_fallthru
          _
        // Predicated region
        $region49: #{bert_plus_mlp_forward.3} parent=11 // pred_check
          %p414 = pneg %p284
        $region50: #{bert_plus_mlp_forward.3} parent=11 // pred_check_branch
          %416 = sbr.rel (%p414) target = $region52
        $region51: #{bert_plus_mlp_forward.3} parent=11 // pred_region
          _
        $region52: #{bert_plus_mlp_forward.3} parent=11 // pred_fallthru
          _
        // Predicated region
        $region53: #{bert_plus_mlp_forward.3} parent=11 // pred_check
          %p417 = pneg %p305
        $region54: #{bert_plus_mlp_forward.3} parent=11 // pred_check_branch
          %419 = sbr.rel (%p417) target = $region56
        $region55: #{bert_plus_mlp_forward.3} parent=11 // pred_region
          _
        $region56: #{bert_plus_mlp_forward.3} parent=11 // pred_fallthru
          _
        // Predicated region
        $region57: #{bert_plus_mlp_forward.3} parent=11 // pred_check
          %p420 = pneg %p326
        $region58: #{bert_plus_mlp_forward.3} parent=11 // pred_check_branch
          %422 = sbr.rel (%p420) target = $region60
        $region59: #{bert_plus_mlp_forward.3} parent=11 // pred_region
          _
        $region60: #{bert_plus_mlp_forward.3} parent=11 // pred_fallthru
          _
      $region12: #{bert_plus_mlp_forward.3} parent=5 // pred_fallthru
        _
      %p423 = scmp.lt.s32.totalorder %s22, 2
      // Predicated region
      $region61: #{bert_plus_mlp_forward.3} parent=5 // pred_check
        %p424 = pneg %p423
      $region62: #{bert_plus_mlp_forward.3} parent=5 // pred_check_branch
        %426 = sbr.rel (%p424) target = $region64
      $region63: #{bert_plus_mlp_forward.3} parent=5 // pred_region
        // Predicated region
        $region65: #{bert_plus_mlp_forward.3} parent=63 // pred_check
          %p427 = pneg %p42
        $region66: #{bert_plus_mlp_forward.3} parent=63 // pred_check_branch
          %429 = sbr.rel (%p427) target = $region68
        $region67: #{bert_plus_mlp_forward.3} parent=63 // pred_region
          %p430 = scmp.lt.s32.totalorder %s22, 1
          %s431 = scalar_select %p430, %s22, 1
          %s432 = smul.addr %s431, 2
          %s433 = smul.addr %s432, 4
          %s434 = scalar_lea.vmem %s0, %s433
        $region68: #{bert_plus_mlp_forward.3} parent=63 // pred_fallthru
          _
        // Predicated region
        $region69: #{bert_plus_mlp_forward.3} parent=63 // pred_check
          %p435 = pneg %p68
        $region70: #{bert_plus_mlp_forward.3} parent=63 // pred_check_branch
          %437 = sbr.rel (%p435) target = $region72
        $region71: #{bert_plus_mlp_forward.3} parent=63 // pred_region
          %p438 = scmp.lt.s32.totalorder %s22, 1
          %s439 = scalar_select %p438, %s22, 1
          %s440 = scalar_lea.vmem %s1, %s439
        $region72: #{bert_plus_mlp_forward.3} parent=63 // pred_fallthru
          _
      $region64: #{bert_plus_mlp_forward.3} parent=5 // pred_fallthru
        _
      %p441 = scmp.le.s32.totalorder 1, %s22
      %p442 = scmp.lt.s32.totalorder %s22, 3
      %p443 = pnand %p441, %p442
      %p444 = pneg %p443
      // Predicated region
      $region73: #{bert_plus_mlp_forward.3} parent=5 // pred_check
        _
      $region74: #{bert_plus_mlp_forward.3} parent=5 // pred_check_branch
        %446 = sbr.rel (%p443) target = $region76
      $region75: #{bert_plus_mlp_forward.3} parent=5 // pred_region
        %s447 = ssub.s32 %s22, 1
        // Predicated region
        $region77: #{bert_plus_mlp_forward.3} parent=75 // pred_check
          %p448 = pneg %p95
        $region78: #{bert_plus_mlp_forward.3} parent=75 // pred_check_branch
          %450 = sbr.rel (%p448) target = $region80
        $region79: #{bert_plus_mlp_forward.3} parent=75 // pred_region
          %451 = dma.done [#allocation3], 3072
        $region80: #{bert_plus_mlp_forward.3} parent=75 // pred_fallthru
          _
        // Predicated region
        $region81: #{bert_plus_mlp_forward.3} parent=75 // pred_check
          %p452 = pneg %p263
        $region82: #{bert_plus_mlp_forward.3} parent=75 // pred_check_branch
          %454 = sbr.rel (%p452) target = $region84
        $region83: #{bert_plus_mlp_forward.3} parent=75 // pred_region
          %455 = dma.done [#allocation5], 4096
        $region84: #{bert_plus_mlp_forward.3} parent=75 // pred_fallthru
          _
        %p456 = scmp.lt.s32.totalorder %s27, 1
        %s457 = scalar_select %p456, %s27, 1
        %s458 = smul.addr %s457, 2
        %s459 = smul.addr %s458, 4
        %s460 = scalar_lea.vmem %s0, %s459
        %p461 = pneg %p48
        %p462 = pneg %p45
        %p463 = scmp.lt.s32.totalorder %s27, 1
        %s464 = scalar_select %p463, %s27, 1
        %s465 = scalar_lea.vmem %s1, %s464
        %p466 = pneg %p74
        %p467 = pneg %p71
        %p468 = pneg %p95
        %p469 = pneg %p92
        %p470 = pneg %p116
        %p471 = pneg %p113
        %p472 = pneg %p137
        %p473 = pneg %p134
        %p474 = pneg %p158
        %p475 = pneg %p155
        %p476 = pneg %p179
        %p477 = pneg %p176
        %p478 = pneg %p200
        %p479 = pneg %p197
        %p480 = pneg %p221
        %p481 = pneg %p218
        %p482 = pneg %p242
        %p483 = pneg %p239
        %p484 = pneg %p263
        %p485 = pneg %p260
        %p486 = pneg %p284
        %p487 = pneg %p281
        %p488 = pneg %p305
        %p489 = pneg %p302
        %p490 = pneg %p326
        %p491 = pneg %p323
        %p492 = pneg %p352
        %p493 = pneg %p349
        %p494 = scmp.lt.s32.totalorder %s27, 1
        %s495 = scalar_select %p494, %s27, 1
        %s496 = smul.addr %s495, 2
        %s497 = smul.addr %s496, 4
        %s498 = scalar_lea.vmem %s14, %s497
        %p499 = scmp.lt.s32.totalorder %s27, 1
        %s500 = scalar_select %p499, %s27, 1
        %s501 = smul.addr %s500, 2
        %s502 = smul.addr %s501, 4
        %s503 = scalar_lea.vmem %s0, %s502
        %p504 = scmp.lt.s32.totalorder %s27, 1
        %s505 = scalar_select %p504, %s27, 1
        %s506 = scalar_lea.vmem %s1, %s505
        %p507 = scmp.lt.s32.totalorder %s27, 1
        %s508 = scalar_select %p507, %s27, 1
        %s509 = smul.addr %s508, 2
        %s510 = smul.addr %s509, 4
        %s511 = scalar_lea.vmem %s14, %s510
        %v513 = vld [vmem:[%s503] sm:$0xf]
        %v514 = vld [vmem:[%s503 + $0x4] sm:$0xf]
        %v515 = vld [vmem:[#allocation2] sm:$0xff]
        %v516 = vld [vmem:[#allocation2 + $0x8] sm:$0xf]
        %v517 = vld [vmem:[#allocation2 + $0xc] sm:$0xff]
        %v518 = vld [vmem:[#allocation2 + $0x14] sm:$0xf]
        %v519 = vld [vmem:[#allocation2 + $0x18] sm:$0xff]
        %v520 = vld [vmem:[#allocation2 + $0x20] sm:$0xf]
        %v521 = vld [vmem:[#allocation2 + $0x24] sm:$0xff]
        %v522 = vld [vmem:[#allocation2 + $0x2c] sm:$0xf]
        %v523 = vld [vmem:[#allocation2 + $0x30] sm:$0xff]
        %v524 = vld [vmem:[#allocation2 + $0x38] sm:$0xf]
        %v525 = vld [vmem:[#allocation2 + $0x3c] sm:$0xff]
        %v526 = vld [vmem:[#allocation2 + $0x44] sm:$0xf]
        %v527 = vld [vmem:[#allocation2 + $0x48] sm:$0xff]
        %v528 = vld [vmem:[#allocation2 + $0x50] sm:$0xf]
        %v529 = vld [vmem:[#allocation2 + $0x54] sm:$0xff]
        %v530 = vld [vmem:[#allocation2 + $0x5c] sm:$0xf]
        %v531 = vld [vmem:[#allocation2 + $0x60] sm:$0xff]
        %v532 = vld [vmem:[#allocation2 + $0x68] sm:$0xf]
        %v533 = vld [vmem:[#allocation2 + $0x6c] sm:$0xff]
        %v534 = vld [vmem:[#allocation2 + $0x74] sm:$0xf]
        %v535 = vld [vmem:[#allocation2 + $0x78] sm:$0xff]
        %v536 = vld [vmem:[#allocation2 + $0x80] sm:$0xf]
        %v537 = vld [vmem:[#allocation2 + $0x84] sm:$0xff]
        %v538 = vld [vmem:[#allocation2 + $0x8c] sm:$0xf]
        %v539 = vld [vmem:[#allocation2 + $0x90] sm:$0xff]
        %v540 = vld [vmem:[#allocation2 + $0x98] sm:$0xf]
        %v541 = vld [vmem:[#allocation2 + $0x9c] sm:$0xff]
        %v542 = vld [vmem:[#allocation2 + $0xa4] sm:$0xf]
        %v543 = vld [vmem:[#allocation2 + $0xa8] sm:$0xff]
        %v544 = vld [vmem:[#allocation2 + $0xb0] sm:$0xf]
        %v545 = vld [vmem:[#allocation2 + $0xb4] sm:$0xff]
        %v546 = vld [vmem:[#allocation2 + $0xbc] sm:$0xf]
        %v547 = vld [vmem:[%s3] sm:$0x7]
        %v549 = vlaneseq
        %v550 = vshrl.u32 %v549, 7
        %v551 = vsub.s32 0, %v550
        %v552 = vrot.slane %v547, %v551
        %v553 = vlaneseq
        %v554 = vshrl.u32 %v553, 7
        %v555 = vsub.s32 1, %v554
        %v556 = vrot.slane %v547, %v555
        %v557 = vlaneseq
        %v558 = vshrl.u32 %v557, 7
        %v559 = vsub.s32 2, %v558
        %v560 = vrot.slane %v547, %v559
        %v566 = vunpack.c.l.b16 %v513
        %v567 = vunpack.c.l.b16 %v514
        %v568 = vpack.c.b16 %v567, %v566
        %v602 = vunpack.c.l.b16 %v515
        %v603 = vunpack.c.h.b16 %v515
        %v604 = vunpack.c.l.b16 %v516
        %v605 = vunpack.c.l.b16 %v517
        %v606 = vunpack.c.h.b16 %v517
        %v607 = vunpack.c.l.b16 %v518
        %v608 = vunpack.c.l.b16 %v519
        %v609 = vunpack.c.h.b16 %v519
        %v610 = vunpack.c.l.b16 %v520
        %v611 = vunpack.c.l.b16 %v521
        %v612 = vunpack.c.h.b16 %v521
        %v613 = vunpack.c.l.b16 %v522
        %v614 = vunpack.c.l.b16 %v523
        %v615 = vunpack.c.h.b16 %v523
        %v616 = vunpack.c.l.b16 %v524
        %v617 = vunpack.c.l.b16 %v525
        %v618 = vunpack.c.h.b16 %v525
        %v619 = vunpack.c.l.b16 %v526
        %v620 = vunpack.c.l.b16 %v527
        %v621 = vunpack.c.h.b16 %v527
        %v622 = vunpack.c.l.b16 %v528
        %v623 = vunpack.c.l.b16 %v529
        %v624 = vunpack.c.h.b16 %v529
        %v625 = vunpack.c.l.b16 %v530
        %v626 = vunpack.c.l.b16 %v531
        %v627 = vunpack.c.h.b16 %v531
        %v628 = vunpack.c.l.b16 %v532
        %v629 = vunpack.c.l.b16 %v533
        %v630 = vunpack.c.h.b16 %v533
        %v631 = vunpack.c.l.b16 %v534
        %v632 = vunpack.c.l.b16 %v535
        %v633 = vunpack.c.h.b16 %v535
        %v634 = vunpack.c.l.b16 %v536
        %v635 = vunpack.c.l.b16 %v537
        %v636 = vunpack.c.h.b16 %v537
        %v637 = vunpack.c.l.b16 %v538
        %v638 = vunpack.c.l.b16 %v539
        %v639 = vunpack.c.h.b16 %v539
        %v640 = vunpack.c.l.b16 %v540
        %v641 = vunpack.c.l.b16 %v541
        %v642 = vunpack.c.h.b16 %v541
        %v643 = vunpack.c.l.b16 %v542
        %v644 = vunpack.c.l.b16 %v543
        %v645 = vunpack.c.h.b16 %v543
        %v646 = vunpack.c.l.b16 %v544
        %v647 = vunpack.c.l.b16 %v545
        %v648 = vunpack.c.h.b16 %v545
        %v649 = vunpack.c.l.b16 %v546
        %v650 = vpack.c.b16 %v605, %v602
        %v651 = vpack.c.b16 %v606, %v603
        %v652 = vpack.c.b16 %v607, %v604
        %v653 = vpack.c.b16 %v611, %v608
        %v654 = vpack.c.b16 %v612, %v609
        %v655 = vpack.c.b16 %v613, %v610
        %v656 = vpack.c.b16 %v617, %v614
        %v657 = vpack.c.b16 %v618, %v615
        %v658 = vpack.c.b16 %v619, %v616
        %v659 = vpack.c.b16 %v623, %v620
        %v660 = vpack.c.b16 %v624, %v621
        %v661 = vpack.c.b16 %v625, %v622
        %v662 = vpack.c.b16 %v629, %v626
        %v663 = vpack.c.b16 %v630, %v627
        %v664 = vpack.c.b16 %v631, %v628
        %v665 = vpack.c.b16 %v635, %v632
        %v666 = vpack.c.b16 %v636, %v633
        %v667 = vpack.c.b16 %v637, %v634
        %v668 = vpack.c.b16 %v641, %v638
        %v669 = vpack.c.b16 %v642, %v639
        %v670 = vpack.c.b16 %v643, %v640
        %v671 = vpack.c.b16 %v647, %v644
        %v672 = vpack.c.b16 %v648, %v645
        %v673 = vpack.c.b16 %v649, %v646
        %698 = vmatprep.subr.bf16.mxu0 %v672
        %699 = vmatpush1.bf16.msra.mxu0 %v671
        %700 = vmatprep.subr.bf16.mxu0 %v669
        %701 = vmatpush1.bf16.msra.mxu0 %v668
        %702 = vmatprep.subr.bf16.mxu0 %v666
        %703 = vmatpush1.bf16.msra.mxu0 %v665
        %704 = vmatprep.subr.bf16.mxu0 %v663
        %705 = vmatpush1.bf16.msra.mxu0 %v662
        %706 = vmatprep.subr.bf16.mxu0 %v660
        %707 = vmatpush1.bf16.msra.mxu0 %v659
        %708 = vmatprep.subr.bf16.mxu0 %v657
        %709 = vmatpush1.bf16.msra.mxu0 %v656
        %710 = vmatprep.subr.bf16.mxu0 %v654
        %711 = vmatpush1.bf16.msra.mxu0 %v653
        %712 = vmatprep.subr.bf16.mxu0 %v651
        %713 = vmatpush1.bf16.msra.mxu0 %v650
        %714 = vmatprep.subr.bf16.mxu0 0
        %715 = vmatpush2.bf16.msra.mxu0 0
        %716 = vmatprep.subr.bf16.mxu0 0
        %717 = vmatpush2.bf16.msra.mxu0 0
        %718 = vmatprep.subr.bf16.mxu0 0
        %719 = vmatpush2.bf16.msra.mxu0 0
        %720 = vmatprep.subr.bf16.mxu0 0
        %721 = vmatpush2.bf16.msra.mxu0 0
        %722 = vmatprep.subr.bf16.mxu0 0
        %723 = vmatpush2.bf16.msra.mxu0 0
        %724 = vmatprep.subr.bf16.mxu0 0
        %725 = vmatpush2.bf16.msra.mxu0 0
        %726 = vmatprep.subr.bf16.mxu0 0
        %727 = vmatpush2.bf16.msra.mxu0 0
        %728 = vmatprep.subr.bf16.mxu0 0
        %729 = vmatpush2.bf16.msra.mxu0 0
        %730 = vmatprep.mubr.bf16.mxu0 0
        %731 = vmatmul.mubr.bf16.gmra.mxu0 %v568
        %v732 = vpop.f32.mrf.mxu0
        %v733 = vadd.f32 %v552, %v732
        %v734 = vpop.f32.mrf.mxu0
        %v735 = vadd.f32 %v556, %v734
        %v736 = vpop.f32.mrf.mxu0
        %v737 = vadd.f32 %v552, %v736
        %v738 = vpop.f32.mrf.mxu0
        %v739 = vadd.f32 %v556, %v738
        %740 = vdwg.mxu0
        %741 = vmatprep.subr.bf16.mxu0 0
        %742 = vmatpush1.bf16.msra.mxu0 %v673
        %743 = vmatprep.subr.bf16.mxu0 0
        %744 = vmatpush1.bf16.msra.mxu0 %v670
        %745 = vmatprep.subr.bf16.mxu0 0
        %746 = vmatpush1.bf16.msra.mxu0 %v667
        %747 = vmatprep.subr.bf16.mxu0 0
        %748 = vmatpush1.bf16.msra.mxu0 %v664
        %749 = vmatprep.subr.bf16.mxu0 0
        %750 = vmatpush1.bf16.msra.mxu0 %v661
        %751 = vmatprep.subr.bf16.mxu0 0
        %752 = vmatpush1.bf16.msra.mxu0 %v658
        %753 = vmatprep.subr.bf16.mxu0 0
        %754 = vmatpush1.bf16.msra.mxu0 %v655
        %755 = vmatprep.subr.bf16.mxu0 0
        %756 = vmatpush1.bf16.msra.mxu0 %v652
        %757 = vmatprep.subr.bf16.mxu0 0
        %758 = vmatpush2.bf16.msra.mxu0 0
        %759 = vmatprep.subr.bf16.mxu0 0
        %760 = vmatpush2.bf16.msra.mxu0 0
        %761 = vmatprep.subr.bf16.mxu0 0
        %762 = vmatpush2.bf16.msra.mxu0 0
        %763 = vmatprep.subr.bf16.mxu0 0
        %764 = vmatpush2.bf16.msra.mxu0 0
        %765 = vmatprep.subr.bf16.mxu0 0
        %766 = vmatpush2.bf16.msra.mxu0 0
        %767 = vmatprep.subr.bf16.mxu0 0
        %768 = vmatpush2.bf16.msra.mxu0 0
        %769 = vmatprep.subr.bf16.mxu0 0
        %770 = vmatpush2.bf16.msra.mxu0 0
        %771 = vmatprep.subr.bf16.mxu0 0
        %772 = vmatpush2.bf16.msra.mxu0 0
        %773 = vmatprep.mubr.bf16.mxu0 0
        %774 = vmatmul.mubr.bf16.gmra.mxu0 %v568
        %v775 = vpop.f32.mrf.mxu0
        %v776 = vadd.f32 %v560, %v775
        %v777 = vpop.f32.mrf.mxu0
        %v778 = vpop.f32.mrf.mxu0
        %v779 = vadd.f32 %v560, %v778
        %v780 = vpop.f32.mrf.mxu0
        %781 = vdwg.mxu0
        %v782 = vpack.c.bf16 %v737, %v733
        %v783 = vpack.c.bf16 %v739, %v735
        %v784 = vpack.c.bf16 %v779, %v776
        %v785 = vld [vmem:[%s506] sm:$0x1]
        %v787 = vlaneseq
        %v788 = vshrl.u32 %v787, 7
        %v789 = vsub.s32 0, %v788
        %v790 = vrot.slane %v785, %v789
        %792 = vmatprep.subr.bf16.mxu0 0
        %793 = vmatpush1.bf16.xpose.msra.mxu0 0
        %794 = vmatprep.subr.bf16.mxu0 0
        %795 = vmatpush1.bf16.xpose.msra.mxu0 0
        %796 = vmatprep.subr.bf16.mxu0 0
        %797 = vmatpush1.bf16.xpose.msra.mxu0 0
        %798 = vmatprep.subr.bf16.mxu0 0
        %799 = vmatpush1.bf16.xpose.msra.mxu0 0
        %800 = vmatprep.subr.bf16.mxu0 0
        %801 = vmatpush1.bf16.xpose.msra.mxu0 0
        %802 = vmatprep.subr.bf16.mxu0 0
        %803 = vmatpush1.bf16.xpose.msra.mxu0 0
        %804 = vmatprep.subr.bf16.mxu0 0
        %805 = vmatpush1.bf16.xpose.msra.mxu0 0
        %806 = vmatprep.subr.bf16.mxu0 0
        %807 = vmatpush1.bf16.xpose.msra.mxu0 %v783
        %808 = vmatprep.subr.bf16.mxu0 0
        %809 = vmatpush2.bf16.xpose.msra.mxu0 0
        %810 = vmatprep.subr.bf16.mxu0 0
        %811 = vmatpush2.bf16.xpose.msra.mxu0 0
        %812 = vmatprep.subr.bf16.mxu0 0
        %813 = vmatpush2.bf16.xpose.msra.mxu0 0
        %814 = vmatprep.subr.bf16.mxu0 0
        %815 = vmatpush2.bf16.xpose.msra.mxu0 0
        %816 = vmatprep.subr.bf16.mxu0 0
        %817 = vmatpush2.bf16.xpose.msra.mxu0 0
        %818 = vmatprep.subr.bf16.mxu0 0
        %819 = vmatpush2.bf16.xpose.msra.mxu0 0
        %820 = vmatprep.subr.bf16.mxu0 0
        %821 = vmatpush2.bf16.xpose.msra.mxu0 0
        %822 = vmatprep.subr.bf16.mxu0 0
        %823 = vmatpush2.bf16.xpose.msra.mxu0 0
        %824 = vmatprep.mubr.bf16.mxu0 0
        %825 = vmatmul.mubr.bf16.gmra.mxu0 %v782
        %v826 = vpop.f32.mrf.mxu0
        %v827 = vadd.f32 %v790, %v826
        %v828 = vpop.f32.mrf.mxu0
        %v829 = vpop.f32.mrf.mxu0
        %v830 = vadd.f32 %v790, %v829
        %v831 = vpop.f32.mrf.mxu0
        %832 = vdwg.mxu0
        %vm833 = vcmask 130048
        %v834 = vsel %vm833, %v827, -inf
        %835 = vmax.xlane.f32.xlu0 %v834
        %v836 = vpop.xlane.xlu0 %835
        %v837 = vsel %vm833, %v830, -inf
        %838 = vmax.xlane.f32.xlu0 %v837
        %v839 = vpop.xlane.xlu0 %838
        %v840 = vsub.f32 %v827, %v836
        %v841 = vsub.f32 %v830, %v839
        %v842 = vmul.f32 %v840, 1.442695
        %v843 = vpow.pop %v842
        %v844 = vmul.f32 %v841, 1.442695
        %v845 = vpow.pop %v844
        %v846 = vsel %vm833, %v843, 0.0
        %847 = vadd.xlane.f32.xlu0 %v846
        %v848 = vpop.xlane.xlu0 %847
        %v849 = vsel %vm833, %v845, 0.0
        %850 = vadd.xlane.f32.xlu0 %v849
        %v851 = vpop.xlane.xlu0 %850
        %v852 = vrcp.pop %v848
        %v853 = vmul.f32 %v843, %v852
        %v854 = vrcp.pop %v851
        %v855 = vmul.f32 %v845, %v854
        %v856 = vpack.c.bf16 %v855, %v853
        %v858 = vsel %vm833, %v856, 0
        %860 = vmatprep.subr.bf16.mxu0 0
        %861 = vmatpush1.bf16.msra.mxu0 0
        %862 = vmatprep.subr.bf16.mxu0 0
        %863 = vmatpush1.bf16.msra.mxu0 0
        %864 = vmatprep.subr.bf16.mxu0 0
        %865 = vmatpush1.bf16.msra.mxu0 0
        %866 = vmatprep.subr.bf16.mxu0 0
        %867 = vmatpush1.bf16.msra.mxu0 0
        %868 = vmatprep.subr.bf16.mxu0 0
        %869 = vmatpush1.bf16.msra.mxu0 0
        %870 = vmatprep.subr.bf16.mxu0 0
        %871 = vmatpush1.bf16.msra.mxu0 0
        %872 = vmatprep.subr.bf16.mxu0 0
        %873 = vmatpush1.bf16.msra.mxu0 0
        %874 = vmatprep.subr.bf16.mxu0 0
        %875 = vmatpush1.bf16.msra.mxu0 %v784
        %876 = vmatprep.subr.bf16.mxu0 0
        %877 = vmatpush2.bf16.msra.mxu0 0
        %878 = vmatprep.subr.bf16.mxu0 0
        %879 = vmatpush2.bf16.msra.mxu0 0
        %880 = vmatprep.subr.bf16.mxu0 0
        %881 = vmatpush2.bf16.msra.mxu0 0
        %882 = vmatprep.subr.bf16.mxu0 0
        %883 = vmatpush2.bf16.msra.mxu0 0
        %884 = vmatprep.subr.bf16.mxu0 0
        %885 = vmatpush2.bf16.msra.mxu0 0
        %886 = vmatprep.subr.bf16.mxu0 0
        %887 = vmatpush2.bf16.msra.mxu0 0
        %888 = vmatprep.subr.bf16.mxu0 0
        %889 = vmatpush2.bf16.msra.mxu0 0
        %890 = vmatprep.subr.bf16.mxu0 0
        %891 = vmatpush2.bf16.msra.mxu0 0
        %892 = vmatprep.mubr.bf16.mxu0 0
        %893 = vmatmul.mubr.bf16.gmra.mxu0 %v858
        %v894 = vpop.f32.mrf.mxu0
        %v895 = vadd.f32 0.0, %v894
        %v896 = vpop.f32.mrf.mxu0
        %v897 = vpop.f32.mrf.mxu0
        %v898 = vadd.f32 0.0, %v897
        %v899 = vpop.f32.mrf.mxu0
        %900 = vdwg.mxu0
        %v901 = vpack.c.bf16 %v898, %v895
        %v902 = vld [vmem:[%s4] sm:$0xf]
        %v903 = vld [vmem:[%s4 + $0x4] sm:$0xf]
        %v904 = vld [vmem:[%s4 + $0x8] sm:$0xf]
        %v905 = vld [vmem:[%s4 + $0xc] sm:$0xf]
        %v906 = vld [vmem:[%s4 + $0x10] sm:$0xf]
        %v907 = vld [vmem:[%s4 + $0x14] sm:$0xf]
        %v908 = vld [vmem:[%s4 + $0x18] sm:$0xf]
        %v909 = vld [vmem:[%s4 + $0x1c] sm:$0xf]
        %v910 = vld [vmem:[%s4 + $0x20] sm:$0xf]
        %v911 = vld [vmem:[%s4 + $0x24] sm:$0xf]
        %v912 = vld [vmem:[%s4 + $0x28] sm:$0xf]
        %v913 = vld [vmem:[%s4 + $0x2c] sm:$0xf]
        %v914 = vld [vmem:[%s4 + $0x30] sm:$0xf]
        %v915 = vld [vmem:[%s4 + $0x34] sm:$0xf]
        %v916 = vld [vmem:[%s4 + $0x38] sm:$0xf]
        %v917 = vld [vmem:[%s4 + $0x3c] sm:$0xf]
        %v918 = vld [vmem:[%s5] sm:$0x1]
        %v920 = vlaneseq
        %v921 = vshrl.u32 %v920, 7
        %v922 = vsub.s32 0, %v921
        %v923 = vrot.slane %v918, %v922
        %v941 = vunpack.c.l.b16 %v902
        %v942 = vunpack.c.l.b16 %v903
        %v943 = vunpack.c.l.b16 %v904
        %v944 = vunpack.c.l.b16 %v905
        %v945 = vunpack.c.l.b16 %v906
        %v946 = vunpack.c.l.b16 %v907
        %v947 = vunpack.c.l.b16 %v908
        %v948 = vunpack.c.l.b16 %v909
        %v949 = vunpack.c.l.b16 %v910
        %v950 = vunpack.c.l.b16 %v911
        %v951 = vunpack.c.l.b16 %v912
        %v952 = vunpack.c.l.b16 %v913
        %v953 = vunpack.c.l.b16 %v914
        %v954 = vunpack.c.l.b16 %v915
        %v955 = vunpack.c.l.b16 %v916
        %v956 = vunpack.c.l.b16 %v917
        %v957 = vpack.c.b16 %v942, %v941
        %v958 = vpack.c.b16 %v944, %v943
        %v959 = vpack.c.b16 %v946, %v945
        %v960 = vpack.c.b16 %v948, %v947
        %v961 = vpack.c.b16 %v950, %v949
        %v962 = vpack.c.b16 %v952, %v951
        %v963 = vpack.c.b16 %v954, %v953
        %v964 = vpack.c.b16 %v956, %v955
        %973 = vmatprep.subr.bf16.mxu0 0
        %974 = vmatpush1.bf16.msra.mxu0 %v964
        %975 = vmatprep.subr.bf16.mxu0 0
        %976 = vmatpush1.bf16.msra.mxu0 %v963
        %977 = vmatprep.subr.bf16.mxu0 0
        %978 = vmatpush1.bf16.msra.mxu0 %v962
        %979 = vmatprep.subr.bf16.mxu0 0
        %980 = vmatpush1.bf16.msra.mxu0 %v961
        %981 = vmatprep.subr.bf16.mxu0 0
        %982 = vmatpush1.bf16.msra.mxu0 %v960
        %983 = vmatprep.subr.bf16.mxu0 0
        %984 = vmatpush1.bf16.msra.mxu0 %v959
        %985 = vmatprep.subr.bf16.mxu0 0
        %986 = vmatpush1.bf16.msra.mxu0 %v958
        %987 = vmatprep.subr.bf16.mxu0 0
        %988 = vmatpush1.bf16.msra.mxu0 %v957
        %989 = vmatprep.subr.bf16.mxu0 0
        %990 = vmatpush2.bf16.msra.mxu0 0
        %991 = vmatprep.subr.bf16.mxu0 0
        %992 = vmatpush2.bf16.msra.mxu0 0
        %993 = vmatprep.subr.bf16.mxu0 0
        %994 = vmatpush2.bf16.msra.mxu0 0
        %995 = vmatprep.subr.bf16.mxu0 0
        %996 = vmatpush2.bf16.msra.mxu0 0
        %997 = vmatprep.subr.bf16.mxu0 0
        %998 = vmatpush2.bf16.msra.mxu0 0
        %999 = vmatprep.subr.bf16.mxu0 0
        %1000 = vmatpush2.bf16.msra.mxu0 0
        %1001 = vmatprep.subr.bf16.mxu0 0
        %1002 = vmatpush2.bf16.msra.mxu0 0
        %1003 = vmatprep.subr.bf16.mxu0 0
        %1004 = vmatpush2.bf16.msra.mxu0 0
        %1005 = vmatprep.mubr.bf16.mxu0 0
        %1006 = vmatmul.mubr.bf16.gmra.mxu0 %v901
        %v1007 = vpop.f32.mrf.mxu0
        %v1008 = vadd.f32 %v923, %v1007
        %v1009 = vpop.f32.mrf.mxu0
        %v1010 = vpop.f32.mrf.mxu0
        %v1011 = vadd.f32 %v923, %v1010
        %v1012 = vpop.f32.mrf.mxu0
        %1013 = vdwg.mxu0
        %v1014 = vunpack.c.l.bf16 %v513
        %v1015 = vunpack.c.l.bf16 %v514
        %v1016 = vadd.f32 %v1014, %v1008
        %v1017 = vadd.f32 %v1015, %v1011
        %v1018 = vld [vmem:[%s6] sm:$0x1]
        %v1019 = vld [vmem:[%s7] sm:$0x1]
        %1020 = vadd.xlane.f32.xlu0 %v1016
        %v1021 = vpop.xlane.xlu0 %1020
        %1022 = vadd.xlane.f32.xlu0 %v1017
        %v1023 = vpop.xlane.xlu0 %1022
        %v1024 = vrcp.pop 128.0
        %v1025 = vmul.f32 %v1021, %v1024
        %v1026 = vmul.f32 %v1023, %v1024
        %v1027 = vsub.f32 %v1016, %v1025
        %v1028 = vsub.f32 %v1017, %v1026
        %v1029 = vmul.f32 %v1027, %v1027
        %v1030 = vmul.f32 %v1028, %v1028
        %1031 = vadd.xlane.f32.xlu0 %v1029
        %v1032 = vpop.xlane.xlu0 %1031
        %1033 = vadd.xlane.f32.xlu0 %v1030
        %v1034 = vpop.xlane.xlu0 %1033
        %v1035 = vmul.f32 %v1032, %v1024
        %v1036 = vmul.f32 %v1034, %v1024
        %v1037 = vadd.f32 %v1035, 1e-12
        %v1038 = vadd.f32 %v1036, 1e-12
        %v1039 = vrsqrt.pop %v1037
        %v1040 = vrsqrt.pop %v1038
        %v1041 = vmul.f32 %v1027, %v1039
        %v1042 = vmul.f32 %v1028, %v1040
        %v1044 = vlaneseq
        %v1045 = vshrl.u32 %v1044, 7
        %v1046 = vsub.s32 0, %v1045
        %v1047 = vrot.slane %v1018, %v1046
        %v1049 = vmul.f32 %v1041, %v1047
        %v1050 = vmul.f32 %v1042, %v1047
        %v1052 = vlaneseq
        %v1053 = vshrl.u32 %v1052, 7
        %v1054 = vsub.s32 0, %v1053
        %v1055 = vrot.slane %v1019, %v1054
        %v1057 = vadd.f32 %v1049, %v1055
        %v1058 = vadd.f32 %v1050, %v1055
        %v1059 = vpack.c.bf16 %v1058, %v1057
        %v1060 = vld [vmem:[%s8] sm:$0xff]
        %v1061 = vld [vmem:[%s8 + $0x8] sm:$0xff]
        %v1062 = vld [vmem:[%s8 + $0x10] sm:$0xff]
        %v1063 = vld [vmem:[%s8 + $0x18] sm:$0xff]
        %v1064 = vld [vmem:[%s8 + $0x20] sm:$0xff]
        %v1065 = vld [vmem:[%s8 + $0x28] sm:$0xff]
        %v1066 = vld [vmem:[%s8 + $0x30] sm:$0xff]
        %v1067 = vld [vmem:[%s8 + $0x38] sm:$0xff]
        %v1068 = vld [vmem:[%s8 + $0x40] sm:$0xff]
        %v1069 = vld [vmem:[%s8 + $0x48] sm:$0xff]
        %v1070 = vld [vmem:[%s8 + $0x50] sm:$0xff]
        %v1071 = vld [vmem:[%s8 + $0x58] sm:$0xff]
        %v1072 = vld [vmem:[%s8 + $0x60] sm:$0xff]
        %v1073 = vld [vmem:[%s8 + $0x68] sm:$0xff]
        %v1074 = vld [vmem:[%s8 + $0x70] sm:$0xff]
        %v1075 = vld [vmem:[%s8 + $0x78] sm:$0xff]
        %v1076 = vld [vmem:[%s8 + $0x80] sm:$0xff]
        %v1077 = vld [vmem:[%s8 + $0x88] sm:$0xff]
        %v1078 = vld [vmem:[%s8 + $0x90] sm:$0xff]
        %v1079 = vld [vmem:[%s8 + $0x98] sm:$0xff]
        %v1080 = vld [vmem:[%s8 + $0xa0] sm:$0xff]
        %v1081 = vld [vmem:[%s8 + $0xa8] sm:$0xff]
        %v1082 = vld [vmem:[%s8 + $0xb0] sm:$0xff]
        %v1083 = vld [vmem:[%s8 + $0xb8] sm:$0xff]
        %v1084 = vld [vmem:[%s8 + $0xc0] sm:$0xff]
        %v1085 = vld [vmem:[%s8 + $0xc8] sm:$0xff]
        %v1086 = vld [vmem:[%s8 + $0xd0] sm:$0xff]
        %v1087 = vld [vmem:[%s8 + $0xd8] sm:$0xff]
        %v1088 = vld [vmem:[%s8 + $0xe0] sm:$0xff]
        %v1089 = vld [vmem:[%s8 + $0xe8] sm:$0xff]
        %v1090 = vld [vmem:[%s8 + $0xf0] sm:$0xff]
        %v1091 = vld [vmem:[%s8 + $0xf8] sm:$0xff]
        %v1092 = vld [vmem:[%s9] sm:$0xf]
        %v1094 = vlaneseq
        %v1095 = vshrl.u32 %v1094, 7
        %v1096 = vsub.s32 0, %v1095
        %v1097 = vrot.slane %v1092, %v1096
        %v1098 = vlaneseq
        %v1099 = vshrl.u32 %v1098, 7
        %v1100 = vsub.s32 1, %v1099
        %v1101 = vrot.slane %v1092, %v1100
        %v1102 = vlaneseq
        %v1103 = vshrl.u32 %v1102, 7
        %v1104 = vsub.s32 2, %v1103
        %v1105 = vrot.slane %v1092, %v1104
        %v1106 = vlaneseq
        %v1107 = vshrl.u32 %v1106, 7
        %v1108 = vsub.s32 3, %v1107
        %v1109 = vrot.slane %v1092, %v1108
        %v1146 = vunpack.c.l.b16 %v1060
        %v1147 = vunpack.c.h.b16 %v1060
        %v1148 = vunpack.c.l.b16 %v1061
        %v1149 = vunpack.c.h.b16 %v1061
        %v1150 = vunpack.c.l.b16 %v1062
        %v1151 = vunpack.c.h.b16 %v1062
        %v1152 = vunpack.c.l.b16 %v1063
        %v1153 = vunpack.c.h.b16 %v1063
        %v1154 = vunpack.c.l.b16 %v1064
        %v1155 = vunpack.c.h.b16 %v1064
        %v1156 = vunpack.c.l.b16 %v1065
        %v1157 = vunpack.c.h.b16 %v1065
        %v1158 = vunpack.c.l.b16 %v1066
        %v1159 = vunpack.c.h.b16 %v1066
        %v1160 = vunpack.c.l.b16 %v1067
        %v1161 = vunpack.c.h.b16 %v1067
        %v1162 = vunpack.c.l.b16 %v1068
        %v1163 = vunpack.c.h.b16 %v1068
        %v1164 = vunpack.c.l.b16 %v1069
        %v1165 = vunpack.c.h.b16 %v1069
        %v1166 = vunpack.c.l.b16 %v1070
        %v1167 = vunpack.c.h.b16 %v1070
        %v1168 = vunpack.c.l.b16 %v1071
        %v1169 = vunpack.c.h.b16 %v1071
        %v1170 = vunpack.c.l.b16 %v1072
        %v1171 = vunpack.c.h.b16 %v1072
        %v1172 = vunpack.c.l.b16 %v1073
        %v1173 = vunpack.c.h.b16 %v1073
        %v1174 = vunpack.c.l.b16 %v1074
        %v1175 = vunpack.c.h.b16 %v1074
        %v1176 = vunpack.c.l.b16 %v1075
        %v1177 = vunpack.c.h.b16 %v1075
        %v1178 = vunpack.c.l.b16 %v1076
        %v1179 = vunpack.c.h.b16 %v1076
        %v1180 = vunpack.c.l.b16 %v1077
        %v1181 = vunpack.c.h.b16 %v1077
        %v1182 = vunpack.c.l.b16 %v1078
        %v1183 = vunpack.c.h.b16 %v1078
        %v1184 = vunpack.c.l.b16 %v1079
        %v1185 = vunpack.c.h.b16 %v1079
        %v1186 = vunpack.c.l.b16 %v1080
        %v1187 = vunpack.c.h.b16 %v1080
        %v1188 = vunpack.c.l.b16 %v1081
        %v1189 = vunpack.c.h.b16 %v1081
        %v1190 = vunpack.c.l.b16 %v1082
        %v1191 = vunpack.c.h.b16 %v1082
        %v1192 = vunpack.c.l.b16 %v1083
        %v1193 = vunpack.c.h.b16 %v1083
        %v1194 = vunpack.c.l.b16 %v1084
        %v1195 = vunpack.c.h.b16 %v1084
        %v1196 = vunpack.c.l.b16 %v1085
        %v1197 = vunpack.c.h.b16 %v1085
        %v1198 = vunpack.c.l.b16 %v1086
        %v1199 = vunpack.c.h.b16 %v1086
        %v1200 = vunpack.c.l.b16 %v1087
        %v1201 = vunpack.c.h.b16 %v1087
        %v1202 = vunpack.c.l.b16 %v1088
        %v1203 = vunpack.c.h.b16 %v1088
        %v1204 = vunpack.c.l.b16 %v1089
        %v1205 = vunpack.c.h.b16 %v1089
        %v1206 = vunpack.c.l.b16 %v1090
        %v1207 = vunpack.c.h.b16 %v1090
        %v1208 = vunpack.c.l.b16 %v1091
        %v1209 = vunpack.c.h.b16 %v1091
        %v1210 = vpack.c.b16 %v1150, %v1146
        %v1211 = vpack.c.b16 %v1151, %v1147
        %v1212 = vpack.c.b16 %v1152, %v1148
        %v1213 = vpack.c.b16 %v1153, %v1149
        %v1214 = vpack.c.b16 %v1158, %v1154
        %v1215 = vpack.c.b16 %v1159, %v1155
        %v1216 = vpack.c.b16 %v1160, %v1156
        %v1217 = vpack.c.b16 %v1161, %v1157
        %v1218 = vpack.c.b16 %v1166, %v1162
        %v1219 = vpack.c.b16 %v1167, %v1163
        %v1220 = vpack.c.b16 %v1168, %v1164
        %v1221 = vpack.c.b16 %v1169, %v1165
        %v1222 = vpack.c.b16 %v1174, %v1170
        %v1223 = vpack.c.b16 %v1175, %v1171
        %v1224 = vpack.c.b16 %v1176, %v1172
        %v1225 = vpack.c.b16 %v1177, %v1173
        %v1226 = vpack.c.b16 %v1182, %v1178
        %v1227 = vpack.c.b16 %v1183, %v1179
        %v1228 = vpack.c.b16 %v1184, %v1180
        %v1229 = vpack.c.b16 %v1185, %v1181
        %v1230 = vpack.c.b16 %v1190, %v1186
        %v1231 = vpack.c.b16 %v1191, %v1187
        %v1232 = vpack.c.b16 %v1192, %v1188
        %v1233 = vpack.c.b16 %v1193, %v1189
        %v1234 = vpack.c.b16 %v1198, %v1194
        %v1235 = vpack.c.b16 %v1199, %v1195
        %v1236 = vpack.c.b16 %v1200, %v1196
        %v1237 = vpack.c.b16 %v1201, %v1197
        %v1238 = vpack.c.b16 %v1206, %v1202
        %v1239 = vpack.c.b16 %v1207, %v1203
        %v1240 = vpack.c.b16 %v1208, %v1204
        %v1241 = vpack.c.b16 %v1209, %v1205
        %1274 = vmatprep.subr.bf16.mxu0 %v1239
        %1275 = vmatpush1.bf16.msra.mxu0 %v1238
        %1276 = vmatprep.subr.bf16.mxu0 %v1235
        %1277 = vmatpush1.bf16.msra.mxu0 %v1234
        %1278 = vmatprep.subr.bf16.mxu0 %v1231
        %1279 = vmatpush1.bf16.msra.mxu0 %v1230
        %1280 = vmatprep.subr.bf16.mxu0 %v1227
        %1281 = vmatpush1.bf16.msra.mxu0 %v1226
        %1282 = vmatprep.subr.bf16.mxu0 %v1223
        %1283 = vmatpush1.bf16.msra.mxu0 %v1222
        %1284 = vmatprep.subr.bf16.mxu0 %v1219
        %1285 = vmatpush1.bf16.msra.mxu0 %v1218
        %1286 = vmatprep.subr.bf16.mxu0 %v1215
        %1287 = vmatpush1.bf16.msra.mxu0 %v1214
        %1288 = vmatprep.subr.bf16.mxu0 %v1211
        %1289 = vmatpush1.bf16.msra.mxu0 %v1210
        %1290 = vmatprep.subr.bf16.mxu0 0
        %1291 = vmatpush2.bf16.msra.mxu0 0
        %1292 = vmatprep.subr.bf16.mxu0 0
        %1293 = vmatpush2.bf16.msra.mxu0 0
        %1294 = vmatprep.subr.bf16.mxu0 0
        %1295 = vmatpush2.bf16.msra.mxu0 0
        %1296 = vmatprep.subr.bf16.mxu0 0
        %1297 = vmatpush2.bf16.msra.mxu0 0
        %1298 = vmatprep.subr.bf16.mxu0 0
        %1299 = vmatpush2.bf16.msra.mxu0 0
        %1300 = vmatprep.subr.bf16.mxu0 0
        %1301 = vmatpush2.bf16.msra.mxu0 0
        %1302 = vmatprep.subr.bf16.mxu0 0
        %1303 = vmatpush2.bf16.msra.mxu0 0
        %1304 = vmatprep.subr.bf16.mxu0 0
        %1305 = vmatpush2.bf16.msra.mxu0 0
        %1306 = vmatprep.mubr.bf16.mxu0 0
        %1307 = vmatmul.mubr.bf16.gmra.mxu0 %v1059
        %v1308 = vpop.f32.mrf.mxu0
        %v1309 = vadd.f32 %v1097, %v1308
        %v1310 = vpop.f32.mrf.mxu0
        %v1311 = vadd.f32 %v1101, %v1310
        %v1312 = vpop.f32.mrf.mxu0
        %v1313 = vadd.f32 %v1097, %v1312
        %v1314 = vpop.f32.mrf.mxu0
        %v1315 = vadd.f32 %v1101, %v1314
        %1316 = vdwg.mxu0
        %1317 = vmatprep.subr.bf16.mxu0 %v1241
        %1318 = vmatpush1.bf16.msra.mxu0 %v1240
        %1319 = vmatprep.subr.bf16.mxu0 %v1237
        %1320 = vmatpush1.bf16.msra.mxu0 %v1236
        %1321 = vmatprep.subr.bf16.mxu0 %v1233
        %1322 = vmatpush1.bf16.msra.mxu0 %v1232
        %1323 = vmatprep.subr.bf16.mxu0 %v1229
        %1324 = vmatpush1.bf16.msra.mxu0 %v1228
        %1325 = vmatprep.subr.bf16.mxu0 %v1225
        %1326 = vmatpush1.bf16.msra.mxu0 %v1224
        %1327 = vmatprep.subr.bf16.mxu0 %v1221
        %1328 = vmatpush1.bf16.msra.mxu0 %v1220
        %1329 = vmatprep.subr.bf16.mxu0 %v1217
        %1330 = vmatpush1.bf16.msra.mxu0 %v1216
        %1331 = vmatprep.subr.bf16.mxu0 %v1213
        %1332 = vmatpush1.bf16.msra.mxu0 %v1212
        %1333 = vmatprep.subr.bf16.mxu0 0
        %1334 = vmatpush2.bf16.msra.mxu0 0
        %1335 = vmatprep.subr.bf16.mxu0 0
        %1336 = vmatpush2.bf16.msra.mxu0 0
        %1337 = vmatprep.subr.bf16.mxu0 0
        %1338 = vmatpush2.bf16.msra.mxu0 0
        %1339 = vmatprep.subr.bf16.mxu0 0
        %1340 = vmatpush2.bf16.msra.mxu0 0
        %1341 = vmatprep.subr.bf16.mxu0 0
        %1342 = vmatpush2.bf16.msra.mxu0 0
        %1343 = vmatprep.subr.bf16.mxu0 0
        %1344 = vmatpush2.bf16.msra.mxu0 0
        %1345 = vmatprep.subr.bf16.mxu0 0
        %1346 = vmatpush2.bf16.msra.mxu0 0
        %1347 = vmatprep.subr.bf16.mxu0 0
        %1348 = vmatpush2.bf16.msra.mxu0 0
        %1349 = vmatprep.mubr.bf16.mxu0 0
        %1350 = vmatmul.mubr.bf16.gmra.mxu0 %v1059
        %v1351 = vpop.f32.mrf.mxu0
        %v1352 = vadd.f32 %v1105, %v1351
        %v1353 = vpop.f32.mrf.mxu0
        %v1354 = vadd.f32 %v1109, %v1353
        %v1355 = vpop.f32.mrf.mxu0
        %v1356 = vadd.f32 %v1105, %v1355
        %v1357 = vpop.f32.mrf.mxu0
        %v1358 = vadd.f32 %v1109, %v1357
        %1359 = vdwg.mxu0
        %v1360 = vmul.f32 %v1309, %v1309
        %v1361 = vmul.f32 %v1311, %v1311
        %v1362 = vmul.f32 %v1352, %v1352
        %v1363 = vmul.f32 %v1354, %v1354
        %v1364 = vmul.f32 %v1313, %v1313
        %v1365 = vmul.f32 %v1315, %v1315
        %v1366 = vmul.f32 %v1356, %v1356
        %v1367 = vmul.f32 %v1358, %v1358
        %v1368 = vmul.f32 %v1309, %v1360
        %v1369 = vmul.f32 %v1311, %v1361
        %v1370 = vmul.f32 %v1352, %v1362
        %v1371 = vmul.f32 %v1354, %v1363
        %v1372 = vmul.f32 %v1313, %v1364
        %v1373 = vmul.f32 %v1315, %v1365
        %v1374 = vmul.f32 %v1356, %v1366
        %v1375 = vmul.f32 %v1358, %v1367
        %v1376 = vmul.f32 %v1368, 0.044715
        %v1377 = vmul.f32 %v1369, 0.044715
        %v1378 = vmul.f32 %v1370, 0.044715
        %v1379 = vmul.f32 %v1371, 0.044715
        %v1380 = vmul.f32 %v1372, 0.044715
        %v1381 = vmul.f32 %v1373, 0.044715
        %v1382 = vmul.f32 %v1374, 0.044715
        %v1383 = vmul.f32 %v1375, 0.044715
        %v1384 = vadd.f32 %v1309, %v1376
        %v1385 = vadd.f32 %v1311, %v1377
        %v1386 = vadd.f32 %v1352, %v1378
        %v1387 = vadd.f32 %v1354, %v1379
        %v1388 = vadd.f32 %v1313, %v1380
        %v1389 = vadd.f32 %v1315, %v1381
        %v1390 = vadd.f32 %v1356, %v1382
        %v1391 = vadd.f32 %v1358, %v1383
        %v1392 = vmul.f32 %v1384, 0.7978846
        %v1393 = vmul.f32 %v1385, 0.7978846
        %v1394 = vmul.f32 %v1386, 0.7978846
        %v1395 = vmul.f32 %v1387, 0.7978846
        %v1396 = vmul.f32 %v1388, 0.7978846
        %v1397 = vmul.f32 %v1389, 0.7978846
        %v1398 = vmul.f32 %v1390, 0.7978846
        %v1399 = vmul.f32 %v1391, 0.7978846
        %v1400 = vtanh.pop %v1392
        %v1401 = vtanh.pop %v1393
        %v1402 = vtanh.pop %v1394
        %v1403 = vtanh.pop %v1395
        %v1404 = vtanh.pop %v1396
        %v1405 = vtanh.pop %v1397
        %v1406 = vtanh.pop %v1398
        %v1407 = vtanh.pop %v1399
        %v1408 = vadd.f32 %v1400, 1.0
        %v1409 = vadd.f32 %v1401, 1.0
        %v1410 = vadd.f32 %v1402, 1.0
        %v1411 = vadd.f32 %v1403, 1.0
        %v1412 = vadd.f32 %v1404, 1.0
        %v1413 = vadd.f32 %v1405, 1.0
        %v1414 = vadd.f32 %v1406, 1.0
        %v1415 = vadd.f32 %v1407, 1.0
        %v1416 = vmul.f32 %v1408, 0.5
        %v1417 = vmul.f32 %v1409, 0.5
        %v1418 = vmul.f32 %v1410, 0.5
        %v1419 = vmul.f32 %v1411, 0.5
        %v1420 = vmul.f32 %v1412, 0.5
        %v1421 = vmul.f32 %v1413, 0.5
        %v1422 = vmul.f32 %v1414, 0.5
        %v1423 = vmul.f32 %v1415, 0.5
        %v1424 = vmul.f32 %v1309, %v1416
        %v1425 = vmul.f32 %v1311, %v1417
        %v1426 = vmul.f32 %v1352, %v1418
        %v1427 = vmul.f32 %v1354, %v1419
        %v1428 = vmul.f32 %v1313, %v1420
        %v1429 = vmul.f32 %v1315, %v1421
        %v1430 = vmul.f32 %v1356, %v1422
        %v1431 = vmul.f32 %v1358, %v1423
        %v1432 = vpack.c.bf16 %v1428, %v1424
        %v1433 = vpack.c.bf16 %v1429, %v1425
        %v1434 = vpack.c.bf16 %v1430, %v1426
        %v1435 = vpack.c.bf16 %v1431, %v1427
        %v1436 = vld [vmem:[#allocation4] sm:$0xf]
        %v1437 = vld [vmem:[#allocation4 + $0x4] sm:$0xf]
        %v1438 = vld [vmem:[#allocation4 + $0x8] sm:$0xf]
        %v1439 = vld [vmem:[#allocation4 + $0xc] sm:$0xf]
        %v1440 = vld [vmem:[#allocation4 + $0x10] sm:$0xf]
        %v1441 = vld [vmem:[#allocation4 + $0x14] sm:$0xf]
        %v1442 = vld [vmem:[#allocation4 + $0x18] sm:$0xf]
        %v1443 = vld [vmem:[#allocation4 + $0x1c] sm:$0xf]
        %v1444 = vld [vmem:[#allocation4 + $0x20] sm:$0xf]
        %v1445 = vld [vmem:[#allocation4 + $0x24] sm:$0xf]
        %v1446 = vld [vmem:[#allocation4 + $0x28] sm:$0xf]
        %v1447 = vld [vmem:[#allocation4 + $0x2c] sm:$0xf]
        %v1448 = vld [vmem:[#allocation4 + $0x30] sm:$0xf]
        %v1449 = vld [vmem:[#allocation4 + $0x34] sm:$0xf]
        %v1450 = vld [vmem:[#allocation4 + $0x38] sm:$0xf]
        %v1451 = vld [vmem:[#allocation4 + $0x3c] sm:$0xf]
        %v1452 = vld [vmem:[#allocation4 + $0x40] sm:$0xf]
        %v1453 = vld [vmem:[#allocation4 + $0x44] sm:$0xf]
        %v1454 = vld [vmem:[#allocation4 + $0x48] sm:$0xf]
        %v1455 = vld [vmem:[#allocation4 + $0x4c] sm:$0xf]
        %v1456 = vld [vmem:[#allocation4 + $0x50] sm:$0xf]
        %v1457 = vld [vmem:[#allocation4 + $0x54] sm:$0xf]
        %v1458 = vld [vmem:[#allocation4 + $0x58] sm:$0xf]
        %v1459 = vld [vmem:[#allocation4 + $0x5c] sm:$0xf]
        %v1460 = vld [vmem:[#allocation4 + $0x60] sm:$0xf]
        %v1461 = vld [vmem:[#allocation4 + $0x64] sm:$0xf]
        %v1462 = vld [vmem:[#allocation4 + $0x68] sm:$0xf]
        %v1463 = vld [vmem:[#allocation4 + $0x6c] sm:$0xf]
        %v1464 = vld [vmem:[#allocation4 + $0x70] sm:$0xf]
        %v1465 = vld [vmem:[#allocation4 + $0x74] sm:$0xf]
        %v1466 = vld [vmem:[#allocation4 + $0x78] sm:$0xf]
        %v1467 = vld [vmem:[#allocation4 + $0x7c] sm:$0xf]
        %v1468 = vld [vmem:[#allocation4 + $0x80] sm:$0xf]
        %v1469 = vld [vmem:[#allocation4 + $0x84] sm:$0xf]
        %v1470 = vld [vmem:[#allocation4 + $0x88] sm:$0xf]
        %v1471 = vld [vmem:[#allocation4 + $0x8c] sm:$0xf]
        %v1472 = vld [vmem:[#allocation4 + $0x90] sm:$0xf]
        %v1473 = vld [vmem:[#allocation4 + $0x94] sm:$0xf]
        %v1474 = vld [vmem:[#allocation4 + $0x98] sm:$0xf]
        %v1475 = vld [vmem:[#allocation4 + $0x9c] sm:$0xf]
        %v1476 = vld [vmem:[#allocation4 + $0xa0] sm:$0xf]
        %v1477 = vld [vmem:[#allocation4 + $0xa4] sm:$0xf]
        %v1478 = vld [vmem:[#allocation4 + $0xa8] sm:$0xf]
        %v1479 = vld [vmem:[#allocation4 + $0xac] sm:$0xf]
        %v1480 = vld [vmem:[#allocation4 + $0xb0] sm:$0xf]
        %v1481 = vld [vmem:[#allocation4 + $0xb4] sm:$0xf]
        %v1482 = vld [vmem:[#allocation4 + $0xb8] sm:$0xf]
        %v1483 = vld [vmem:[#allocation4 + $0xbc] sm:$0xf]
        %v1484 = vld [vmem:[#allocation4 + $0xc0] sm:$0xf]
        %v1485 = vld [vmem:[#allocation4 + $0xc4] sm:$0xf]
        %v1486 = vld [vmem:[#allocation4 + $0xc8] sm:$0xf]
        %v1487 = vld [vmem:[#allocation4 + $0xcc] sm:$0xf]
        %v1488 = vld [vmem:[#allocation4 + $0xd0] sm:$0xf]
        %v1489 = vld [vmem:[#allocation4 + $0xd4] sm:$0xf]
        %v1490 = vld [vmem:[#allocation4 + $0xd8] sm:$0xf]
        %v1491 = vld [vmem:[#allocation4 + $0xdc] sm:$0xf]
        %v1492 = vld [vmem:[#allocation4 + $0xe0] sm:$0xf]
        %v1493 = vld [vmem:[#allocation4 + $0xe4] sm:$0xf]
        %v1494 = vld [vmem:[#allocation4 + $0xe8] sm:$0xf]
        %v1495 = vld [vmem:[#allocation4 + $0xec] sm:$0xf]
        %v1496 = vld [vmem:[#allocation4 + $0xf0] sm:$0xf]
        %v1497 = vld [vmem:[#allocation4 + $0xf4] sm:$0xf]
        %v1498 = vld [vmem:[#allocation4 + $0xf8] sm:$0xf]
        %v1499 = vld [vmem:[#allocation4 + $0xfc] sm:$0xf]
        %v1500 = vld [vmem:[%s11] sm:$0x1]
        %v1502 = vlaneseq
        %v1503 = vshrl.u32 %v1502, 7
        %v1504 = vsub.s32 0, %v1503
        %v1505 = vrot.slane %v1500, %v1504
        %v1571 = vunpack.c.l.b16 %v1436
        %v1572 = vunpack.c.l.b16 %v1437
        %v1573 = vunpack.c.l.b16 %v1438
        %v1574 = vunpack.c.l.b16 %v1439
        %v1575 = vunpack.c.l.b16 %v1440
        %v1576 = vunpack.c.l.b16 %v1441
        %v1577 = vunpack.c.l.b16 %v1442
        %v1578 = vunpack.c.l.b16 %v1443
        %v1579 = vunpack.c.l.b16 %v1444
        %v1580 = vunpack.c.l.b16 %v1445
        %v1581 = vunpack.c.l.b16 %v1446
        %v1582 = vunpack.c.l.b16 %v1447
        %v1583 = vunpack.c.l.b16 %v1448
        %v1584 = vunpack.c.l.b16 %v1449
        %v1585 = vunpack.c.l.b16 %v1450
        %v1586 = vunpack.c.l.b16 %v1451
        %v1587 = vunpack.c.l.b16 %v1452
        %v1588 = vunpack.c.l.b16 %v1453
        %v1589 = vunpack.c.l.b16 %v1454
        %v1590 = vunpack.c.l.b16 %v1455
        %v1591 = vunpack.c.l.b16 %v1456
        %v1592 = vunpack.c.l.b16 %v1457
        %v1593 = vunpack.c.l.b16 %v1458
        %v1594 = vunpack.c.l.b16 %v1459
        %v1595 = vunpack.c.l.b16 %v1460
        %v1596 = vunpack.c.l.b16 %v1461
        %v1597 = vunpack.c.l.b16 %v1462
        %v1598 = vunpack.c.l.b16 %v1463
        %v1599 = vunpack.c.l.b16 %v1464
        %v1600 = vunpack.c.l.b16 %v1465
        %v1601 = vunpack.c.l.b16 %v1466
        %v1602 = vunpack.c.l.b16 %v1467
        %v1603 = vunpack.c.l.b16 %v1468
        %v1604 = vunpack.c.l.b16 %v1469
        %v1605 = vunpack.c.l.b16 %v1470
        %v1606 = vunpack.c.l.b16 %v1471
        %v1607 = vunpack.c.l.b16 %v1472
        %v1608 = vunpack.c.l.b16 %v1473
        %v1609 = vunpack.c.l.b16 %v1474
        %v1610 = vunpack.c.l.b16 %v1475
        %v1611 = vunpack.c.l.b16 %v1476
        %v1612 = vunpack.c.l.b16 %v1477
        %v1613 = vunpack.c.l.b16 %v1478
        %v1614 = vunpack.c.l.b16 %v1479
        %v1615 = vunpack.c.l.b16 %v1480
        %v1616 = vunpack.c.l.b16 %v1481
        %v1617 = vunpack.c.l.b16 %v1482
        %v1618 = vunpack.c.l.b16 %v1483
        %v1619 = vunpack.c.l.b16 %v1484
        %v1620 = vunpack.c.l.b16 %v1485
        %v1621 = vunpack.c.l.b16 %v1486
        %v1622 = vunpack.c.l.b16 %v1487
        %v1623 = vunpack.c.l.b16 %v1488
        %v1624 = vunpack.c.l.b16 %v1489
        %v1625 = vunpack.c.l.b16 %v1490
        %v1626 = vunpack.c.l.b16 %v1491
        %v1627 = vunpack.c.l.b16 %v1492
        %v1628 = vunpack.c.l.b16 %v1493
        %v1629 = vunpack.c.l.b16 %v1494
        %v1630 = vunpack.c.l.b16 %v1495
        %v1631 = vunpack.c.l.b16 %v1496
        %v1632 = vunpack.c.l.b16 %v1497
        %v1633 = vunpack.c.l.b16 %v1498
        %v1634 = vunpack.c.l.b16 %v1499
        %v1635 = vpack.c.b16 %v1572, %v1571
        %v1636 = vpack.c.b16 %v1574, %v1573
        %v1637 = vpack.c.b16 %v1576, %v1575
        %v1638 = vpack.c.b16 %v1578, %v1577
        %v1639 = vpack.c.b16 %v1580, %v1579
        %v1640 = vpack.c.b16 %v1582, %v1581
        %v1641 = vpack.c.b16 %v1584, %v1583
        %v1642 = vpack.c.b16 %v1586, %v1585
        %v1643 = vpack.c.b16 %v1588, %v1587
        %v1644 = vpack.c.b16 %v1590, %v1589
        %v1645 = vpack.c.b16 %v1592, %v1591
        %v1646 = vpack.c.b16 %v1594, %v1593
        %v1647 = vpack.c.b16 %v1596, %v1595
        %v1648 = vpack.c.b16 %v1598, %v1597
        %v1649 = vpack.c.b16 %v1600, %v1599
        %v1650 = vpack.c.b16 %v1602, %v1601
        %v1651 = vpack.c.b16 %v1604, %v1603
        %v1652 = vpack.c.b16 %v1606, %v1605
        %v1653 = vpack.c.b16 %v1608, %v1607
        %v1654 = vpack.c.b16 %v1610, %v1609
        %v1655 = vpack.c.b16 %v1612, %v1611
        %v1656 = vpack.c.b16 %v1614, %v1613
        %v1657 = vpack.c.b16 %v1616, %v1615
        %v1658 = vpack.c.b16 %v1618, %v1617
        %v1659 = vpack.c.b16 %v1620, %v1619
        %v1660 = vpack.c.b16 %v1622, %v1621
        %v1661 = vpack.c.b16 %v1624, %v1623
        %v1662 = vpack.c.b16 %v1626, %v1625
        %v1663 = vpack.c.b16 %v1628, %v1627
        %v1664 = vpack.c.b16 %v1630, %v1629
        %v1665 = vpack.c.b16 %v1632, %v1631
        %v1666 = vpack.c.b16 %v1634, %v1633
        %1699 = vmatprep.subr.bf16.mxu0 0
        %1700 = vmatpush1.bf16.msra.mxu0 %v1642
        %1701 = vmatprep.subr.bf16.mxu0 0
        %1702 = vmatpush1.bf16.msra.mxu0 %v1641
        %1703 = vmatprep.subr.bf16.mxu0 0
        %1704 = vmatpush1.bf16.msra.mxu0 %v1640
        %1705 = vmatprep.subr.bf16.mxu0 0
        %1706 = vmatpush1.bf16.msra.mxu0 %v1639
        %1707 = vmatprep.subr.bf16.mxu0 0
        %1708 = vmatpush1.bf16.msra.mxu0 %v1638
        %1709 = vmatprep.subr.bf16.mxu0 0
        %1710 = vmatpush1.bf16.msra.mxu0 %v1637
        %1711 = vmatprep.subr.bf16.mxu0 0
        %1712 = vmatpush1.bf16.msra.mxu0 %v1636
        %1713 = vmatprep.subr.bf16.mxu0 0
        %1714 = vmatpush1.bf16.msra.mxu0 %v1635
        %1715 = vmatprep.subr.bf16.mxu0 0
        %1716 = vmatpush2.bf16.msra.mxu0 %v1650
        %1717 = vmatprep.subr.bf16.mxu0 0
        %1718 = vmatpush2.bf16.msra.mxu0 %v1649
        %1719 = vmatprep.subr.bf16.mxu0 0
        %1720 = vmatpush2.bf16.msra.mxu0 %v1648
        %1721 = vmatprep.subr.bf16.mxu0 0
        %1722 = vmatpush2.bf16.msra.mxu0 %v1647
        %1723 = vmatprep.subr.bf16.mxu0 0
        %1724 = vmatpush2.bf16.msra.mxu0 %v1646
        %1725 = vmatprep.subr.bf16.mxu0 0
        %1726 = vmatpush2.bf16.msra.mxu0 %v1645
        %1727 = vmatprep.subr.bf16.mxu0 0
        %1728 = vmatpush2.bf16.msra.mxu0 %v1644
        %1729 = vmatprep.subr.bf16.mxu0 0
        %1730 = vmatpush2.bf16.msra.mxu0 %v1643
        %1731 = vmatprep.mubr.bf16.mxu0 %v1433
        %1732 = vmatmul.mubr.bf16.gmra.mxu0 %v1432
        %v1733 = vpop.f32.mrf.mxu0
        %v1734 = vadd.f32 %v1505, %v1733
        %v1735 = vpop.f32.mrf.mxu0
        %v1736 = vpop.f32.mrf.mxu0
        %v1737 = vadd.f32 %v1505, %v1736
        %v1738 = vpop.f32.mrf.mxu0
        %1739 = vdwg.mxu0
        %1740 = vmatprep.subr.bf16.mxu0 0
        %1741 = vmatpush1.bf16.msra.mxu0 %v1658
        %1742 = vmatprep.subr.bf16.mxu0 0
        %1743 = vmatpush1.bf16.msra.mxu0 %v1657
        %1744 = vmatprep.subr.bf16.mxu0 0
        %1745 = vmatpush1.bf16.msra.mxu0 %v1656
        %1746 = vmatprep.subr.bf16.mxu0 0
        %1747 = vmatpush1.bf16.msra.mxu0 %v1655
        %1748 = vmatprep.subr.bf16.mxu0 0
        %1749 = vmatpush1.bf16.msra.mxu0 %v1654
        %1750 = vmatprep.subr.bf16.mxu0 0
        %1751 = vmatpush1.bf16.msra.mxu0 %v1653
        %1752 = vmatprep.subr.bf16.mxu0 0
        %1753 = vmatpush1.bf16.msra.mxu0 %v1652
        %1754 = vmatprep.subr.bf16.mxu0 0
        %1755 = vmatpush1.bf16.msra.mxu0 %v1651
        %1756 = vmatprep.subr.bf16.mxu0 0
        %1757 = vmatpush2.bf16.msra.mxu0 %v1666
        %1758 = vmatprep.subr.bf16.mxu0 0
        %1759 = vmatpush2.bf16.msra.mxu0 %v1665
        %1760 = vmatprep.subr.bf16.mxu0 0
        %1761 = vmatpush2.bf16.msra.mxu0 %v1664
        %1762 = vmatprep.subr.bf16.mxu0 0
        %1763 = vmatpush2.bf16.msra.mxu0 %v1663
        %1764 = vmatprep.subr.bf16.mxu0 0
        %1765 = vmatpush2.bf16.msra.mxu0 %v1662
        %1766 = vmatprep.subr.bf16.mxu0 0
        %1767 = vmatpush2.bf16.msra.mxu0 %v1661
        %1768 = vmatprep.subr.bf16.mxu0 0
        %1769 = vmatpush2.bf16.msra.mxu0 %v1660
        %1770 = vmatprep.subr.bf16.mxu0 0
        %1771 = vmatpush2.bf16.msra.mxu0 %v1659
        %1772 = vmatprep.mubr.bf16.mxu0 %v1435
        %1773 = vmatmul.mubr.bf16.gmra.mxu0 %v1434
        %v1774 = vpop.f32.mrf.mxu0
        %v1775 = vadd.f32 %v1734, %v1774
        %v1776 = vpop.f32.mrf.mxu0
        %v1777 = vpop.f32.mrf.mxu0
        %v1778 = vadd.f32 %v1737, %v1777
        %v1779 = vpop.f32.mrf.mxu0
        %1780 = vdwg.mxu0
        %v1781 = vadd.f32 %v1057, %v1775
        %v1782 = vadd.f32 %v1058, %v1778
        %v1783 = vld [vmem:[%s12] sm:$0x1]
        %v1784 = vld [vmem:[%s13] sm:$0x1]
        %1785 = vadd.xlane.f32.xlu0 %v1781
        %v1786 = vpop.xlane.xlu0 %1785
        %1787 = vadd.xlane.f32.xlu0 %v1782
        %v1788 = vpop.xlane.xlu0 %1787
        %v1789 = vmul.f32 %v1786, %v1024
        %v1790 = vmul.f32 %v1788, %v1024
        %v1791 = vsub.f32 %v1781, %v1789
        %v1792 = vsub.f32 %v1782, %v1790
        %v1793 = vmul.f32 %v1791, %v1791
        %v1794 = vmul.f32 %v1792, %v1792
        %1795 = vadd.xlane.f32.xlu0 %v1793
        %v1796 = vpop.xlane.xlu0 %1795
        %1797 = vadd.xlane.f32.xlu0 %v1794
        %v1798 = vpop.xlane.xlu0 %1797
        %v1799 = vmul.f32 %v1796, %v1024
        %v1800 = vmul.f32 %v1798, %v1024
        %v1801 = vadd.f32 %v1799, 1e-12
        %v1802 = vadd.f32 %v1800, 1e-12
        %v1803 = vrsqrt.pop %v1801
        %v1804 = vrsqrt.pop %v1802
        %v1805 = vmul.f32 %v1791, %v1803
        %v1806 = vmul.f32 %v1792, %v1804
        %v1808 = vlaneseq
        %v1809 = vshrl.u32 %v1808, 7
        %v1810 = vsub.s32 0, %v1809
        %v1811 = vrot.slane %v1783, %v1810
        %v1813 = vmul.f32 %v1805, %v1811
        %v1814 = vmul.f32 %v1806, %v1811
        %v1816 = vlaneseq
        %v1817 = vshrl.u32 %v1816, 7
        %v1818 = vsub.s32 0, %v1817
        %v1819 = vrot.slane %v1784, %v1818
        %v1821 = vadd.f32 %v1813, %v1819
        %v1822 = vadd.f32 %v1814, %v1819
        %v1823 = vpack.c.bf16 %v1822, %v1821
        %v1825 = vunpack.c.l.b16 %v1823
        %v1826 = vunpack.c.h.b16 %v1823
        %v1827 = vpack.c.b16 %v1825, %v1825
        %v1828 = vpack.c.b16 %v1826, %v1826
        %1831 = vst [vmem:[%s511] sm:$0xf] %v1827
        %1832 = vst [vmem:[%s511 + $0x4] sm:$0xf] %v1828
        %p1833 = scmp.lt.s32.totalorder %s27, 1
        %s1834 = scalar_select %p1833, %s27, 1
        %s1835 = smul.addr %s1834, 2
        %s1836 = smul.addr %s1835, 4
        %s1837 = scalar_lea.vmem %s14, %s1836
        // Predicated region
        $region85: #{bert_plus_mlp_forward.3} parent=75 // pred_check
          %p1838 = pneg %p349
        $region86: #{bert_plus_mlp_forward.3} parent=75 // pred_check_branch
          %1840 = sbr.rel (%p1838) target = $region88
        $region87: #{bert_plus_mlp_forward.3} parent=75 // pred_region
          _
        $region88: #{bert_plus_mlp_forward.3} parent=75 // pred_fallthru
          _
      $region76: #{bert_plus_mlp_forward.3} parent=5 // pred_fallthru
        _
      %p1841 = scmp.le.s32.totalorder 2, %s22
      // Predicated region
      $region89: #{bert_plus_mlp_forward.3} parent=5 // pred_check
        %p1842 = pneg %p1841
      $region90: #{bert_plus_mlp_forward.3} parent=5 // pred_check_branch
        %1844 = sbr.rel (%p1842) target = $region92
      $region91: #{bert_plus_mlp_forward.3} parent=5 // pred_region
        %s1845 = ssub.s32 %s22, 2
        // Predicated region
        $region93: #{bert_plus_mlp_forward.3} parent=91 // pred_check
          %p1846 = pneg %p355
        $region94: #{bert_plus_mlp_forward.3} parent=91 // pred_check_branch
          %1848 = sbr.rel (%p1846) target = $region96
        $region95: #{bert_plus_mlp_forward.3} parent=91 // pred_region
          %p1849 = scmp.lt.s32.totalorder %s28, 1
          %s1850 = scalar_select %p1849, %s28, 1
          %s1851 = smul.addr %s1850, 2
          %s1852 = smul.addr %s1851, 4
          %s1853 = scalar_lea.vmem %s14, %s1852
        $region96: #{bert_plus_mlp_forward.3} parent=91 // pred_fallthru
          _
      $region92: #{bert_plus_mlp_forward.3} parent=5 // pred_fallthru
        _
    $region6: #{bert_plus_mlp_forward.3} parent=1 // loop_footer
      %s26 = sadd.s32 1, %s22
    $region7: #{bert_plus_mlp_forward.3} parent=1 // loop_footer_branch
      %21 = sbr.rel target = $region3
    $region8: #{bert_plus_mlp_forward.3} parent=1 // loop_exit
      _
    %1854 = vsyncpa [#allocation3], 1
    %s1855 = scalar_lea.sflag [#allocation3], 1
    %1856 = vsyncpa %s1855, 1
    %1857 = vsyncpa [#allocation5], 1

// kernel: bert_plus_mlp_forward.4
$region0: #{bert_plus_mlp_forward.4}
  #allocation0 [shape = 'u32[]', space=smem, size = 0x4, offset = 0x4, fixed_abs, tag = 'smem constant byte address 0x4 - core index']
  #allocation1 [shape = 'u32[144,128]{1,0:T(1,128)}', space=vmem, size = 0x12000, scoped, tag = 'internal scratch']
  %s0 = inlined_call_operand.vmem [shape: bf16[2,16,128], index: 0, kind: input, shape index: {}]
  %s1 = inlined_call_operand.vmem [shape: f32[2,1,16], index: 1, kind: input, shape index: {}]
  %s2 = inlined_call_operand.vmem [shape: bf16[128,384], index: 2, kind: input, shape index: {}]
  %s3 = inlined_call_operand.vmem [shape: f32[1,384], index: 3, kind: input, shape index: {}]
  %s4 = inlined_call_operand.vmem [shape: bf16[128,128], index: 4, kind: input, shape index: {}]
  %s5 = inlined_call_operand.vmem [shape: f32[1,128], index: 5, kind: input, shape index: {}]
  %s6 = inlined_call_operand.vmem [shape: f32[1,128], index: 6, kind: input, shape index: {}]
  %s7 = inlined_call_operand.vmem [shape: f32[1,128], index: 7, kind: input, shape index: {}]
  %s8 = inlined_call_operand.vmem [shape: bf16[128,512], index: 8, kind: input, shape index: {}]
  %s9 = inlined_call_operand.vmem [shape: f32[1,512], index: 9, kind: input, shape index: {}]
  %s10 = inlined_call_operand.vmem [shape: bf16[512,128], index: 10, kind: input, shape index: {}]
  %s11 = inlined_call_operand.vmem [shape: f32[1,128], index: 11, kind: input, shape index: {}]
  %s12 = inlined_call_operand.vmem [shape: f32[1,128], index: 12, kind: input, shape index: {}]
  %s13 = inlined_call_operand.vmem [shape: f32[1,128], index: 13, kind: input, shape index: {}]
  %s14 = inlined_call_operand.vmem [shape: bf16[2,16,128], index: 14, kind: output, shape index: {}]
  %s15 = sld [smem:[#allocation0]]
  $region89: #{bert_plus_mlp_forward.4} parent=0
    _
  %s17 = ssub.s32 1, %s15
  %s18 = scalar_select 0, %s17, %s15
  loop: start=0, step=1, limit=4
  $region2: #{bert_plus_mlp_forward.4} parent=0 // loop_pre_header
    _
  $region3: #{bert_plus_mlp_forward.4} parent=0 // loop_header
    %s20 = sphi 0, %s24
    %p21 = scmp.ge.s32.totalorder %s20, 4
    %s30 = sphi 0, %s32
    %s33 = sphi 0, %s30
    %s34 = sphi 0, %s33
    %s50 = sphi 0, %s34
    %s56 = sphi 0, %s58
    %s59 = sphi 0, %s56
    %s60 = sphi 0, %s59
    %s76 = sphi 0, %s60
    %s80 = sphi 0, %s80
    %s82 = sphi 0, %s80
    %s83 = sphi 0, %s82
    %s97 = sphi 0, %s83
    %s101 = sphi 0, %s101
    %s103 = sphi 0, %s101
    %s104 = sphi 0, %s103
    %s118 = sphi 0, %s104
    %s122 = sphi 0, %s122
    %s124 = sphi 0, %s122
    %s125 = sphi 0, %s124
    %s139 = sphi 0, %s125
    %s143 = sphi 0, %s143
    %s145 = sphi 0, %s143
    %s146 = sphi 0, %s145
    %s160 = sphi 0, %s146
    %s164 = sphi 0, %s164
    %s166 = sphi 0, %s164
    %s167 = sphi 0, %s166
    %s181 = sphi 0, %s167
    %s185 = sphi 0, %s185
    %s187 = sphi 0, %s185
    %s188 = sphi 0, %s187
    %s202 = sphi 0, %s188
    %s206 = sphi 0, %s206
    %s208 = sphi 0, %s206
    %s209 = sphi 0, %s208
    %s223 = sphi 0, %s209
    %s227 = sphi 0, %s227
    %s229 = sphi 0, %s227
    %s230 = sphi 0, %s229
    %s244 = sphi 0, %s230
    %s248 = sphi 0, %s248
    %s250 = sphi 0, %s248
    %s251 = sphi 0, %s250
    %s265 = sphi 0, %s251
    %s269 = sphi 0, %s269
    %s271 = sphi 0, %s269
    %s272 = sphi 0, %s271
    %s286 = sphi 0, %s272
    %s290 = sphi 0, %s290
    %s292 = sphi 0, %s290
    %s293 = sphi 0, %s292
    %s307 = sphi 0, %s293
    %s311 = sphi 0, %s311
    %s313 = sphi 0, %s311
    %s314 = sphi 0, %s313
    %s328 = sphi 0, %s314
    %s334 = sphi 0, %s336
    %s337 = sphi 0, %s334
    %s338 = sphi 0, %s337
    %s354 = sphi 0, %s338
  $region4: #{bert_plus_mlp_forward.4} parent=0 // loop_header_branch
    %23 = sbr.rel (%p21) target = $region8
  $region5: #{bert_plus_mlp_forward.4} parent=0 // loop_body
    %s25 = ssub.s32 %s20, 1
    %s26 = ssub.s32 %s20, 2
    %s27 = sadd.s32 %s20, 1
    %s28 = ssub.s32 %s20, %s27
    %p29 = scmp.eq.s32.totalorder %s28, 0
    %s31 = sadd.s32 %s30, 1
    %s32 = scalar_select %p29, %s30, %s31
    %p35 = pneg %p29
    %p36 = scmp.eq.s32.totalorder %s20, 1
    %p37 = por %p35, %p36
    %p38 = scmp.ne.s32.totalorder %s30, %s33
    %p39 = scmp.eq.s32.totalorder %s20, 0
    %p40 = por %p38, %p39
    %p41 = scmp.ne.s32.totalorder %s30, %s33
    %p42 = scmp.eq.s32.totalorder %s25, 1
    %p43 = por %p41, %p42
    %p44 = scmp.ne.s32.totalorder %s33, %s34
    %p45 = scmp.eq.s32.totalorder %s25, 0
    %p46 = por %p44, %p45
    %p47 = scmp.ne.s32.totalorder %s33, %s34
    %p48 = scmp.eq.s32.totalorder %s26, 1
    %p49 = por %p47, %p48
    %p51 = scmp.ne.s32.totalorder %s34, %s50
    %p52 = scmp.eq.s32.totalorder %s26, 0
    %p53 = por %p51, %p52
    %s54 = ssub.s32 %s20, %s27
    %p55 = scmp.eq.s32.totalorder %s54, 0
    %s57 = sadd.s32 %s56, 1
    %s58 = scalar_select %p55, %s56, %s57
    %p61 = pneg %p55
    %p62 = scmp.eq.s32.totalorder %s20, 1
    %p63 = por %p61, %p62
    %p64 = scmp.ne.s32.totalorder %s56, %s59
    %p65 = scmp.eq.s32.totalorder %s20, 0
    %p66 = por %p64, %p65
    %p67 = scmp.ne.s32.totalorder %s56, %s59
    %p68 = scmp.eq.s32.totalorder %s25, 1
    %p69 = por %p67, %p68
    %p70 = scmp.ne.s32.totalorder %s59, %s60
    %p71 = scmp.eq.s32.totalorder %s25, 0
    %p72 = por %p70, %p71
    %p73 = scmp.ne.s32.totalorder %s59, %s60
    %p74 = scmp.eq.s32.totalorder %s26, 1
    %p75 = por %p73, %p74
    %p77 = scmp.ne.s32.totalorder %s60, %s76
    %p78 = scmp.eq.s32.totalorder %s26, 0
    %p79 = por %p77, %p78
    %s81 = sadd.s32 %s80, 1
    %p84 = scmp.eq.s32.totalorder %s20, 1
    %p85 = scmp.ne.s32.totalorder %s80, %s82
    %p86 = scmp.eq.s32.totalorder %s20, 0
    %p87 = por %p85, %p86
    %p88 = scmp.ne.s32.totalorder %s80, %s82
    %p89 = scmp.eq.s32.totalorder %s25, 1
    %p90 = por %p88, %p89
    %p91 = scmp.ne.s32.totalorder %s82, %s83
    %p92 = scmp.eq.s32.totalorder %s25, 0
    %p93 = por %p91, %p92
    %p94 = scmp.ne.s32.totalorder %s82, %s83
    %p95 = scmp.eq.s32.totalorder %s26, 1
    %p96 = por %p94, %p95
    %p98 = scmp.ne.s32.totalorder %s83, %s97
    %p99 = scmp.eq.s32.totalorder %s26, 0
    %p100 = por %p98, %p99
    %s102 = sadd.s32 %s101, 1
    %p105 = scmp.eq.s32.totalorder %s20, 1
    %p106 = scmp.ne.s32.totalorder %s101, %s103
    %p107 = scmp.eq.s32.totalorder %s20, 0
    %p108 = por %p106, %p107
    %p109 = scmp.ne.s32.totalorder %s101, %s103
    %p110 = scmp.eq.s32.totalorder %s25, 1
    %p111 = por %p109, %p110
    %p112 = scmp.ne.s32.totalorder %s103, %s104
    %p113 = scmp.eq.s32.totalorder %s25, 0
    %p114 = por %p112, %p113
    %p115 = scmp.ne.s32.totalorder %s103, %s104
    %p116 = scmp.eq.s32.totalorder %s26, 1
    %p117 = por %p115, %p116
    %p119 = scmp.ne.s32.totalorder %s104, %s118
    %p120 = scmp.eq.s32.totalorder %s26, 0
    %p121 = por %p119, %p120
    %s123 = sadd.s32 %s122, 1
    %p126 = scmp.eq.s32.totalorder %s20, 1
    %p127 = scmp.ne.s32.totalorder %s122, %s124
    %p128 = scmp.eq.s32.totalorder %s20, 0
    %p129 = por %p127, %p128
    %p130 = scmp.ne.s32.totalorder %s122, %s124
    %p131 = scmp.eq.s32.totalorder %s25, 1
    %p132 = por %p130, %p131
    %p133 = scmp.ne.s32.totalorder %s124, %s125
    %p134 = scmp.eq.s32.totalorder %s25, 0
    %p135 = por %p133, %p134
    %p136 = scmp.ne.s32.totalorder %s124, %s125
    %p137 = scmp.eq.s32.totalorder %s26, 1
    %p138 = por %p136, %p137
    %p140 = scmp.ne.s32.totalorder %s125, %s139
    %p141 = scmp.eq.s32.totalorder %s26, 0
    %p142 = por %p140, %p141
    %s144 = sadd.s32 %s143, 1
    %p147 = scmp.eq.s32.totalorder %s20, 1
    %p148 = scmp.ne.s32.totalorder %s143, %s145
    %p149 = scmp.eq.s32.totalorder %s20, 0
    %p150 = por %p148, %p149
    %p151 = scmp.ne.s32.totalorder %s143, %s145
    %p152 = scmp.eq.s32.totalorder %s25, 1
    %p153 = por %p151, %p152
    %p154 = scmp.ne.s32.totalorder %s145, %s146
    %p155 = scmp.eq.s32.totalorder %s25, 0
    %p156 = por %p154, %p155
    %p157 = scmp.ne.s32.totalorder %s145, %s146
    %p158 = scmp.eq.s32.totalorder %s26, 1
    %p159 = por %p157, %p158
    %p161 = scmp.ne.s32.totalorder %s146, %s160
    %p162 = scmp.eq.s32.totalorder %s26, 0
    %p163 = por %p161, %p162
    %s165 = sadd.s32 %s164, 1
    %p168 = scmp.eq.s32.totalorder %s20, 1
    %p169 = scmp.ne.s32.totalorder %s164, %s166
    %p170 = scmp.eq.s32.totalorder %s20, 0
    %p171 = por %p169, %p170
    %p172 = scmp.ne.s32.totalorder %s164, %s166
    %p173 = scmp.eq.s32.totalorder %s25, 1
    %p174 = por %p172, %p173
    %p175 = scmp.ne.s32.totalorder %s166, %s167
    %p176 = scmp.eq.s32.totalorder %s25, 0
    %p177 = por %p175, %p176
    %p178 = scmp.ne.s32.totalorder %s166, %s167
    %p179 = scmp.eq.s32.totalorder %s26, 1
    %p180 = por %p178, %p179
    %p182 = scmp.ne.s32.totalorder %s167, %s181
    %p183 = scmp.eq.s32.totalorder %s26, 0
    %p184 = por %p182, %p183
    %s186 = sadd.s32 %s185, 1
    %p189 = scmp.eq.s32.totalorder %s20, 1
    %p190 = scmp.ne.s32.totalorder %s185, %s187
    %p191 = scmp.eq.s32.totalorder %s20, 0
    %p192 = por %p190, %p191
    %p193 = scmp.ne.s32.totalorder %s185, %s187
    %p194 = scmp.eq.s32.totalorder %s25, 1
    %p195 = por %p193, %p194
    %p196 = scmp.ne.s32.totalorder %s187, %s188
    %p197 = scmp.eq.s32.totalorder %s25, 0
    %p198 = por %p196, %p197
    %p199 = scmp.ne.s32.totalorder %s187, %s188
    %p200 = scmp.eq.s32.totalorder %s26, 1
    %p201 = por %p199, %p200
    %p203 = scmp.ne.s32.totalorder %s188, %s202
    %p204 = scmp.eq.s32.totalorder %s26, 0
    %p205 = por %p203, %p204
    %s207 = sadd.s32 %s206, 1
    %p210 = scmp.eq.s32.totalorder %s20, 1
    %p211 = scmp.ne.s32.totalorder %s206, %s208
    %p212 = scmp.eq.s32.totalorder %s20, 0
    %p213 = por %p211, %p212
    %p214 = scmp.ne.s32.totalorder %s206, %s208
    %p215 = scmp.eq.s32.totalorder %s25, 1
    %p216 = por %p214, %p215
    %p217 = scmp.ne.s32.totalorder %s208, %s209
    %p218 = scmp.eq.s32.totalorder %s25, 0
    %p219 = por %p217, %p218
    %p220 = scmp.ne.s32.totalorder %s208, %s209
    %p221 = scmp.eq.s32.totalorder %s26, 1
    %p222 = por %p220, %p221
    %p224 = scmp.ne.s32.totalorder %s209, %s223
    %p225 = scmp.eq.s32.totalorder %s26, 0
    %p226 = por %p224, %p225
    %s228 = sadd.s32 %s227, 1
    %p231 = scmp.eq.s32.totalorder %s20, 1
    %p232 = scmp.ne.s32.totalorder %s227, %s229
    %p233 = scmp.eq.s32.totalorder %s20, 0
    %p234 = por %p232, %p233
    %p235 = scmp.ne.s32.totalorder %s227, %s229
    %p236 = scmp.eq.s32.totalorder %s25, 1
    %p237 = por %p235, %p236
    %p238 = scmp.ne.s32.totalorder %s229, %s230
    %p239 = scmp.eq.s32.totalorder %s25, 0
    %p240 = por %p238, %p239
    %p241 = scmp.ne.s32.totalorder %s229, %s230
    %p242 = scmp.eq.s32.totalorder %s26, 1
    %p243 = por %p241, %p242
    %p245 = scmp.ne.s32.totalorder %s230, %s244
    %p246 = scmp.eq.s32.totalorder %s26, 0
    %p247 = por %p245, %p246
    %s249 = sadd.s32 %s248, 1
    %p252 = scmp.eq.s32.totalorder %s20, 1
    %p253 = scmp.ne.s32.totalorder %s248, %s250
    %p254 = scmp.eq.s32.totalorder %s20, 0
    %p255 = por %p253, %p254
    %p256 = scmp.ne.s32.totalorder %s248, %s250
    %p257 = scmp.eq.s32.totalorder %s25, 1
    %p258 = por %p256, %p257
    %p259 = scmp.ne.s32.totalorder %s250, %s251
    %p260 = scmp.eq.s32.totalorder %s25, 0
    %p261 = por %p259, %p260
    %p262 = scmp.ne.s32.totalorder %s250, %s251
    %p263 = scmp.eq.s32.totalorder %s26, 1
    %p264 = por %p262, %p263
    %p266 = scmp.ne.s32.totalorder %s251, %s265
    %p267 = scmp.eq.s32.totalorder %s26, 0
    %p268 = por %p266, %p267
    %s270 = sadd.s32 %s269, 1
    %p273 = scmp.eq.s32.totalorder %s20, 1
    %p274 = scmp.ne.s32.totalorder %s269, %s271
    %p275 = scmp.eq.s32.totalorder %s20, 0
    %p276 = por %p274, %p275
    %p277 = scmp.ne.s32.totalorder %s269, %s271
    %p278 = scmp.eq.s32.totalorder %s25, 1
    %p279 = por %p277, %p278
    %p280 = scmp.ne.s32.totalorder %s271, %s272
    %p281 = scmp.eq.s32.totalorder %s25, 0
    %p282 = por %p280, %p281
    %p283 = scmp.ne.s32.totalorder %s271, %s272
    %p284 = scmp.eq.s32.totalorder %s26, 1
    %p285 = por %p283, %p284
    %p287 = scmp.ne.s32.totalorder %s272, %s286
    %p288 = scmp.eq.s32.totalorder %s26, 0
    %p289 = por %p287, %p288
    %s291 = sadd.s32 %s290, 1
    %p294 = scmp.eq.s32.totalorder %s20, 1
    %p295 = scmp.ne.s32.totalorder %s290, %s292
    %p296 = scmp.eq.s32.totalorder %s20, 0
    %p297 = por %p295, %p296
    %p298 = scmp.ne.s32.totalorder %s290, %s292
    %p299 = scmp.eq.s32.totalorder %s25, 1
    %p300 = por %p298, %p299
    %p301 = scmp.ne.s32.totalorder %s292, %s293
    %p302 = scmp.eq.s32.totalorder %s25, 0
    %p303 = por %p301, %p302
    %p304 = scmp.ne.s32.totalorder %s292, %s293
    %p305 = scmp.eq.s32.totalorder %s26, 1
    %p306 = por %p304, %p305
    %p308 = scmp.ne.s32.totalorder %s293, %s307
    %p309 = scmp.eq.s32.totalorder %s26, 0
    %p310 = por %p308, %p309
    %s312 = sadd.s32 %s311, 1
    %p315 = scmp.eq.s32.totalorder %s20, 1
    %p316 = scmp.ne.s32.totalorder %s311, %s313
    %p317 = scmp.eq.s32.totalorder %s20, 0
    %p318 = por %p316, %p317
    %p319 = scmp.ne.s32.totalorder %s311, %s313
    %p320 = scmp.eq.s32.totalorder %s25, 1
    %p321 = por %p319, %p320
    %p322 = scmp.ne.s32.totalorder %s313, %s314
    %p323 = scmp.eq.s32.totalorder %s25, 0
    %p324 = por %p322, %p323
    %p325 = scmp.ne.s32.totalorder %s313, %s314
    %p326 = scmp.eq.s32.totalorder %s26, 1
    %p327 = por %p325, %p326
    %p329 = scmp.ne.s32.totalorder %s314, %s328
    %p330 = scmp.eq.s32.totalorder %s26, 0
    %p331 = por %p329, %p330
    %s332 = ssub.s32 %s20, %s27
    %p333 = scmp.eq.s32.totalorder %s332, 0
    %s335 = sadd.s32 %s334, 1
    %s336 = scalar_select %p333, %s334, %s335
    %p339 = pneg %p333
    %p340 = scmp.eq.s32.totalorder %s20, 1
    %p341 = por %p339, %p340
    %p342 = scmp.ne.s32.totalorder %s334, %s337
    %p343 = scmp.eq.s32.totalorder %s20, 0
    %p344 = por %p342, %p343
    %p345 = scmp.ne.s32.totalorder %s334, %s337
    %p346 = scmp.eq.s32.totalorder %s25, 1
    %p347 = por %p345, %p346
    %p348 = scmp.ne.s32.totalorder %s337, %s338
    %p349 = scmp.eq.s32.totalorder %s25, 0
    %p350 = por %p348, %p349
    %p351 = scmp.ne.s32.totalorder %s337, %s338
    %p352 = scmp.eq.s32.totalorder %s26, 1
    %p353 = por %p351, %p352
    %p355 = scmp.ne.s32.totalorder %s338, %s354
    %p356 = scmp.eq.s32.totalorder %s26, 0
    %p357 = por %p355, %p356
    %p358 = scmp.le.s32.totalorder 1, %s20
    %p359 = scmp.lt.s32.totalorder %s20, 3
    %p360 = pnand %p358, %p359
    %p361 = pneg %p360
    // Predicated region
    $region9: #{bert_plus_mlp_forward.4} parent=5 // pred_check
      _
    $region10: #{bert_plus_mlp_forward.4} parent=5 // pred_check_branch
      %363 = sbr.rel (%p360) target = $region12
    $region11: #{bert_plus_mlp_forward.4} parent=5 // pred_region
      %s364 = ssub.s32 %s20, 1
      // Predicated region
      $region13: #{bert_plus_mlp_forward.4} parent=11 // pred_check
        %p365 = pneg %p93
      $region14: #{bert_plus_mlp_forward.4} parent=11 // pred_check_branch
        %367 = sbr.rel (%p365) target = $region16
      $region15: #{bert_plus_mlp_forward.4} parent=11 // pred_region
        _
      $region16: #{bert_plus_mlp_forward.4} parent=11 // pred_fallthru
        _
      // Predicated region
      $region17: #{bert_plus_mlp_forward.4} parent=11 // pred_check
        %p368 = pneg %p114
      $region18: #{bert_plus_mlp_forward.4} parent=11 // pred_check_branch
        %370 = sbr.rel (%p368) target = $region20
      $region19: #{bert_plus_mlp_forward.4} parent=11 // pred_region
        _
      $region20: #{bert_plus_mlp_forward.4} parent=11 // pred_fallthru
        _
      // Predicated region
      $region21: #{bert_plus_mlp_forward.4} parent=11 // pred_check
        %p371 = pneg %p135
      $region22: #{bert_plus_mlp_forward.4} parent=11 // pred_check_branch
        %373 = sbr.rel (%p371) target = $region24
      $region23: #{bert_plus_mlp_forward.4} parent=11 // pred_region
        _
      $region24: #{bert_plus_mlp_forward.4} parent=11 // pred_fallthru
        _
      // Predicated region
      $region25: #{bert_plus_mlp_forward.4} parent=11 // pred_check
        %p374 = pneg %p156
      $region26: #{bert_plus_mlp_forward.4} parent=11 // pred_check_branch
        %376 = sbr.rel (%p374) target = $region28
      $region27: #{bert_plus_mlp_forward.4} parent=11 // pred_region
        _
      $region28: #{bert_plus_mlp_forward.4} parent=11 // pred_fallthru
        _
      // Predicated region
      $region29: #{bert_plus_mlp_forward.4} parent=11 // pred_check
        %p377 = pneg %p177
      $region30: #{bert_plus_mlp_forward.4} parent=11 // pred_check_branch
        %379 = sbr.rel (%p377) target = $region32
      $region31: #{bert_plus_mlp_forward.4} parent=11 // pred_region
        _
      $region32: #{bert_plus_mlp_forward.4} parent=11 // pred_fallthru
        _
      // Predicated region
      $region33: #{bert_plus_mlp_forward.4} parent=11 // pred_check
        %p380 = pneg %p198
      $region34: #{bert_plus_mlp_forward.4} parent=11 // pred_check_branch
        %382 = sbr.rel (%p380) target = $region36
      $region35: #{bert_plus_mlp_forward.4} parent=11 // pred_region
        _
      $region36: #{bert_plus_mlp_forward.4} parent=11 // pred_fallthru
        _
      // Predicated region
      $region37: #{bert_plus_mlp_forward.4} parent=11 // pred_check
        %p383 = pneg %p219
      $region38: #{bert_plus_mlp_forward.4} parent=11 // pred_check_branch
        %385 = sbr.rel (%p383) target = $region40
      $region39: #{bert_plus_mlp_forward.4} parent=11 // pred_region
        _
      $region40: #{bert_plus_mlp_forward.4} parent=11 // pred_fallthru
        _
      // Predicated region
      $region41: #{bert_plus_mlp_forward.4} parent=11 // pred_check
        %p386 = pneg %p240
      $region42: #{bert_plus_mlp_forward.4} parent=11 // pred_check_branch
        %388 = sbr.rel (%p386) target = $region44
      $region43: #{bert_plus_mlp_forward.4} parent=11 // pred_region
        _
      $region44: #{bert_plus_mlp_forward.4} parent=11 // pred_fallthru
        _
      // Predicated region
      $region45: #{bert_plus_mlp_forward.4} parent=11 // pred_check
        %p389 = pneg %p261
      $region46: #{bert_plus_mlp_forward.4} parent=11 // pred_check_branch
        %391 = sbr.rel (%p389) target = $region48
      $region47: #{bert_plus_mlp_forward.4} parent=11 // pred_region
        _
      $region48: #{bert_plus_mlp_forward.4} parent=11 // pred_fallthru
        _
      // Predicated region
      $region49: #{bert_plus_mlp_forward.4} parent=11 // pred_check
        %p392 = pneg %p282
      $region50: #{bert_plus_mlp_forward.4} parent=11 // pred_check_branch
        %394 = sbr.rel (%p392) target = $region52
      $region51: #{bert_plus_mlp_forward.4} parent=11 // pred_region
        _
      $region52: #{bert_plus_mlp_forward.4} parent=11 // pred_fallthru
        _
      // Predicated region
      $region53: #{bert_plus_mlp_forward.4} parent=11 // pred_check
        %p395 = pneg %p303
      $region54: #{bert_plus_mlp_forward.4} parent=11 // pred_check_branch
        %397 = sbr.rel (%p395) target = $region56
      $region55: #{bert_plus_mlp_forward.4} parent=11 // pred_region
        _
      $region56: #{bert_plus_mlp_forward.4} parent=11 // pred_fallthru
        _
      // Predicated region
      $region57: #{bert_plus_mlp_forward.4} parent=11 // pred_check
        %p398 = pneg %p324
      $region58: #{bert_plus_mlp_forward.4} parent=11 // pred_check_branch
        %400 = sbr.rel (%p398) target = $region60
      $region59: #{bert_plus_mlp_forward.4} parent=11 // pred_region
        _
      $region60: #{bert_plus_mlp_forward.4} parent=11 // pred_fallthru
        _
    $region12: #{bert_plus_mlp_forward.4} parent=5 // pred_fallthru
      _
    %p401 = scmp.lt.s32.totalorder %s20, 2
    // Predicated region
    $region61: #{bert_plus_mlp_forward.4} parent=5 // pred_check
      %p402 = pneg %p401
    $region62: #{bert_plus_mlp_forward.4} parent=5 // pred_check_branch
      %404 = sbr.rel (%p402) target = $region64
    $region63: #{bert_plus_mlp_forward.4} parent=5 // pred_region
      // Predicated region
      $region65: #{bert_plus_mlp_forward.4} parent=63 // pred_check
        %p405 = pneg %p40
      $region66: #{bert_plus_mlp_forward.4} parent=63 // pred_check_branch
        %407 = sbr.rel (%p405) target = $region68
      $region67: #{bert_plus_mlp_forward.4} parent=63 // pred_region
        %p408 = scmp.lt.s32.totalorder %s20, 1
        %s409 = scalar_select %p408, %s20, 1
        %s410 = smul.addr %s409, 2
        %s411 = smul.addr %s410, 4
        %s412 = scalar_lea.vmem %s0, %s411
      $region68: #{bert_plus_mlp_forward.4} parent=63 // pred_fallthru
        _
      // Predicated region
      $region69: #{bert_plus_mlp_forward.4} parent=63 // pred_check
        %p413 = pneg %p66
      $region70: #{bert_plus_mlp_forward.4} parent=63 // pred_check_branch
        %415 = sbr.rel (%p413) target = $region72
      $region71: #{bert_plus_mlp_forward.4} parent=63 // pred_region
        %p416 = scmp.lt.s32.totalorder %s20, 1
        %s417 = scalar_select %p416, %s20, 1
        %s418 = scalar_lea.vmem %s1, %s417
      $region72: #{bert_plus_mlp_forward.4} parent=63 // pred_fallthru
        _
    $region64: #{bert_plus_mlp_forward.4} parent=5 // pred_fallthru
      _
    %p419 = scmp.le.s32.totalorder 1, %s20
    %p420 = scmp.lt.s32.totalorder %s20, 3
    %p421 = pnand %p419, %p420
    %p422 = pneg %p421
    // Predicated region
    $region73: #{bert_plus_mlp_forward.4} parent=5 // pred_check
      _
    $region74: #{bert_plus_mlp_forward.4} parent=5 // pred_check_branch
      %424 = sbr.rel (%p421) target = $region76
    $region75: #{bert_plus_mlp_forward.4} parent=5 // pred_region
      %s425 = ssub.s32 %s20, 1
      %p426 = scmp.lt.s32.totalorder %s25, 1
      %s427 = scalar_select %p426, %s25, 1
      %s428 = smul.addr %s427, 2
      %s429 = smul.addr %s428, 4
      %s430 = scalar_lea.vmem %s0, %s429
      %p431 = pneg %p46
      %p432 = pneg %p43
      %p433 = scmp.lt.s32.totalorder %s25, 1
      %s434 = scalar_select %p433, %s25, 1
      %s435 = scalar_lea.vmem %s1, %s434
      %p436 = pneg %p72
      %p437 = pneg %p69
      %p438 = pneg %p93
      %p439 = pneg %p90
      %p440 = pneg %p114
      %p441 = pneg %p111
      %p442 = pneg %p135
      %p443 = pneg %p132
      %p444 = pneg %p156
      %p445 = pneg %p153
      %p446 = pneg %p177
      %p447 = pneg %p174
      %p448 = pneg %p198
      %p449 = pneg %p195
      %p450 = pneg %p219
      %p451 = pneg %p216
      %p452 = pneg %p240
      %p453 = pneg %p237
      %p454 = pneg %p261
      %p455 = pneg %p258
      %p456 = pneg %p282
      %p457 = pneg %p279
      %p458 = pneg %p303
      %p459 = pneg %p300
      %p460 = pneg %p324
      %p461 = pneg %p321
      %p462 = pneg %p350
      %p463 = pneg %p347
      %p464 = scmp.lt.s32.totalorder %s25, 1
      %s465 = scalar_select %p464, %s25, 1
      %s466 = smul.addr %s465, 2
      %s467 = smul.addr %s466, 4
      %s468 = scalar_lea.vmem %s14, %s467
      %p469 = scmp.lt.s32.totalorder %s25, 1
      %s470 = scalar_select %p469, %s25, 1
      %s471 = smul.addr %s470, 2
      %s472 = smul.addr %s471, 4
      %s473 = scalar_lea.vmem %s0, %s472
      %p474 = scmp.lt.s32.totalorder %s25, 1
      %s475 = scalar_select %p474, %s25, 1
      %s476 = scalar_lea.vmem %s1, %s475
      %p477 = scmp.lt.s32.totalorder %s25, 1
      %s478 = scalar_select %p477, %s25, 1
      %s479 = smul.addr %s478, 2
      %s480 = smul.addr %s479, 4
      %s481 = scalar_lea.vmem %s14, %s480
      %v483 = vld [vmem:[%s473] sm:$0xf]
      %v484 = vld [vmem:[%s473 + $0x4] sm:$0xf]
      %v485 = vld [vmem:[%s2] sm:$0xff]
      %v486 = vld [vmem:[%s2 + $0x8] sm:$0xf]
      %v487 = vld [vmem:[%s2 + $0xc] sm:$0xff]
      %v488 = vld [vmem:[%s2 + $0x14] sm:$0xf]
      %v489 = vld [vmem:[%s2 + $0x18] sm:$0xff]
      %v490 = vld [vmem:[%s2 + $0x20] sm:$0xf]
      %v491 = vld [vmem:[%s2 + $0x24] sm:$0xff]
      %v492 = vld [vmem:[%s2 + $0x2c] sm:$0xf]
      %v493 = vld [vmem:[%s2 + $0x30] sm:$0xff]
      %v494 = vld [vmem:[%s2 + $0x38] sm:$0xf]
      %v495 = vld [vmem:[%s2 + $0x3c] sm:$0xff]
      %v496 = vld [vmem:[%s2 + $0x44] sm:$0xf]
      %v497 = vld [vmem:[%s2 + $0x48] sm:$0xff]
      %v498 = vld [vmem:[%s2 + $0x50] sm:$0xf]
      %v499 = vld [vmem:[%s2 + $0x54] sm:$0xff]
      %v500 = vld [vmem:[%s2 + $0x5c] sm:$0xf]
      %v501 = vld [vmem:[%s2 + $0x60] sm:$0xff]
      %v502 = vld [vmem:[%s2 + $0x68] sm:$0xf]
      %v503 = vld [vmem:[%s2 + $0x6c] sm:$0xff]
      %v504 = vld [vmem:[%s2 + $0x74] sm:$0xf]
      %v505 = vld [vmem:[%s2 + $0x78] sm:$0xff]
      %v506 = vld [vmem:[%s2 + $0x80] sm:$0xf]
      %v507 = vld [vmem:[%s2 + $0x84] sm:$0xff]
      %v508 = vld [vmem:[%s2 + $0x8c] sm:$0xf]
      %v509 = vld [vmem:[%s2 + $0x90] sm:$0xff]
      %v510 = vld [vmem:[%s2 + $0x98] sm:$0xf]
      %v511 = vld [vmem:[%s2 + $0x9c] sm:$0xff]
      %v512 = vld [vmem:[%s2 + $0xa4] sm:$0xf]
      %v513 = vld [vmem:[%s2 + $0xa8] sm:$0xff]
      %v514 = vld [vmem:[%s2 + $0xb0] sm:$0xf]
      %v515 = vld [vmem:[%s2 + $0xb4] sm:$0xff]
      %v516 = vld [vmem:[%s2 + $0xbc] sm:$0xf]
      %v517 = vld [vmem:[%s3] sm:$0x7]
      %v519 = vlaneseq
      %v520 = vshrl.u32 %v519, 7
      %v521 = vsub.s32 0, %v520
      %v522 = vrot.slane %v517, %v521
      %v523 = vlaneseq
      %v524 = vshrl.u32 %v523, 7
      %v525 = vsub.s32 1, %v524
      %v526 = vrot.slane %v517, %v525
      %v527 = vlaneseq
      %v528 = vshrl.u32 %v527, 7
      %v529 = vsub.s32 2, %v528
      %v530 = vrot.slane %v517, %v529
      %v536 = vunpack.c.l.b16 %v483
      %v537 = vunpack.c.l.b16 %v484
      %v538 = vpack.c.b16 %v537, %v536
      %v572 = vunpack.c.l.b16 %v485
      %v573 = vunpack.c.h.b16 %v485
      %v574 = vunpack.c.l.b16 %v486
      %v575 = vunpack.c.l.b16 %v487
      %v576 = vunpack.c.h.b16 %v487
      %v577 = vunpack.c.l.b16 %v488
      %v578 = vunpack.c.l.b16 %v489
      %v579 = vunpack.c.h.b16 %v489
      %v580 = vunpack.c.l.b16 %v490
      %v581 = vunpack.c.l.b16 %v491
      %v582 = vunpack.c.h.b16 %v491
      %v583 = vunpack.c.l.b16 %v492
      %v584 = vunpack.c.l.b16 %v493
      %v585 = vunpack.c.h.b16 %v493
      %v586 = vunpack.c.l.b16 %v494
      %v587 = vunpack.c.l.b16 %v495
      %v588 = vunpack.c.h.b16 %v495
      %v589 = vunpack.c.l.b16 %v496
      %v590 = vunpack.c.l.b16 %v497
      %v591 = vunpack.c.h.b16 %v497
      %v592 = vunpack.c.l.b16 %v498
      %v593 = vunpack.c.l.b16 %v499
      %v594 = vunpack.c.h.b16 %v499
      %v595 = vunpack.c.l.b16 %v500
      %v596 = vunpack.c.l.b16 %v501
      %v597 = vunpack.c.h.b16 %v501
      %v598 = vunpack.c.l.b16 %v502
      %v599 = vunpack.c.l.b16 %v503
      %v600 = vunpack.c.h.b16 %v503
      %v601 = vunpack.c.l.b16 %v504
      %v602 = vunpack.c.l.b16 %v505
      %v603 = vunpack.c.h.b16 %v505
      %v604 = vunpack.c.l.b16 %v506
      %v605 = vunpack.c.l.b16 %v507
      %v606 = vunpack.c.h.b16 %v507
      %v607 = vunpack.c.l.b16 %v508
      %v608 = vunpack.c.l.b16 %v509
      %v609 = vunpack.c.h.b16 %v509
      %v610 = vunpack.c.l.b16 %v510
      %v611 = vunpack.c.l.b16 %v511
      %v612 = vunpack.c.h.b16 %v511
      %v613 = vunpack.c.l.b16 %v512
      %v614 = vunpack.c.l.b16 %v513
      %v615 = vunpack.c.h.b16 %v513
      %v616 = vunpack.c.l.b16 %v514
      %v617 = vunpack.c.l.b16 %v515
      %v618 = vunpack.c.h.b16 %v515
      %v619 = vunpack.c.l.b16 %v516
      %v620 = vpack.c.b16 %v575, %v572
      %v621 = vpack.c.b16 %v576, %v573
      %v622 = vpack.c.b16 %v577, %v574
      %v623 = vpack.c.b16 %v581, %v578
      %v624 = vpack.c.b16 %v582, %v579
      %v625 = vpack.c.b16 %v583, %v580
      %v626 = vpack.c.b16 %v587, %v584
      %v627 = vpack.c.b16 %v588, %v585
      %v628 = vpack.c.b16 %v589, %v586
      %v629 = vpack.c.b16 %v593, %v590
      %v630 = vpack.c.b16 %v594, %v591
      %v631 = vpack.c.b16 %v595, %v592
      %v632 = vpack.c.b16 %v599, %v596
      %v633 = vpack.c.b16 %v600, %v597
      %v634 = vpack.c.b16 %v601, %v598
      %v635 = vpack.c.b16 %v605, %v602
      %v636 = vpack.c.b16 %v606, %v603
      %v637 = vpack.c.b16 %v607, %v604
      %v638 = vpack.c.b16 %v611, %v608
      %v639 = vpack.c.b16 %v612, %v609
      %v640 = vpack.c.b16 %v613, %v610
      %v641 = vpack.c.b16 %v617, %v614
      %v642 = vpack.c.b16 %v618, %v615
      %v643 = vpack.c.b16 %v619, %v616
      %668 = vmatprep.subr.bf16.mxu0 %v642
      %669 = vmatpush1.bf16.msra.mxu0 %v641
      %670 = vmatprep.subr.bf16.mxu0 %v639
      %671 = vmatpush1.bf16.msra.mxu0 %v638
      %672 = vmatprep.subr.bf16.mxu0 %v636
      %673 = vmatpush1.bf16.msra.mxu0 %v635
      %674 = vmatprep.subr.bf16.mxu0 %v633
      %675 = vmatpush1.bf16.msra.mxu0 %v632
      %676 = vmatprep.subr.bf16.mxu0 %v630
      %677 = vmatpush1.bf16.msra.mxu0 %v629
      %678 = vmatprep.subr.bf16.mxu0 %v627
      %679 = vmatpush1.bf16.msra.mxu0 %v626
      %680 = vmatprep.subr.bf16.mxu0 %v624
      %681 = vmatpush1.bf16.msra.mxu0 %v623
      %682 = vmatprep.subr.bf16.mxu0 %v621
      %683 = vmatpush1.bf16.msra.mxu0 %v620
      %684 = vmatprep.subr.bf16.mxu0 0
      %685 = vmatpush2.bf16.msra.mxu0 0
      %686 = vmatprep.subr.bf16.mxu0 0
      %687 = vmatpush2.bf16.msra.mxu0 0
      %688 = vmatprep.subr.bf16.mxu0 0
      %689 = vmatpush2.bf16.msra.mxu0 0
      %690 = vmatprep.subr.bf16.mxu0 0
      %691 = vmatpush2.bf16.msra.mxu0 0
      %692 = vmatprep.subr.bf16.mxu0 0
      %693 = vmatpush2.bf16.msra.mxu0 0
      %694 = vmatprep.subr.bf16.mxu0 0
      %695 = vmatpush2.bf16.msra.mxu0 0
      %696 = vmatprep.subr.bf16.mxu0 0
      %697 = vmatpush2.bf16.msra.mxu0 0
      %698 = vmatprep.subr.bf16.mxu0 0
      %699 = vmatpush2.bf16.msra.mxu0 0
      %700 = vmatprep.mubr.bf16.mxu0 0
      %701 = vmatmul.mubr.bf16.gmra.mxu0 %v538
      %v702 = vpop.f32.mrf.mxu0
      %v703 = vadd.f32 %v522, %v702
      %v704 = vpop.f32.mrf.mxu0
      %v705 = vadd.f32 %v526, %v704
      %v706 = vpop.f32.mrf.mxu0
      %v707 = vadd.f32 %v522, %v706
      %v708 = vpop.f32.mrf.mxu0
      %v709 = vadd.f32 %v526, %v708
      %710 = vdwg.mxu0
      %711 = vmatprep.subr.bf16.mxu0 0
      %712 = vmatpush1.bf16.msra.mxu0 %v643
      %713 = vmatprep.subr.bf16.mxu0 0
      %714 = vmatpush1.bf16.msra.mxu0 %v640
      %715 = vmatprep.subr.bf16.mxu0 0
      %716 = vmatpush1.bf16.msra.mxu0 %v637
      %717 = vmatprep.subr.bf16.mxu0 0
      %718 = vmatpush1.bf16.msra.mxu0 %v634
      %719 = vmatprep.subr.bf16.mxu0 0
      %720 = vmatpush1.bf16.msra.mxu0 %v631
      %721 = vmatprep.subr.bf16.mxu0 0
      %722 = vmatpush1.bf16.msra.mxu0 %v628
      %723 = vmatprep.subr.bf16.mxu0 0
      %724 = vmatpush1.bf16.msra.mxu0 %v625
      %725 = vmatprep.subr.bf16.mxu0 0
      %726 = vmatpush1.bf16.msra.mxu0 %v622
      %727 = vmatprep.subr.bf16.mxu0 0
      %728 = vmatpush2.bf16.msra.mxu0 0
      %729 = vmatprep.subr.bf16.mxu0 0
      %730 = vmatpush2.bf16.msra.mxu0 0
      %731 = vmatprep.subr.bf16.mxu0 0
      %732 = vmatpush2.bf16.msra.mxu0 0
      %733 = vmatprep.subr.bf16.mxu0 0
      %734 = vmatpush2.bf16.msra.mxu0 0
      %735 = vmatprep.subr.bf16.mxu0 0
      %736 = vmatpush2.bf16.msra.mxu0 0
      %737 = vmatprep.subr.bf16.mxu0 0
      %738 = vmatpush2.bf16.msra.mxu0 0
      %739 = vmatprep.subr.bf16.mxu0 0
      %740 = vmatpush2.bf16.msra.mxu0 0
      %741 = vmatprep.subr.bf16.mxu0 0
      %742 = vmatpush2.bf16.msra.mxu0 0
      %743 = vmatprep.mubr.bf16.mxu0 0
      %744 = vmatmul.mubr.bf16.gmra.mxu0 %v538
      %v745 = vpop.f32.mrf.mxu0
      %v746 = vadd.f32 %v530, %v745
      %v747 = vpop.f32.mrf.mxu0
      %v748 = vpop.f32.mrf.mxu0
      %v749 = vadd.f32 %v530, %v748
      %v750 = vpop.f32.mrf.mxu0
      %751 = vdwg.mxu0
      %v752 = vpack.c.bf16 %v707, %v703
      %v753 = vpack.c.bf16 %v709, %v705
      %v754 = vpack.c.bf16 %v749, %v746
      %v755 = vld [vmem:[%s476] sm:$0x1]
      %v757 = vlaneseq
      %v758 = vshrl.u32 %v757, 7
      %v759 = vsub.s32 0, %v758
      %v760 = vrot.slane %v755, %v759
      %762 = vmatprep.subr.bf16.mxu0 0
      %763 = vmatpush1.bf16.xpose.msra.mxu0 0
      %764 = vmatprep.subr.bf16.mxu0 0
      %765 = vmatpush1.bf16.xpose.msra.mxu0 0
      %766 = vmatprep.subr.bf16.mxu0 0
      %767 = vmatpush1.bf16.xpose.msra.mxu0 0
      %768 = vmatprep.subr.bf16.mxu0 0
      %769 = vmatpush1.bf16.xpose.msra.mxu0 0
      %770 = vmatprep.subr.bf16.mxu0 0
      %771 = vmatpush1.bf16.xpose.msra.mxu0 0
      %772 = vmatprep.subr.bf16.mxu0 0
      %773 = vmatpush1.bf16.xpose.msra.mxu0 0
      %774 = vmatprep.subr.bf16.mxu0 0
      %775 = vmatpush1.bf16.xpose.msra.mxu0 0
      %776 = vmatprep.subr.bf16.mxu0 0
      %777 = vmatpush1.bf16.xpose.msra.mxu0 %v753
      %778 = vmatprep.subr.bf16.mxu0 0
      %779 = vmatpush2.bf16.xpose.msra.mxu0 0
      %780 = vmatprep.subr.bf16.mxu0 0
      %781 = vmatpush2.bf16.xpose.msra.mxu0 0
      %782 = vmatprep.subr.bf16.mxu0 0
      %783 = vmatpush2.bf16.xpose.msra.mxu0 0
      %784 = vmatprep.subr.bf16.mxu0 0
      %785 = vmatpush2.bf16.xpose.msra.mxu0 0
      %786 = vmatprep.subr.bf16.mxu0 0
      %787 = vmatpush2.bf16.xpose.msra.mxu0 0
      %788 = vmatprep.subr.bf16.mxu0 0
      %789 = vmatpush2.bf16.xpose.msra.mxu0 0
      %790 = vmatprep.subr.bf16.mxu0 0
      %791 = vmatpush2.bf16.xpose.msra.mxu0 0
      %792 = vmatprep.subr.bf16.mxu0 0
      %793 = vmatpush2.bf16.xpose.msra.mxu0 0
      %794 = vmatprep.mubr.bf16.mxu0 0
      %795 = vmatmul.mubr.bf16.gmra.mxu0 %v752
      %v796 = vpop.f32.mrf.mxu0
      %v797 = vadd.f32 %v760, %v796
      %v798 = vpop.f32.mrf.mxu0
      %v799 = vpop.f32.mrf.mxu0
      %v800 = vadd.f32 %v760, %v799
      %v801 = vpop.f32.mrf.mxu0
      %802 = vdwg.mxu0
      %vm803 = vcmask 130048
      %v804 = vsel %vm803, %v797, -inf
      %805 = vmax.xlane.f32.xlu0 %v804
      %v806 = vpop.xlane.xlu0 %805
      %v807 = vsel %vm803, %v800, -inf
      %808 = vmax.xlane.f32.xlu0 %v807
      %v809 = vpop.xlane.xlu0 %808
      %v810 = vsub.f32 %v797, %v806
      %v811 = vsub.f32 %v800, %v809
      %v812 = vmul.f32 %v810, 1.442695
      %v813 = vpow.pop %v812
      %v814 = vmul.f32 %v811, 1.442695
      %v815 = vpow.pop %v814
      %v816 = vsel %vm803, %v813, 0.0
      %817 = vadd.xlane.f32.xlu0 %v816
      %v818 = vpop.xlane.xlu0 %817
      %v819 = vsel %vm803, %v815, 0.0
      %820 = vadd.xlane.f32.xlu0 %v819
      %v821 = vpop.xlane.xlu0 %820
      %v822 = vrcp.pop %v818
      %v823 = vmul.f32 %v813, %v822
      %v824 = vrcp.pop %v821
      %v825 = vmul.f32 %v815, %v824
      %v826 = vpack.c.bf16 %v825, %v823
      %v828 = vsel %vm803, %v826, 0
      %830 = vmatprep.subr.bf16.mxu0 0
      %831 = vmatpush1.bf16.msra.mxu0 0
      %832 = vmatprep.subr.bf16.mxu0 0
      %833 = vmatpush1.bf16.msra.mxu0 0
      %834 = vmatprep.subr.bf16.mxu0 0
      %835 = vmatpush1.bf16.msra.mxu0 0
      %836 = vmatprep.subr.bf16.mxu0 0
      %837 = vmatpush1.bf16.msra.mxu0 0
      %838 = vmatprep.subr.bf16.mxu0 0
      %839 = vmatpush1.bf16.msra.mxu0 0
      %840 = vmatprep.subr.bf16.mxu0 0
      %841 = vmatpush1.bf16.msra.mxu0 0
      %842 = vmatprep.subr.bf16.mxu0 0
      %843 = vmatpush1.bf16.msra.mxu0 0
      %844 = vmatprep.subr.bf16.mxu0 0
      %845 = vmatpush1.bf16.msra.mxu0 %v754
      %846 = vmatprep.subr.bf16.mxu0 0
      %847 = vmatpush2.bf16.msra.mxu0 0
      %848 = vmatprep.subr.bf16.mxu0 0
      %849 = vmatpush2.bf16.msra.mxu0 0
      %850 = vmatprep.subr.bf16.mxu0 0
      %851 = vmatpush2.bf16.msra.mxu0 0
      %852 = vmatprep.subr.bf16.mxu0 0
      %853 = vmatpush2.bf16.msra.mxu0 0
      %854 = vmatprep.subr.bf16.mxu0 0
      %855 = vmatpush2.bf16.msra.mxu0 0
      %856 = vmatprep.subr.bf16.mxu0 0
      %857 = vmatpush2.bf16.msra.mxu0 0
      %858 = vmatprep.subr.bf16.mxu0 0
      %859 = vmatpush2.bf16.msra.mxu0 0
      %860 = vmatprep.subr.bf16.mxu0 0
      %861 = vmatpush2.bf16.msra.mxu0 0
      %862 = vmatprep.mubr.bf16.mxu0 0
      %863 = vmatmul.mubr.bf16.gmra.mxu0 %v828
      %v864 = vpop.f32.mrf.mxu0
      %v865 = vadd.f32 0.0, %v864
      %v866 = vpop.f32.mrf.mxu0
      %v867 = vpop.f32.mrf.mxu0
      %v868 = vadd.f32 0.0, %v867
      %v869 = vpop.f32.mrf.mxu0
      %870 = vdwg.mxu0
      %v871 = vpack.c.bf16 %v868, %v865
      %v872 = vld [vmem:[%s4] sm:$0xf]
      %v873 = vld [vmem:[%s4 + $0x4] sm:$0xf]
      %v874 = vld [vmem:[%s4 + $0x8] sm:$0xf]
      %v875 = vld [vmem:[%s4 + $0xc] sm:$0xf]
      %v876 = vld [vmem:[%s4 + $0x10] sm:$0xf]
      %v877 = vld [vmem:[%s4 + $0x14] sm:$0xf]
      %v878 = vld [vmem:[%s4 + $0x18] sm:$0xf]
      %v879 = vld [vmem:[%s4 + $0x1c] sm:$0xf]
      %v880 = vld [vmem:[%s4 + $0x20] sm:$0xf]
      %v881 = vld [vmem:[%s4 + $0x24] sm:$0xf]
      %v882 = vld [vmem:[%s4 + $0x28] sm:$0xf]
      %v883 = vld [vmem:[%s4 + $0x2c] sm:$0xf]
      %v884 = vld [vmem:[%s4 + $0x30] sm:$0xf]
      %v885 = vld [vmem:[%s4 + $0x34] sm:$0xf]
      %v886 = vld [vmem:[%s4 + $0x38] sm:$0xf]
      %v887 = vld [vmem:[%s4 + $0x3c] sm:$0xf]
      %v888 = vld [vmem:[%s5] sm:$0x1]
      %v890 = vlaneseq
      %v891 = vshrl.u32 %v890, 7
      %v892 = vsub.s32 0, %v891
      %v893 = vrot.slane %v888, %v892
      %v911 = vunpack.c.l.b16 %v872
      %v912 = vunpack.c.l.b16 %v873
      %v913 = vunpack.c.l.b16 %v874
      %v914 = vunpack.c.l.b16 %v875
      %v915 = vunpack.c.l.b16 %v876
      %v916 = vunpack.c.l.b16 %v877
      %v917 = vunpack.c.l.b16 %v878
      %v918 = vunpack.c.l.b16 %v879
      %v919 = vunpack.c.l.b16 %v880
      %v920 = vunpack.c.l.b16 %v881
      %v921 = vunpack.c.l.b16 %v882
      %v922 = vunpack.c.l.b16 %v883
      %v923 = vunpack.c.l.b16 %v884
      %v924 = vunpack.c.l.b16 %v885
      %v925 = vunpack.c.l.b16 %v886
      %v926 = vunpack.c.l.b16 %v887
      %v927 = vpack.c.b16 %v912, %v911
      %v928 = vpack.c.b16 %v914, %v913
      %v929 = vpack.c.b16 %v916, %v915
      %v930 = vpack.c.b16 %v918, %v917
      %v931 = vpack.c.b16 %v920, %v919
      %v932 = vpack.c.b16 %v922, %v921
      %v933 = vpack.c.b16 %v924, %v923
      %v934 = vpack.c.b16 %v926, %v925
      %943 = vmatprep.subr.bf16.mxu0 0
      %944 = vmatpush1.bf16.msra.mxu0 %v934
      %945 = vmatprep.subr.bf16.mxu0 0
      %946 = vmatpush1.bf16.msra.mxu0 %v933
      %947 = vmatprep.subr.bf16.mxu0 0
      %948 = vmatpush1.bf16.msra.mxu0 %v932
      %949 = vmatprep.subr.bf16.mxu0 0
      %950 = vmatpush1.bf16.msra.mxu0 %v931
      %951 = vmatprep.subr.bf16.mxu0 0
      %952 = vmatpush1.bf16.msra.mxu0 %v930
      %953 = vmatprep.subr.bf16.mxu0 0
      %954 = vmatpush1.bf16.msra.mxu0 %v929
      %955 = vmatprep.subr.bf16.mxu0 0
      %956 = vmatpush1.bf16.msra.mxu0 %v928
      %957 = vmatprep.subr.bf16.mxu0 0
      %958 = vmatpush1.bf16.msra.mxu0 %v927
      %959 = vmatprep.subr.bf16.mxu0 0
      %960 = vmatpush2.bf16.msra.mxu0 0
      %961 = vmatprep.subr.bf16.mxu0 0
      %962 = vmatpush2.bf16.msra.mxu0 0
      %963 = vmatprep.subr.bf16.mxu0 0
      %964 = vmatpush2.bf16.msra.mxu0 0
      %965 = vmatprep.subr.bf16.mxu0 0
      %966 = vmatpush2.bf16.msra.mxu0 0
      %967 = vmatprep.subr.bf16.mxu0 0
      %968 = vmatpush2.bf16.msra.mxu0 0
      %969 = vmatprep.subr.bf16.mxu0 0
      %970 = vmatpush2.bf16.msra.mxu0 0
      %971 = vmatprep.subr.bf16.mxu0 0
      %972 = vmatpush2.bf16.msra.mxu0 0
      %973 = vmatprep.subr.bf16.mxu0 0
      %974 = vmatpush2.bf16.msra.mxu0 0
      %975 = vmatprep.mubr.bf16.mxu0 0
      %976 = vmatmul.mubr.bf16.gmra.mxu0 %v871
      %v977 = vpop.f32.mrf.mxu0
      %v978 = vadd.f32 %v893, %v977
      %v979 = vpop.f32.mrf.mxu0
      %v980 = vpop.f32.mrf.mxu0
      %v981 = vadd.f32 %v893, %v980
      %v982 = vpop.f32.mrf.mxu0
      %983 = vdwg.mxu0
      %v984 = vunpack.c.l.bf16 %v483
      %v985 = vunpack.c.l.bf16 %v484
      %v986 = vadd.f32 %v984, %v978
      %v987 = vadd.f32 %v985, %v981
      %v988 = vld [vmem:[%s6] sm:$0x1]
      %v989 = vld [vmem:[%s7] sm:$0x1]
      %990 = vadd.xlane.f32.xlu0 %v986
      %v991 = vpop.xlane.xlu0 %990
      %992 = vadd.xlane.f32.xlu0 %v987
      %v993 = vpop.xlane.xlu0 %992
      %v994 = vrcp.pop 128.0
      %v995 = vmul.f32 %v991, %v994
      %v996 = vmul.f32 %v993, %v994
      %v997 = vsub.f32 %v986, %v995
      %v998 = vsub.f32 %v987, %v996
      %v999 = vmul.f32 %v997, %v997
      %v1000 = vmul.f32 %v998, %v998
      %1001 = vadd.xlane.f32.xlu0 %v999
      %v1002 = vpop.xlane.xlu0 %1001
      %1003 = vadd.xlane.f32.xlu0 %v1000
      %v1004 = vpop.xlane.xlu0 %1003
      %v1005 = vmul.f32 %v1002, %v994
      %v1006 = vmul.f32 %v1004, %v994
      %v1007 = vadd.f32 %v1005, 1e-12
      %v1008 = vadd.f32 %v1006, 1e-12
      %v1009 = vrsqrt.pop %v1007
      %v1010 = vrsqrt.pop %v1008
      %v1011 = vmul.f32 %v997, %v1009
      %v1012 = vmul.f32 %v998, %v1010
      %v1014 = vlaneseq
      %v1015 = vshrl.u32 %v1014, 7
      %v1016 = vsub.s32 0, %v1015
      %v1017 = vrot.slane %v988, %v1016
      %v1019 = vmul.f32 %v1011, %v1017
      %v1020 = vmul.f32 %v1012, %v1017
      %v1022 = vlaneseq
      %v1023 = vshrl.u32 %v1022, 7
      %v1024 = vsub.s32 0, %v1023
      %v1025 = vrot.slane %v989, %v1024
      %v1027 = vadd.f32 %v1019, %v1025
      %v1028 = vadd.f32 %v1020, %v1025
      %v1029 = vpack.c.bf16 %v1028, %v1027
      %v1030 = vld [vmem:[%s8] sm:$0xff]
      %v1031 = vld [vmem:[%s8 + $0x8] sm:$0xff]
      %v1032 = vld [vmem:[%s8 + $0x10] sm:$0xff]
      %v1033 = vld [vmem:[%s8 + $0x18] sm:$0xff]
      %v1034 = vld [vmem:[%s8 + $0x20] sm:$0xff]
      %v1035 = vld [vmem:[%s8 + $0x28] sm:$0xff]
      %v1036 = vld [vmem:[%s8 + $0x30] sm:$0xff]
      %v1037 = vld [vmem:[%s8 + $0x38] sm:$0xff]
      %v1038 = vld [vmem:[%s8 + $0x40] sm:$0xff]
      %v1039 = vld [vmem:[%s8 + $0x48] sm:$0xff]
      %v1040 = vld [vmem:[%s8 + $0x50] sm:$0xff]
      %v1041 = vld [vmem:[%s8 + $0x58] sm:$0xff]
      %v1042 = vld [vmem:[%s8 + $0x60] sm:$0xff]
      %v1043 = vld [vmem:[%s8 + $0x68] sm:$0xff]
      %v1044 = vld [vmem:[%s8 + $0x70] sm:$0xff]
      %v1045 = vld [vmem:[%s8 + $0x78] sm:$0xff]
      %v1046 = vld [vmem:[%s8 + $0x80] sm:$0xff]
      %v1047 = vld [vmem:[%s8 + $0x88] sm:$0xff]
      %v1048 = vld [vmem:[%s8 + $0x90] sm:$0xff]
      %v1049 = vld [vmem:[%s8 + $0x98] sm:$0xff]
      %v1050 = vld [vmem:[%s8 + $0xa0] sm:$0xff]
      %v1051 = vld [vmem:[%s8 + $0xa8] sm:$0xff]
      %v1052 = vld [vmem:[%s8 + $0xb0] sm:$0xff]
      %v1053 = vld [vmem:[%s8 + $0xb8] sm:$0xff]
      %v1054 = vld [vmem:[%s8 + $0xc0] sm:$0xff]
      %v1055 = vld [vmem:[%s8 + $0xc8] sm:$0xff]
      %v1056 = vld [vmem:[%s8 + $0xd0] sm:$0xff]
      %v1057 = vld [vmem:[%s8 + $0xd8] sm:$0xff]
      %v1058 = vld [vmem:[%s8 + $0xe0] sm:$0xff]
      %v1059 = vld [vmem:[%s8 + $0xe8] sm:$0xff]
      %v1060 = vld [vmem:[%s8 + $0xf0] sm:$0xff]
      %v1061 = vld [vmem:[%s8 + $0xf8] sm:$0xff]
      %v1062 = vld [vmem:[%s9] sm:$0xf]
      %v1064 = vlaneseq
      %v1065 = vshrl.u32 %v1064, 7
      %v1066 = vsub.s32 0, %v1065
      %v1067 = vrot.slane %v1062, %v1066
      %v1068 = vlaneseq
      %v1069 = vshrl.u32 %v1068, 7
      %v1070 = vsub.s32 1, %v1069
      %v1071 = vrot.slane %v1062, %v1070
      %v1072 = vlaneseq
      %v1073 = vshrl.u32 %v1072, 7
      %v1074 = vsub.s32 2, %v1073
      %v1075 = vrot.slane %v1062, %v1074
      %v1076 = vlaneseq
      %v1077 = vshrl.u32 %v1076, 7
      %v1078 = vsub.s32 3, %v1077
      %v1079 = vrot.slane %v1062, %v1078
      %v1116 = vunpack.c.l.b16 %v1030
      %v1117 = vunpack.c.h.b16 %v1030
      %v1118 = vunpack.c.l.b16 %v1031
      %v1119 = vunpack.c.h.b16 %v1031
      %v1120 = vunpack.c.l.b16 %v1032
      %v1121 = vunpack.c.h.b16 %v1032
      %v1122 = vunpack.c.l.b16 %v1033
      %v1123 = vunpack.c.h.b16 %v1033
      %v1124 = vunpack.c.l.b16 %v1034
      %v1125 = vunpack.c.h.b16 %v1034
      %v1126 = vunpack.c.l.b16 %v1035
      %v1127 = vunpack.c.h.b16 %v1035
      %v1128 = vunpack.c.l.b16 %v1036
      %v1129 = vunpack.c.h.b16 %v1036
      %v1130 = vunpack.c.l.b16 %v1037
      %v1131 = vunpack.c.h.b16 %v1037
      %v1132 = vunpack.c.l.b16 %v1038
      %v1133 = vunpack.c.h.b16 %v1038
      %v1134 = vunpack.c.l.b16 %v1039
      %v1135 = vunpack.c.h.b16 %v1039
      %v1136 = vunpack.c.l.b16 %v1040
      %v1137 = vunpack.c.h.b16 %v1040
      %v1138 = vunpack.c.l.b16 %v1041
      %v1139 = vunpack.c.h.b16 %v1041
      %v1140 = vunpack.c.l.b16 %v1042
      %v1141 = vunpack.c.h.b16 %v1042
      %v1142 = vunpack.c.l.b16 %v1043
      %v1143 = vunpack.c.h.b16 %v1043
      %v1144 = vunpack.c.l.b16 %v1044
      %v1145 = vunpack.c.h.b16 %v1044
      %v1146 = vunpack.c.l.b16 %v1045
      %v1147 = vunpack.c.h.b16 %v1045
      %v1148 = vunpack.c.l.b16 %v1046
      %v1149 = vunpack.c.h.b16 %v1046
      %v1150 = vunpack.c.l.b16 %v1047
      %v1151 = vunpack.c.h.b16 %v1047
      %v1152 = vunpack.c.l.b16 %v1048
      %v1153 = vunpack.c.h.b16 %v1048
      %v1154 = vunpack.c.l.b16 %v1049
      %v1155 = vunpack.c.h.b16 %v1049
      %v1156 = vunpack.c.l.b16 %v1050
      %v1157 = vunpack.c.h.b16 %v1050
      %v1158 = vunpack.c.l.b16 %v1051
      %v1159 = vunpack.c.h.b16 %v1051
      %v1160 = vunpack.c.l.b16 %v1052
      %v1161 = vunpack.c.h.b16 %v1052
      %v1162 = vunpack.c.l.b16 %v1053
      %v1163 = vunpack.c.h.b16 %v1053
      %v1164 = vunpack.c.l.b16 %v1054
      %v1165 = vunpack.c.h.b16 %v1054
      %v1166 = vunpack.c.l.b16 %v1055
      %v1167 = vunpack.c.h.b16 %v1055
      %v1168 = vunpack.c.l.b16 %v1056
      %v1169 = vunpack.c.h.b16 %v1056
      %v1170 = vunpack.c.l.b16 %v1057
      %v1171 = vunpack.c.h.b16 %v1057
      %v1172 = vunpack.c.l.b16 %v1058
      %v1173 = vunpack.c.h.b16 %v1058
      %v1174 = vunpack.c.l.b16 %v1059
      %v1175 = vunpack.c.h.b16 %v1059
      %v1176 = vunpack.c.l.b16 %v1060
      %v1177 = vunpack.c.h.b16 %v1060
      %v1178 = vunpack.c.l.b16 %v1061
      %v1179 = vunpack.c.h.b16 %v1061
      %v1180 = vpack.c.b16 %v1120, %v1116
      %v1181 = vpack.c.b16 %v1121, %v1117
      %v1182 = vpack.c.b16 %v1122, %v1118
      %v1183 = vpack.c.b16 %v1123, %v1119
      %v1184 = vpack.c.b16 %v1128, %v1124
      %v1185 = vpack.c.b16 %v1129, %v1125
      %v1186 = vpack.c.b16 %v1130, %v1126
      %v1187 = vpack.c.b16 %v1131, %v1127
      %v1188 = vpack.c.b16 %v1136, %v1132
      %v1189 = vpack.c.b16 %v1137, %v1133
      %v1190 = vpack.c.b16 %v1138, %v1134
      %v1191 = vpack.c.b16 %v1139, %v1135
      %v1192 = vpack.c.b16 %v1144, %v1140
      %v1193 = vpack.c.b16 %v1145, %v1141
      %v1194 = vpack.c.b16 %v1146, %v1142
      %v1195 = vpack.c.b16 %v1147, %v1143
      %v1196 = vpack.c.b16 %v1152, %v1148
      %v1197 = vpack.c.b16 %v1153, %v1149
      %v1198 = vpack.c.b16 %v1154, %v1150
      %v1199 = vpack.c.b16 %v1155, %v1151
      %v1200 = vpack.c.b16 %v1160, %v1156
      %v1201 = vpack.c.b16 %v1161, %v1157
      %v1202 = vpack.c.b16 %v1162, %v1158
      %v1203 = vpack.c.b16 %v1163, %v1159
      %v1204 = vpack.c.b16 %v1168, %v1164
      %v1205 = vpack.c.b16 %v1169, %v1165
      %v1206 = vpack.c.b16 %v1170, %v1166
      %v1207 = vpack.c.b16 %v1171, %v1167
      %v1208 = vpack.c.b16 %v1176, %v1172
      %v1209 = vpack.c.b16 %v1177, %v1173
      %v1210 = vpack.c.b16 %v1178, %v1174
      %v1211 = vpack.c.b16 %v1179, %v1175
      %1244 = vmatprep.subr.bf16.mxu0 %v1209
      %1245 = vmatpush1.bf16.msra.mxu0 %v1208
      %1246 = vmatprep.subr.bf16.mxu0 %v1205
      %1247 = vmatpush1.bf16.msra.mxu0 %v1204
      %1248 = vmatprep.subr.bf16.mxu0 %v1201
      %1249 = vmatpush1.bf16.msra.mxu0 %v1200
      %1250 = vmatprep.subr.bf16.mxu0 %v1197
      %1251 = vmatpush1.bf16.msra.mxu0 %v1196
      %1252 = vmatprep.subr.bf16.mxu0 %v1193
      %1253 = vmatpush1.bf16.msra.mxu0 %v1192
      %1254 = vmatprep.subr.bf16.mxu0 %v1189
      %1255 = vmatpush1.bf16.msra.mxu0 %v1188
      %1256 = vmatprep.subr.bf16.mxu0 %v1185
      %1257 = vmatpush1.bf16.msra.mxu0 %v1184
      %1258 = vmatprep.subr.bf16.mxu0 %v1181
      %1259 = vmatpush1.bf16.msra.mxu0 %v1180
      %1260 = vmatprep.subr.bf16.mxu0 0
      %1261 = vmatpush2.bf16.msra.mxu0 0
      %1262 = vmatprep.subr.bf16.mxu0 0
      %1263 = vmatpush2.bf16.msra.mxu0 0
      %1264 = vmatprep.subr.bf16.mxu0 0
      %1265 = vmatpush2.bf16.msra.mxu0 0
      %1266 = vmatprep.subr.bf16.mxu0 0
      %1267 = vmatpush2.bf16.msra.mxu0 0
      %1268 = vmatprep.subr.bf16.mxu0 0
      %1269 = vmatpush2.bf16.msra.mxu0 0
      %1270 = vmatprep.subr.bf16.mxu0 0
      %1271 = vmatpush2.bf16.msra.mxu0 0
      %1272 = vmatprep.subr.bf16.mxu0 0
      %1273 = vmatpush2.bf16.msra.mxu0 0
      %1274 = vmatprep.subr.bf16.mxu0 0
      %1275 = vmatpush2.bf16.msra.mxu0 0
      %1276 = vmatprep.mubr.bf16.mxu0 0
      %1277 = vmatmul.mubr.bf16.gmra.mxu0 %v1029
      %v1278 = vpop.f32.mrf.mxu0
      %v1279 = vadd.f32 %v1067, %v1278
      %v1280 = vpop.f32.mrf.mxu0
      %v1281 = vadd.f32 %v1071, %v1280
      %v1282 = vpop.f32.mrf.mxu0
      %v1283 = vadd.f32 %v1067, %v1282
      %v1284 = vpop.f32.mrf.mxu0
      %v1285 = vadd.f32 %v1071, %v1284
      %1286 = vdwg.mxu0
      %1287 = vmatprep.subr.bf16.mxu0 %v1211
      %1288 = vmatpush1.bf16.msra.mxu0 %v1210
      %1289 = vmatprep.subr.bf16.mxu0 %v1207
      %1290 = vmatpush1.bf16.msra.mxu0 %v1206
      %1291 = vmatprep.subr.bf16.mxu0 %v1203
      %1292 = vmatpush1.bf16.msra.mxu0 %v1202
      %1293 = vmatprep.subr.bf16.mxu0 %v1199
      %1294 = vmatpush1.bf16.msra.mxu0 %v1198
      %1295 = vmatprep.subr.bf16.mxu0 %v1195
      %1296 = vmatpush1.bf16.msra.mxu0 %v1194
      %1297 = vmatprep.subr.bf16.mxu0 %v1191
      %1298 = vmatpush1.bf16.msra.mxu0 %v1190
      %1299 = vmatprep.subr.bf16.mxu0 %v1187
      %1300 = vmatpush1.bf16.msra.mxu0 %v1186
      %1301 = vmatprep.subr.bf16.mxu0 %v1183
      %1302 = vmatpush1.bf16.msra.mxu0 %v1182
      %1303 = vmatprep.subr.bf16.mxu0 0
      %1304 = vmatpush2.bf16.msra.mxu0 0
      %1305 = vmatprep.subr.bf16.mxu0 0
      %1306 = vmatpush2.bf16.msra.mxu0 0
      %1307 = vmatprep.subr.bf16.mxu0 0
      %1308 = vmatpush2.bf16.msra.mxu0 0
      %1309 = vmatprep.subr.bf16.mxu0 0
      %1310 = vmatpush2.bf16.msra.mxu0 0
      %1311 = vmatprep.subr.bf16.mxu0 0
      %1312 = vmatpush2.bf16.msra.mxu0 0
      %1313 = vmatprep.subr.bf16.mxu0 0
      %1314 = vmatpush2.bf16.msra.mxu0 0
      %1315 = vmatprep.subr.bf16.mxu0 0
      %1316 = vmatpush2.bf16.msra.mxu0 0
      %1317 = vmatprep.subr.bf16.mxu0 0
      %1318 = vmatpush2.bf16.msra.mxu0 0
      %1319 = vmatprep.mubr.bf16.mxu0 0
      %1320 = vmatmul.mubr.bf16.gmra.mxu0 %v1029
      %v1321 = vpop.f32.mrf.mxu0
      %v1322 = vadd.f32 %v1075, %v1321
      %v1323 = vpop.f32.mrf.mxu0
      %v1324 = vadd.f32 %v1079, %v1323
      %v1325 = vpop.f32.mrf.mxu0
      %v1326 = vadd.f32 %v1075, %v1325
      %v1327 = vpop.f32.mrf.mxu0
      %v1328 = vadd.f32 %v1079, %v1327
      %1329 = vdwg.mxu0
      %v1330 = vmul.f32 %v1279, %v1279
      %v1331 = vmul.f32 %v1281, %v1281
      %v1332 = vmul.f32 %v1322, %v1322
      %v1333 = vmul.f32 %v1324, %v1324
      %v1334 = vmul.f32 %v1283, %v1283
      %v1335 = vmul.f32 %v1285, %v1285
      %v1336 = vmul.f32 %v1326, %v1326
      %v1337 = vmul.f32 %v1328, %v1328
      %v1338 = vmul.f32 %v1279, %v1330
      %v1339 = vmul.f32 %v1281, %v1331
      %v1340 = vmul.f32 %v1322, %v1332
      %v1341 = vmul.f32 %v1324, %v1333
      %v1342 = vmul.f32 %v1283, %v1334
      %v1343 = vmul.f32 %v1285, %v1335
      %v1344 = vmul.f32 %v1326, %v1336
      %v1345 = vmul.f32 %v1328, %v1337
      %v1346 = vmul.f32 %v1338, 0.044715
      %v1347 = vmul.f32 %v1339, 0.044715
      %v1348 = vmul.f32 %v1340, 0.044715
      %v1349 = vmul.f32 %v1341, 0.044715
      %v1350 = vmul.f32 %v1342, 0.044715
      %v1351 = vmul.f32 %v1343, 0.044715
      %v1352 = vmul.f32 %v1344, 0.044715
      %v1353 = vmul.f32 %v1345, 0.044715
      %v1354 = vadd.f32 %v1279, %v1346
      %v1355 = vadd.f32 %v1281, %v1347
      %v1356 = vadd.f32 %v1322, %v1348
      %v1357 = vadd.f32 %v1324, %v1349
      %v1358 = vadd.f32 %v1283, %v1350
      %v1359 = vadd.f32 %v1285, %v1351
      %v1360 = vadd.f32 %v1326, %v1352
      %v1361 = vadd.f32 %v1328, %v1353
      %v1362 = vmul.f32 %v1354, 0.7978846
      %v1363 = vmul.f32 %v1355, 0.7978846
      %v1364 = vmul.f32 %v1356, 0.7978846
      %v1365 = vmul.f32 %v1357, 0.7978846
      %v1366 = vmul.f32 %v1358, 0.7978846
      %v1367 = vmul.f32 %v1359, 0.7978846
      %v1368 = vmul.f32 %v1360, 0.7978846
      %v1369 = vmul.f32 %v1361, 0.7978846
      %v1370 = vtanh.pop %v1362
      %v1371 = vtanh.pop %v1363
      %v1372 = vtanh.pop %v1364
      %v1373 = vtanh.pop %v1365
      %v1374 = vtanh.pop %v1366
      %v1375 = vtanh.pop %v1367
      %v1376 = vtanh.pop %v1368
      %v1377 = vtanh.pop %v1369
      %v1378 = vadd.f32 %v1370, 1.0
      %v1379 = vadd.f32 %v1371, 1.0
      %v1380 = vadd.f32 %v1372, 1.0
      %v1381 = vadd.f32 %v1373, 1.0
      %v1382 = vadd.f32 %v1374, 1.0
      %v1383 = vadd.f32 %v1375, 1.0
      %v1384 = vadd.f32 %v1376, 1.0
      %v1385 = vadd.f32 %v1377, 1.0
      %v1386 = vmul.f32 %v1378, 0.5
      %v1387 = vmul.f32 %v1379, 0.5
      %v1388 = vmul.f32 %v1380, 0.5
      %v1389 = vmul.f32 %v1381, 0.5
      %v1390 = vmul.f32 %v1382, 0.5
      %v1391 = vmul.f32 %v1383, 0.5
      %v1392 = vmul.f32 %v1384, 0.5
      %v1393 = vmul.f32 %v1385, 0.5
      %v1394 = vmul.f32 %v1279, %v1386
      %v1395 = vmul.f32 %v1281, %v1387
      %v1396 = vmul.f32 %v1322, %v1388
      %v1397 = vmul.f32 %v1324, %v1389
      %v1398 = vmul.f32 %v1283, %v1390
      %v1399 = vmul.f32 %v1285, %v1391
      %v1400 = vmul.f32 %v1326, %v1392
      %v1401 = vmul.f32 %v1328, %v1393
      %v1402 = vpack.c.bf16 %v1398, %v1394
      %v1403 = vpack.c.bf16 %v1399, %v1395
      %v1404 = vpack.c.bf16 %v1400, %v1396
      %v1405 = vpack.c.bf16 %v1401, %v1397
      %v1406 = vld [vmem:[%s10] sm:$0xf]
      %v1407 = vld [vmem:[%s10 + $0x4] sm:$0xf]
      %v1408 = vld [vmem:[%s10 + $0x8] sm:$0xf]
      %v1409 = vld [vmem:[%s10 + $0xc] sm:$0xf]
      %v1410 = vld [vmem:[%s10 + $0x10] sm:$0xf]
      %v1411 = vld [vmem:[%s10 + $0x14] sm:$0xf]
      %v1412 = vld [vmem:[%s10 + $0x18] sm:$0xf]
      %v1413 = vld [vmem:[%s10 + $0x1c] sm:$0xf]
      %v1414 = vld [vmem:[%s10 + $0x20] sm:$0xf]
      %v1415 = vld [vmem:[%s10 + $0x24] sm:$0xf]
      %v1416 = vld [vmem:[%s10 + $0x28] sm:$0xf]
      %v1417 = vld [vmem:[%s10 + $0x2c] sm:$0xf]
      %v1418 = vld [vmem:[%s10 + $0x30] sm:$0xf]
      %v1419 = vld [vmem:[%s10 + $0x34] sm:$0xf]
      %v1420 = vld [vmem:[%s10 + $0x38] sm:$0xf]
      %v1421 = vld [vmem:[%s10 + $0x3c] sm:$0xf]
      %v1422 = vld [vmem:[%s10 + $0x40] sm:$0xf]
      %v1423 = vld [vmem:[%s10 + $0x44] sm:$0xf]
      %v1424 = vld [vmem:[%s10 + $0x48] sm:$0xf]
      %v1425 = vld [vmem:[%s10 + $0x4c] sm:$0xf]
      %v1426 = vld [vmem:[%s10 + $0x50] sm:$0xf]
      %v1427 = vld [vmem:[%s10 + $0x54] sm:$0xf]
      %v1428 = vld [vmem:[%s10 + $0x58] sm:$0xf]
      %v1429 = vld [vmem:[%s10 + $0x5c] sm:$0xf]
      %v1430 = vld [vmem:[%s10 + $0x60] sm:$0xf]
      %v1431 = vld [vmem:[%s10 + $0x64] sm:$0xf]
      %v1432 = vld [vmem:[%s10 + $0x68] sm:$0xf]
      %v1433 = vld [vmem:[%s10 + $0x6c] sm:$0xf]
      %v1434 = vld [vmem:[%s10 + $0x70] sm:$0xf]
      %v1435 = vld [vmem:[%s10 + $0x74] sm:$0xf]
      %v1436 = vld [vmem:[%s10 + $0x78] sm:$0xf]
      %v1437 = vld [vmem:[%s10 + $0x7c] sm:$0xf]
      %v1438 = vld [vmem:[%s10 + $0x80] sm:$0xf]
      %v1439 = vld [vmem:[%s10 + $0x84] sm:$0xf]
      %v1440 = vld [vmem:[%s10 + $0x88] sm:$0xf]
      %v1441 = vld [vmem:[%s10 + $0x8c] sm:$0xf]
      %v1442 = vld [vmem:[%s10 + $0x90] sm:$0xf]
      %v1443 = vld [vmem:[%s10 + $0x94] sm:$0xf]
      %v1444 = vld [vmem:[%s10 + $0x98] sm:$0xf]
      %v1445 = vld [vmem:[%s10 + $0x9c] sm:$0xf]
      %v1446 = vld [vmem:[%s10 + $0xa0] sm:$0xf]
      %v1447 = vld [vmem:[%s10 + $0xa4] sm:$0xf]
      %v1448 = vld [vmem:[%s10 + $0xa8] sm:$0xf]
      %v1449 = vld [vmem:[%s10 + $0xac] sm:$0xf]
      %v1450 = vld [vmem:[%s10 + $0xb0] sm:$0xf]
      %v1451 = vld [vmem:[%s10 + $0xb4] sm:$0xf]
      %v1452 = vld [vmem:[%s10 + $0xb8] sm:$0xf]
      %v1453 = vld [vmem:[%s10 + $0xbc] sm:$0xf]
      %v1454 = vld [vmem:[%s10 + $0xc0] sm:$0xf]
      %v1455 = vld [vmem:[%s10 + $0xc4] sm:$0xf]
      %v1456 = vld [vmem:[%s10 + $0xc8] sm:$0xf]
      %v1457 = vld [vmem:[%s10 + $0xcc] sm:$0xf]
      %v1458 = vld [vmem:[%s10 + $0xd0] sm:$0xf]
      %v1459 = vld [vmem:[%s10 + $0xd4] sm:$0xf]
      %v1460 = vld [vmem:[%s10 + $0xd8] sm:$0xf]
      %v1461 = vld [vmem:[%s10 + $0xdc] sm:$0xf]
      %v1462 = vld [vmem:[%s10 + $0xe0] sm:$0xf]
      %v1463 = vld [vmem:[%s10 + $0xe4] sm:$0xf]
      %v1464 = vld [vmem:[%s10 + $0xe8] sm:$0xf]
      %v1465 = vld [vmem:[%s10 + $0xec] sm:$0xf]
      %v1466 = vld [vmem:[%s10 + $0xf0] sm:$0xf]
      %v1467 = vld [vmem:[%s10 + $0xf4] sm:$0xf]
      %v1468 = vld [vmem:[%s10 + $0xf8] sm:$0xf]
      %v1469 = vld [vmem:[%s10 + $0xfc] sm:$0xf]
      %v1470 = vld [vmem:[%s11] sm:$0x1]
      %v1472 = vlaneseq
      %v1473 = vshrl.u32 %v1472, 7
      %v1474 = vsub.s32 0, %v1473
      %v1475 = vrot.slane %v1470, %v1474
      %v1541 = vunpack.c.l.b16 %v1406
      %v1542 = vunpack.c.l.b16 %v1407
      %v1543 = vunpack.c.l.b16 %v1408
      %v1544 = vunpack.c.l.b16 %v1409
      %v1545 = vunpack.c.l.b16 %v1410
      %v1546 = vunpack.c.l.b16 %v1411
      %v1547 = vunpack.c.l.b16 %v1412
      %v1548 = vunpack.c.l.b16 %v1413
      %v1549 = vunpack.c.l.b16 %v1414
      %v1550 = vunpack.c.l.b16 %v1415
      %v1551 = vunpack.c.l.b16 %v1416
      %v1552 = vunpack.c.l.b16 %v1417
      %v1553 = vunpack.c.l.b16 %v1418
      %v1554 = vunpack.c.l.b16 %v1419
      %v1555 = vunpack.c.l.b16 %v1420
      %v1556 = vunpack.c.l.b16 %v1421
      %v1557 = vunpack.c.l.b16 %v1422
      %v1558 = vunpack.c.l.b16 %v1423
      %v1559 = vunpack.c.l.b16 %v1424
      %v1560 = vunpack.c.l.b16 %v1425
      %v1561 = vunpack.c.l.b16 %v1426
      %v1562 = vunpack.c.l.b16 %v1427
      %v1563 = vunpack.c.l.b16 %v1428
      %v1564 = vunpack.c.l.b16 %v1429
      %v1565 = vunpack.c.l.b16 %v1430
      %v1566 = vunpack.c.l.b16 %v1431
      %v1567 = vunpack.c.l.b16 %v1432
      %v1568 = vunpack.c.l.b16 %v1433
      %v1569 = vunpack.c.l.b16 %v1434
      %v1570 = vunpack.c.l.b16 %v1435
      %v1571 = vunpack.c.l.b16 %v1436
      %v1572 = vunpack.c.l.b16 %v1437
      %v1573 = vunpack.c.l.b16 %v1438
      %v1574 = vunpack.c.l.b16 %v1439
      %v1575 = vunpack.c.l.b16 %v1440
      %v1576 = vunpack.c.l.b16 %v1441
      %v1577 = vunpack.c.l.b16 %v1442
      %v1578 = vunpack.c.l.b16 %v1443
      %v1579 = vunpack.c.l.b16 %v1444
      %v1580 = vunpack.c.l.b16 %v1445
      %v1581 = vunpack.c.l.b16 %v1446
      %v1582 = vunpack.c.l.b16 %v1447
      %v1583 = vunpack.c.l.b16 %v1448
      %v1584 = vunpack.c.l.b16 %v1449
      %v1585 = vunpack.c.l.b16 %v1450
      %v1586 = vunpack.c.l.b16 %v1451
      %v1587 = vunpack.c.l.b16 %v1452
      %v1588 = vunpack.c.l.b16 %v1453
      %v1589 = vunpack.c.l.b16 %v1454
      %v1590 = vunpack.c.l.b16 %v1455
      %v1591 = vunpack.c.l.b16 %v1456
      %v1592 = vunpack.c.l.b16 %v1457
      %v1593 = vunpack.c.l.b16 %v1458
      %v1594 = vunpack.c.l.b16 %v1459
      %v1595 = vunpack.c.l.b16 %v1460
      %v1596 = vunpack.c.l.b16 %v1461
      %v1597 = vunpack.c.l.b16 %v1462
      %v1598 = vunpack.c.l.b16 %v1463
      %v1599 = vunpack.c.l.b16 %v1464
      %v1600 = vunpack.c.l.b16 %v1465
      %v1601 = vunpack.c.l.b16 %v1466
      %v1602 = vunpack.c.l.b16 %v1467
      %v1603 = vunpack.c.l.b16 %v1468
      %v1604 = vunpack.c.l.b16 %v1469
      %v1605 = vpack.c.b16 %v1542, %v1541
      %v1606 = vpack.c.b16 %v1544, %v1543
      %v1607 = vpack.c.b16 %v1546, %v1545
      %v1608 = vpack.c.b16 %v1548, %v1547
      %v1609 = vpack.c.b16 %v1550, %v1549
      %v1610 = vpack.c.b16 %v1552, %v1551
      %v1611 = vpack.c.b16 %v1554, %v1553
      %v1612 = vpack.c.b16 %v1556, %v1555
      %v1613 = vpack.c.b16 %v1558, %v1557
      %v1614 = vpack.c.b16 %v1560, %v1559
      %v1615 = vpack.c.b16 %v1562, %v1561
      %v1616 = vpack.c.b16 %v1564, %v1563
      %v1617 = vpack.c.b16 %v1566, %v1565
      %v1618 = vpack.c.b16 %v1568, %v1567
      %v1619 = vpack.c.b16 %v1570, %v1569
      %v1620 = vpack.c.b16 %v1572, %v1571
      %v1621 = vpack.c.b16 %v1574, %v1573
      %v1622 = vpack.c.b16 %v1576, %v1575
      %v1623 = vpack.c.b16 %v1578, %v1577
      %v1624 = vpack.c.b16 %v1580, %v1579
      %v1625 = vpack.c.b16 %v1582, %v1581
      %v1626 = vpack.c.b16 %v1584, %v1583
      %v1627 = vpack.c.b16 %v1586, %v1585
      %v1628 = vpack.c.b16 %v1588, %v1587
      %v1629 = vpack.c.b16 %v1590, %v1589
      %v1630 = vpack.c.b16 %v1592, %v1591
      %v1631 = vpack.c.b16 %v1594, %v1593
      %v1632 = vpack.c.b16 %v1596, %v1595
      %v1633 = vpack.c.b16 %v1598, %v1597
      %v1634 = vpack.c.b16 %v1600, %v1599
      %v1635 = vpack.c.b16 %v1602, %v1601
      %v1636 = vpack.c.b16 %v1604, %v1603
      %1669 = vmatprep.subr.bf16.mxu0 0
      %1670 = vmatpush1.bf16.msra.mxu0 %v1612
      %1671 = vmatprep.subr.bf16.mxu0 0
      %1672 = vmatpush1.bf16.msra.mxu0 %v1611
      %1673 = vmatprep.subr.bf16.mxu0 0
      %1674 = vmatpush1.bf16.msra.mxu0 %v1610
      %1675 = vmatprep.subr.bf16.mxu0 0
      %1676 = vmatpush1.bf16.msra.mxu0 %v1609
      %1677 = vmatprep.subr.bf16.mxu0 0
      %1678 = vmatpush1.bf16.msra.mxu0 %v1608
      %1679 = vmatprep.subr.bf16.mxu0 0
      %1680 = vmatpush1.bf16.msra.mxu0 %v1607
      %1681 = vmatprep.subr.bf16.mxu0 0
      %1682 = vmatpush1.bf16.msra.mxu0 %v1606
      %1683 = vmatprep.subr.bf16.mxu0 0
      %1684 = vmatpush1.bf16.msra.mxu0 %v1605
      %1685 = vmatprep.subr.bf16.mxu0 0
      %1686 = vmatpush2.bf16.msra.mxu0 %v1620
      %1687 = vmatprep.subr.bf16.mxu0 0
      %1688 = vmatpush2.bf16.msra.mxu0 %v1619
      %1689 = vmatprep.subr.bf16.mxu0 0
      %1690 = vmatpush2.bf16.msra.mxu0 %v1618
      %1691 = vmatprep.subr.bf16.mxu0 0
      %1692 = vmatpush2.bf16.msra.mxu0 %v1617
      %1693 = vmatprep.subr.bf16.mxu0 0
      %1694 = vmatpush2.bf16.msra.mxu0 %v1616
      %1695 = vmatprep.subr.bf16.mxu0 0
      %1696 = vmatpush2.bf16.msra.mxu0 %v1615
      %1697 = vmatprep.subr.bf16.mxu0 0
      %1698 = vmatpush2.bf16.msra.mxu0 %v1614
      %1699 = vmatprep.subr.bf16.mxu0 0
      %1700 = vmatpush2.bf16.msra.mxu0 %v1613
      %1701 = vmatprep.mubr.bf16.mxu0 %v1403
      %1702 = vmatmul.mubr.bf16.gmra.mxu0 %v1402
      %v1703 = vpop.f32.mrf.mxu0
      %v1704 = vadd.f32 %v1475, %v1703
      %v1705 = vpop.f32.mrf.mxu0
      %v1706 = vpop.f32.mrf.mxu0
      %v1707 = vadd.f32 %v1475, %v1706
      %v1708 = vpop.f32.mrf.mxu0
      %1709 = vdwg.mxu0
      %1710 = vmatprep.subr.bf16.mxu0 0
      %1711 = vmatpush1.bf16.msra.mxu0 %v1628
      %1712 = vmatprep.subr.bf16.mxu0 0
      %1713 = vmatpush1.bf16.msra.mxu0 %v1627
      %1714 = vmatprep.subr.bf16.mxu0 0
      %1715 = vmatpush1.bf16.msra.mxu0 %v1626
      %1716 = vmatprep.subr.bf16.mxu0 0
      %1717 = vmatpush1.bf16.msra.mxu0 %v1625
      %1718 = vmatprep.subr.bf16.mxu0 0
      %1719 = vmatpush1.bf16.msra.mxu0 %v1624
      %1720 = vmatprep.subr.bf16.mxu0 0
      %1721 = vmatpush1.bf16.msra.mxu0 %v1623
      %1722 = vmatprep.subr.bf16.mxu0 0
      %1723 = vmatpush1.bf16.msra.mxu0 %v1622
      %1724 = vmatprep.subr.bf16.mxu0 0
      %1725 = vmatpush1.bf16.msra.mxu0 %v1621
      %1726 = vmatprep.subr.bf16.mxu0 0
      %1727 = vmatpush2.bf16.msra.mxu0 %v1636
      %1728 = vmatprep.subr.bf16.mxu0 0
      %1729 = vmatpush2.bf16.msra.mxu0 %v1635
      %1730 = vmatprep.subr.bf16.mxu0 0
      %1731 = vmatpush2.bf16.msra.mxu0 %v1634
      %1732 = vmatprep.subr.bf16.mxu0 0
      %1733 = vmatpush2.bf16.msra.mxu0 %v1633
      %1734 = vmatprep.subr.bf16.mxu0 0
      %1735 = vmatpush2.bf16.msra.mxu0 %v1632
      %1736 = vmatprep.subr.bf16.mxu0 0
      %1737 = vmatpush2.bf16.msra.mxu0 %v1631
      %1738 = vmatprep.subr.bf16.mxu0 0
      %1739 = vmatpush2.bf16.msra.mxu0 %v1630
      %1740 = vmatprep.subr.bf16.mxu0 0
      %1741 = vmatpush2.bf16.msra.mxu0 %v1629
      %1742 = vmatprep.mubr.bf16.mxu0 %v1405
      %1743 = vmatmul.mubr.bf16.gmra.mxu0 %v1404
      %v1744 = vpop.f32.mrf.mxu0
      %v1745 = vadd.f32 %v1704, %v1744
      %v1746 = vpop.f32.mrf.mxu0
      %v1747 = vpop.f32.mrf.mxu0
      %v1748 = vadd.f32 %v1707, %v1747
      %v1749 = vpop.f32.mrf.mxu0
      %1750 = vdwg.mxu0
      %v1751 = vadd.f32 %v1027, %v1745
      %v1752 = vadd.f32 %v1028, %v1748
      %v1753 = vld [vmem:[%s12] sm:$0x1]
      %v1754 = vld [vmem:[%s13] sm:$0x1]
      %1755 = vadd.xlane.f32.xlu0 %v1751
      %v1756 = vpop.xlane.xlu0 %1755
      %1757 = vadd.xlane.f32.xlu0 %v1752
      %v1758 = vpop.xlane.xlu0 %1757
      %v1759 = vmul.f32 %v1756, %v994
      %v1760 = vmul.f32 %v1758, %v994
      %v1761 = vsub.f32 %v1751, %v1759
      %v1762 = vsub.f32 %v1752, %v1760
      %v1763 = vmul.f32 %v1761, %v1761
      %v1764 = vmul.f32 %v1762, %v1762
      %1765 = vadd.xlane.f32.xlu0 %v1763
      %v1766 = vpop.xlane.xlu0 %1765
      %1767 = vadd.xlane.f32.xlu0 %v1764
      %v1768 = vpop.xlane.xlu0 %1767
      %v1769 = vmul.f32 %v1766, %v994
      %v1770 = vmul.f32 %v1768, %v994
      %v1771 = vadd.f32 %v1769, 1e-12
      %v1772 = vadd.f32 %v1770, 1e-12
      %v1773 = vrsqrt.pop %v1771
      %v1774 = vrsqrt.pop %v1772
      %v1775 = vmul.f32 %v1761, %v1773
      %v1776 = vmul.f32 %v1762, %v1774
      %v1778 = vlaneseq
      %v1779 = vshrl.u32 %v1778, 7
      %v1780 = vsub.s32 0, %v1779
      %v1781 = vrot.slane %v1753, %v1780
      %v1783 = vmul.f32 %v1775, %v1781
      %v1784 = vmul.f32 %v1776, %v1781
      %v1786 = vlaneseq
      %v1787 = vshrl.u32 %v1786, 7
      %v1788 = vsub.s32 0, %v1787
      %v1789 = vrot.slane %v1754, %v1788
      %v1791 = vadd.f32 %v1783, %v1789
      %v1792 = vadd.f32 %v1784, %v1789
      %v1793 = vpack.c.bf16 %v1792, %v1791
      %v1795 = vunpack.c.l.b16 %v1793
      %v1796 = vunpack.c.h.b16 %v1793
      %v1797 = vpack.c.b16 %v1795, %v1795
      %v1798 = vpack.c.b16 %v1796, %v1796
      %1801 = vst [vmem:[%s481] sm:$0xf] %v1797
      %1802 = vst [vmem:[%s481 + $0x4] sm:$0xf] %v1798
      %p1803 = scmp.lt.s32.totalorder %s25, 1
      %s1804 = scalar_select %p1803, %s25, 1
      %s1805 = smul.addr %s1804, 2
      %s1806 = smul.addr %s1805, 4
      %s1807 = scalar_lea.vmem %s14, %s1806
      // Predicated region
      $region77: #{bert_plus_mlp_forward.4} parent=75 // pred_check
        %p1808 = pneg %p347
      $region78: #{bert_plus_mlp_forward.4} parent=75 // pred_check_branch
        %1810 = sbr.rel (%p1808) target = $region80
      $region79: #{bert_plus_mlp_forward.4} parent=75 // pred_region
        _
      $region80: #{bert_plus_mlp_forward.4} parent=75 // pred_fallthru
        _
    $region76: #{bert_plus_mlp_forward.4} parent=5 // pred_fallthru
      _
    %p1811 = scmp.le.s32.totalorder 2, %s20
    // Predicated region
    $region81: #{bert_plus_mlp_forward.4} parent=5 // pred_check
      %p1812 = pneg %p1811
    $region82: #{bert_plus_mlp_forward.4} parent=5 // pred_check_branch
      %1814 = sbr.rel (%p1812) target = $region84
    $region83: #{bert_plus_mlp_forward.4} parent=5 // pred_region
      %s1815 = ssub.s32 %s20, 2
      // Predicated region
      $region85: #{bert_plus_mlp_forward.4} parent=83 // pred_check
        %p1816 = pneg %p353
      $region86: #{bert_plus_mlp_forward.4} parent=83 // pred_check_branch
        %1818 = sbr.rel (%p1816) target = $region88
      $region87: #{bert_plus_mlp_forward.4} parent=83 // pred_region
        %p1819 = scmp.lt.s32.totalorder %s26, 1
        %s1820 = scalar_select %p1819, %s26, 1
        %s1821 = smul.addr %s1820, 2
        %s1822 = smul.addr %s1821, 4
        %s1823 = scalar_lea.vmem %s14, %s1822
      $region88: #{bert_plus_mlp_forward.4} parent=83 // pred_fallthru
        _
    $region84: #{bert_plus_mlp_forward.4} parent=5 // pred_fallthru
      _
  $region6: #{bert_plus_mlp_forward.4} parent=0 // loop_footer
    %s24 = sadd.s32 1, %s20
  $region7: #{bert_plus_mlp_forward.4} parent=0 // loop_footer_branch
    %19 = sbr.rel target = $region3
  $region8: #{bert_plus_mlp_forward.4} parent=0 // loop_exit
    _

</llo_original>
